<compile_context>
chip_gen: v7x
topology: tpu7x:2x2x1
jax: 0.10.0
libtpu: 0.0.40
codegen_flags: <defaults>
</compile_context>

<pallas_src>
import jax
import jax.numpy as jnp
from jax.experimental import pallas as pl
from jax.experimental.pallas import tpu as pltpu

# ----------------------------- model dimensions -----------------------------
B = 2                      # batch
CIN, H, W = 3, 16, 16      # input image (NCHW)
DIN = CIN * H * W          # 768
S, D = 18, 128             # n_styles x latent dim (ffhq branch uses 18 styles)
CF, HF, WF = 32, 8, 8      # encoder feature map C (NCHW)
FF = CF * HF * WF          # 2048
COUT, HOUT, WOUT = 3, 32, 32   # decoder output image
NOUT = COUT * HOUT * WOUT      # 3072
POOL = 16                  # face_pool target spatial size (AdaptiveAvgPool2d)
NPOOL = COUT * POOL * POOL     # 768

_VMEM = 32 * 1024 * 1024   # v7x-safe scoped-VMEM budget (64 MiB physical there)


# ---------------------------------------------------------------------------
# Merged encoder kernel: both heads consume the same x, one launch, 2 N-tiles.
#   codes = tanh((x @ Wc_i8) * scale_c + bc) + latent_avg
#   feat  = relu((x @ Wf_i8) * scale_f + bf)          (emitted in bf16)
# int8 weights are dequantized on the VPU (cast to bf16, per-column scale on
# the f32 accumulator) — portable across v5e / v6e / v7x MXUs.
# ---------------------------------------------------------------------------
def _encoder_kernel(x_ref, wc_ref, sc_ref, bc_ref, la_ref,
                    wf_ref, sf_ref, bf_ref, codes_ref, feat_ref):
    x = x_ref[...]                                        # bf16 (cast in wrapper)
    wc = wc_ref[...].astype(jnp.bfloat16)                 # int8 -> bf16 (exact)
    codes = jnp.dot(x, wc, preferred_element_type=jnp.float32)
    codes_ref[...] = jnp.tanh(codes * sc_ref[...] + bc_ref[...]) + la_ref[...]
    wf = wf_ref[...].astype(jnp.bfloat16)
    feat = jnp.dot(x, wf, preferred_element_type=jnp.float32)
    feat_ref[...] = jnp.maximum(feat * sf_ref[...] + bf_ref[...], 0.0
                                ).astype(jnp.bfloat16)


def encoder_heads(x_flat_bf16, params, tile_codes=1152, tile_feat=1024):
    n_tiles = (S * D) // tile_codes
    assert n_tiles == FF // tile_feat == 2, (tile_codes, tile_feat)
    la_flat = params["latent_avg"].reshape(1, S * D)
    return pl.pallas_call(
        _encoder_kernel,
        out_shape=(jax.ShapeDtypeStruct((B, S * D), jnp.float32),
                   jax.ShapeDtypeStruct((B, FF), jnp.bfloat16)),
        grid_spec=pltpu.PrefetchScalarGridSpec(
            num_scalar_prefetch=0,
            grid=(n_tiles,),
            in_specs=[
                pl.BlockSpec((B, DIN), lambda j: (0, 0)),
                pl.BlockSpec((DIN, tile_codes), lambda j: (0, j)),
                pl.BlockSpec((1, tile_codes), lambda j: (0, j)),
                pl.BlockSpec((1, tile_codes), lambda j: (0, j)),
                pl.BlockSpec((1, tile_codes), lambda j: (0, j)),
                pl.BlockSpec((DIN, tile_feat), lambda j: (0, j)),
                pl.BlockSpec((1, tile_feat), lambda j: (0, j)),
                pl.BlockSpec((1, tile_feat), lambda j: (0, j)),
            ],
            out_specs=[
                pl.BlockSpec((B, tile_codes), lambda j: (0, j)),
                pl.BlockSpec((B, tile_feat), lambda j: (0, j)),
            ],
        ),
        compiler_params=pltpu.CompilerParams(
            dimension_semantics=("parallel",),
            vmem_limit_bytes=_VMEM,
        ),
    )(x_flat_bf16,
      params["w_codes_i8"], params["s_codes"], params["b_codes"], la_flat,
      params["w_feat_i8"], params["s_feat"], params["b_feat"])


# ---------------------------------------------------------------------------
# Decoder kernel (synthetic generator head) with face_pool fused:
#   y      = tanh((zf @ Wcat_i8) * scale + b)       zf = [z, F0]  (B, D+FF)
#   out    = y                                      (B, 1024) per channel tile
#   pooled = y @ pool_mat   (f32, exact 1/4 weights) -> (B, 256) per channel
# One concatenated GEMM per tile (single weight DMA stream), pool matrix is
# VMEM-resident (constant index_map), tile_n = HOUT*WOUT = one output channel.
# ---------------------------------------------------------------------------
def _decoder_kernel(zf_ref, w_ref, s_ref, b_ref, pool_ref, out_ref, pooled_ref):
    w = w_ref[...].astype(jnp.bfloat16)                   # int8 -> bf16 dequant
    acc = jnp.dot(zf_ref[...], w, preferred_element_type=jnp.float32)
    y = jnp.tanh(acc * s_ref[...] + b_ref[...])           # f32 (B, 1024)
    out_ref[...] = y
    # AdaptiveAvgPool2d applied to the f32 tanh output (no downcast error).
    pooled_ref[...] = jnp.dot(y, pool_ref[...], preferred_element_type=jnp.float32)


def decoder(zf, w_cat_i8, s_cat, b_dec, pool_mat):
    tile_n = HOUT * WOUT                 # 1024: one output channel per step
    tile_p = POOL * POOL                 # 256 pooled values per channel
    assert NOUT % tile_n == 0
    # grid = 3 (one step per output channel); 2/1 split on v7x's two TCs —
    # accepted: total decoder work is tiny and HBM-stream bound.
    return pl.pallas_call(
        _decoder_kernel,
        out_shape=(jax.ShapeDtypeStruct((B, NOUT), jnp.float32),
                   jax.ShapeDtypeStruct((B, NPOOL), jnp.float32)),
        grid_spec=pltpu.PrefetchScalarGridSpec(
            num_scalar_prefetch=0,
            grid=(NOUT // tile_n,),
            in_specs=[
                pl.BlockSpec((B, D + FF), lambda j: (0, 0)),
                pl.BlockSpec((D + FF, tile_n), lambda j: (0, j)),
                pl.BlockSpec((1, tile_n), lambda j: (0, j)),
                pl.BlockSpec((1, tile_n), lambda j: (0, j)),
                pl.BlockSpec((tile_n, tile_p), lambda j: (0, 0)),
            ],
            out_specs=[
                pl.BlockSpec((B, tile_n), lambda j: (0, j)),
                pl.BlockSpec((B, tile_p), lambda j: (0, j)),
            ],
        ),
        compiler_params=pltpu.CompilerParams(
            dimension_semantics=("parallel",),
            vmem_limit_bytes=_VMEM,
        ),
    )(zf, w_cat_i8, s_cat, b_dec, pool_mat)


# ---------------------------------------------------------------------------
# Fuser gate (tiny: (1,D)@(D,CF) -> (1,CF) -> lane-dense (1,FF)), computed in
# plain XLA and folded into F0 once in the wrapper (hoisted out of the grid).
# For the Inversion branch direction == 0, so the gate is exactly 1.0.
# ---------------------------------------------------------------------------
def fuser_gate(direction, w_dir):
    dmean = jnp.mean(direction, axis=0, keepdims=True)              # (1, D)
    gate_c = 1.0 + dmean @ w_dir                                    # (1, CF)
    # F0 flat layout is channel-major (c * HF*WF + spatial) -> repeat each
    # per-channel gate HF*WF times to get a lane-dense (1, FF) vector.
    return jnp.repeat(gate_c, HF * WF, axis=1)                      # (1, FF)


# ---------------------------------------------------------------------------
# Parameters (deterministic synthetic init — no checkpoint loading).
# Streamed weight matrices are int8 with per-output-column f32 scales.
# ---------------------------------------------------------------------------
def _quantize_per_col(w):
    amax = jnp.max(jnp.abs(w), axis=0, keepdims=True)
    scale = jnp.maximum(amax, 1e-8) / 127.0
    w_i8 = jnp.clip(jnp.round(w / scale), -127.0, 127.0).astype(jnp.int8)
    return w_i8, scale.astype(jnp.float32)


def init_params(key):
    ks = jax.random.split(key, 8)
    sc = 0.02
    w_codes = sc * jax.random.normal(ks[0], (DIN, S * D), jnp.float32)
    w_feat = sc * jax.random.normal(ks[1], (DIN, FF), jnp.float32)
    w_dec = sc * jax.random.normal(ks[4], (D, NOUT), jnp.float32)
    w_f2d = sc * jax.random.normal(ks[5], (FF, NOUT), jnp.float32)
    w_cat = jnp.concatenate([w_dec, w_f2d], axis=0)       # (D+FF, NOUT)

    wc_i8, s_codes = _quantize_per_col(w_codes)
    wf_i8, s_feat = _quantize_per_col(w_feat)
    wcat_i8, s_cat = _quantize_per_col(w_cat)

    params = {
        "w_codes_i8": wc_i8, "s_codes": s_codes,
        "b_codes": jnp.zeros((1, S * D), jnp.float32),
        "w_feat_i8": wf_i8, "s_feat": s_feat,
        "b_feat": jnp.zeros((1, FF), jnp.float32),
        "latent_avg": sc * jax.random.normal(ks[2], (S, D), jnp.float32),
        "w_dir": sc * jax.random.normal(ks[3], (D, CF), jnp.float32),
        "w_cat_i8": wcat_i8, "s_cat": s_cat,
        "b_dec": jnp.zeros((1, NOUT), jnp.float32),
    }
    # Adaptive average-pool (HOUT,WOUT) -> (POOL,POOL) for a single channel,
    # expressed as a fixed (1024, 256) f32 matrix applied inside the decoder
    # kernel's epilogue (weights are exact powers of two: 1/4).
    hh = jnp.arange(HOUT)
    ww = jnp.arange(WOUT)
    flat_in = (hh[:, None] * WOUT + ww[None, :]).ravel()
    flat_out = ((hh // (HOUT // POOL))[:, None] * POOL
                + (ww // (WOUT // POOL))[None, :]).ravel()
    window = (HOUT // POOL) * (WOUT // POOL)
    pool_mat = jnp.zeros((HOUT * WOUT, POOL * POOL), jnp.float32)
    pool_mat = pool_mat.at[flat_in, flat_out].set(1.0 / window)
    params["pool_mat"] = pool_mat
    return params


# ---------------------------------------------------------------------------
# Forward pass mirroring Mamba_Inv.forward (Inversion branch).
# ---------------------------------------------------------------------------
def mamba_inv_forward(params, x, resize=True, return_latents=False,
                      direction_name="Inversion"):
    # TODO(synk): editing branch (get_edited_latent with InterfaceGAN /
    # StyleCLIP / GANSpace directions loaded from .npy/.pt) has no in-script
    # equivalent; only the 'Inversion' (zero direction) branch is implemented.
    assert direction_name == "Inversion"

    b = x.shape[0]
    x_flat = x.reshape(b, DIN).astype(jnp.bfloat16)      # cast once (wrapper)

    # --- encoder: codes head (+ latent_avg broadcast) and intermediate
    #     feature map C (bf16), in one merged kernel launch ---
    codes_flat, c_flat = encoder_heads(x_flat, params)
    codes = codes_flat.reshape(b, S, D)

    # --- direction = zeros (Inversion); fuser gate hoisted to one XLA op ---
    direction = jnp.zeros((S, D), jnp.float32)
    gate_full = fuser_gate(direction, params["w_dir"])   # (1, FF), == 1.0 here
    f0 = (c_flat.astype(jnp.float32) * gate_full).astype(jnp.bfloat16)

    # --- decoder([codes], feats=F0) with face_pool fused as an epilogue ---
    z = jnp.mean(codes, axis=1)                          # (B, D), hoisted
    zf = jnp.concatenate([z.astype(jnp.bfloat16), f0], axis=1)   # (B, D+FF)
    out_flat, pooled_flat = decoder(zf, params["w_cat_i8"], params["s_cat"],
                                    params["b_dec"], params["pool_mat"])

    if resize:
        output = pooled_flat.reshape(b, COUT, POOL, POOL)
    else:
        output = out_flat.reshape(b, COUT, HOUT, WOUT)

    if return_latents:
        return output, codes
    return output


if __name__ == "__main__":
    key = jax.random.PRNGKey(0)
    pkey, xkey = jax.random.split(key)
    params = init_params(pkey)
    x = jax.random.normal(xkey, (B, CIN, H, W), jnp.float32)

    out = mamba_inv_forward(params, x, resize=True, return_latents=False)
    out = jax.block_until_ready(out)
    assert out.shape == (B, COUT, POOL, POOL), out.shape
    print("KERNEL_OK")
</pallas_src>

<mosaic_0001>
module attributes {stable_mosaic.version = 11 : i64} {
  func.func @_encoder_kernel(%arg0: i32, %arg1: memref<2x768xbf16, #tpu.memory_space<vmem>>, %arg2: memref<768x1152xi8, #tpu.memory_space<vmem>>, %arg3: memref<1x1152xf32, #tpu.memory_space<vmem>>, %arg4: memref<1x1152xf32, #tpu.memory_space<vmem>>, %arg5: memref<1x1152xf32, #tpu.memory_space<vmem>>, %arg6: memref<768x1024xi8, #tpu.memory_space<vmem>>, %arg7: memref<1x1024xf32, #tpu.memory_space<vmem>>, %arg8: memref<1x1024xf32, #tpu.memory_space<vmem>>, %arg9: memref<2x1152xf32, #tpu.memory_space<vmem>>, %arg10: memref<2x1024xbf16, #tpu.memory_space<vmem>>) attributes {dimension_semantics = [#tpu.dimension_semantics<parallel>], iteration_bounds = array<i64: 2>, scalar_prefetch = 0 : i64, scratch_operands = 0 : i64, tpu.core_type = #tpu.core_type<tc>, window_params = [{pipeline_mode = #tpu.pipeline_mode<synchronous>, transform_indices = @transform_0, window_bounds = array<i64: 2, 768>}, {transform_indices = @transform_1, window_bounds = array<i64: 768, 1152>}, {transform_indices = @transform_2, window_bounds = array<i64: 1, 1152>}, {transform_indices = @transform_3, window_bounds = array<i64: 1, 1152>}, {transform_indices = @transform_4, window_bounds = array<i64: 1, 1152>}, {transform_indices = @transform_5, window_bounds = array<i64: 768, 1024>}, {transform_indices = @transform_6, window_bounds = array<i64: 1, 1024>}, {transform_indices = @transform_7, window_bounds = array<i64: 1, 1024>}, {transform_indices = @transform_8, window_bounds = array<i64: 2, 1152>}, {transform_indices = @transform_9, window_bounds = array<i64: 2, 1024>}]} {
    %c0 = arith.constant 0 : index
    %c0_0 = arith.constant 0 : index
    %0 = vector.load %arg1[%c0, %c0_0] : memref<2x768xbf16, #tpu.memory_space<vmem>>, vector<2x768xbf16>
    %c0_1 = arith.constant 0 : index
    %c0_2 = arith.constant 0 : index
    %1 = vector.load %arg2[%c0_1, %c0_2] : memref<768x1152xi8, #tpu.memory_space<vmem>>, vector<768x1152xi8>
    %2 = arith.sitofp %1 : vector<768x1152xi8> to vector<768x1152xbf16>
    %cst = arith.constant dense<0.000000e+00> : vector<2x1152xf32>
    %3 = tpu.matmul %0, %2, %cst {dimension_numbers = #tpu.dot_dimension_numbers<[1], [0], [0], [1], [0, 0, 1, 1], [], []>} : vector<2x768xbf16>, vector<768x1152xbf16>, vector<2x1152xf32> -> vector<2x1152xf32>
    %c0_3 = arith.constant 0 : index
    %c0_4 = arith.constant 0 : index
    %4 = vector.load %arg3[%c0_3, %c0_4] : memref<1x1152xf32, #tpu.memory_space<vmem>>, vector<1x1152xf32>
    %5 = vector.broadcast %4 : vector<1x1152xf32> to vector<2x1152xf32>
    %6 = arith.mulf %3, %5 : vector<2x1152xf32>
    %c0_5 = arith.constant 0 : index
    %c0_6 = arith.constant 0 : index
    %7 = vector.load %arg4[%c0_5, %c0_6] : memref<1x1152xf32, #tpu.memory_space<vmem>>, vector<1x1152xf32>
    %8 = vector.broadcast %7 : vector<1x1152xf32> to vector<2x1152xf32>
    %9 = arith.addf %6, %8 : vector<2x1152xf32>
    %10 = math.tanh %9 : vector<2x1152xf32>
    %c0_7 = arith.constant 0 : index
    %c0_8 = arith.constant 0 : index
    %11 = vector.load %arg5[%c0_7, %c0_8] : memref<1x1152xf32, #tpu.memory_space<vmem>>, vector<1x1152xf32>
    %12 = vector.broadcast %11 : vector<1x1152xf32> to vector<2x1152xf32>
    %13 = arith.addf %10, %12 : vector<2x1152xf32>
    %c0_9 = arith.constant 0 : index
    %c0_10 = arith.constant 0 : index
    %14 = vector.load %arg9[%c0_9, %c0_10] : memref<2x1152xf32, #tpu.memory_space<vmem>>, vector<2x1152xf32>
    tpu.vector_store %arg9[%c0_9, %c0_10], %13 {strides = array<i32>} : memref<2x1152xf32, #tpu.memory_space<vmem>>, vector<2x1152xf32>,
    %c0_11 = arith.constant 0 : index
    %c0_12 = arith.constant 0 : index
    %15 = vector.load %arg6[%c0_11, %c0_12] : memref<768x1024xi8, #tpu.memory_space<vmem>>, vector<768x1024xi8>
    %16 = arith.sitofp %15 : vector<768x1024xi8> to vector<768x1024xbf16>
    %cst_13 = arith.constant dense<0.000000e+00> : vector<2x1024xf32>
    %17 = tpu.matmul %0, %16, %cst_13 {dimension_numbers = #tpu.dot_dimension_numbers<[1], [0], [0], [1], [0, 0, 1, 1], [], []>} : vector<2x768xbf16>, vector<768x1024xbf16>, vector<2x1024xf32> -> vector<2x1024xf32>
    %c0_14 = arith.constant 0 : index
    %c0_15 = arith.constant 0 : index
    %18 = vector.load %arg7[%c0_14, %c0_15] : memref<1x1024xf32, #tpu.memory_space<vmem>>, vector<1x1024xf32>
    %19 = vector.broadcast %18 : vector<1x1024xf32> to vector<2x1024xf32>
    %20 = arith.mulf %17, %19 : vector<2x1024xf32>
    %c0_16 = arith.constant 0 : index
    %c0_17 = arith.constant 0 : index
    %21 = vector.load %arg8[%c0_16, %c0_17] : memref<1x1024xf32, #tpu.memory_space<vmem>>, vector<1x1024xf32>
    %22 = vector.broadcast %21 : vector<1x1024xf32> to vector<2x1024xf32>
    %23 = arith.addf %20, %22 : vector<2x1024xf32>
    %cst_18 = arith.constant 0.000000e+00 : f32
    %24 = vector.broadcast %cst_18 : f32 to vector<2x1024xf32>
    %25 = arith.maximumf %23, %24 : vector<2x1024xf32>
    %26 = arith.truncf %25 : vector<2x1024xf32> to vector<2x1024xbf16>
    %c0_19 = arith.constant 0 : index
    %c0_20 = arith.constant 0 : index
    %27 = vector.load %arg10[%c0_19, %c0_20] : memref<2x1024xbf16, #tpu.memory_space<vmem>>, vector<2x1024xbf16>
    tpu.vector_store %arg10[%c0_19, %c0_20], %26 {strides = array<i32>} : memref<2x1024xbf16, #tpu.memory_space<vmem>>, vector<2x1024xbf16>,
    return
  }
  func.func @transform_0(%arg0: i32) -> (i32, i32) {
    %c0_i32 = arith.constant 0 : i32
    %c0_i32_0 = arith.constant 0 : i32
    %c0_i32_1 = arith.constant 0 : i32
    return %c0_i32, %c0_i32_0 : i32, i32
  }
  func.func @transform_1(%arg0: i32) -> (i32, i32) {
    %c0_i32 = arith.constant 0 : i32
    %c0_i32_0 = arith.constant 0 : i32
    return %c0_i32, %arg0 : i32, i32
  }
  func.func @transform_2(%arg0: i32) -> (i32, i32) {
    %c0_i32 = arith.constant 0 : i32
    %c0_i32_0 = arith.constant 0 : i32
    return %c0_i32, %arg0 : i32, i32
  }
  func.func @transform_3(%arg0: i32) -> (i32, i32) {
    %c0_i32 = arith.constant 0 : i32
    %c0_i32_0 = arith.constant 0 : i32
    return %c0_i32, %arg0 : i32, i32
  }
  func.func @transform_4(%arg0: i32) -> (i32, i32) {
    %c0_i32 = arith.constant 0 : i32
    %c0_i32_0 = arith.constant 0 : i32
    return %c0_i32, %arg0 : i32, i32
  }
  func.func @transform_5(%arg0: i32) -> (i32, i32) {
    %c0_i32 = arith.constant 0 : i32
    %c0_i32_0 = arith.constant 0 : i32
    return %c0_i32, %arg0 : i32, i32
  }
  func.func @transform_6(%arg0: i32) -> (i32, i32) {
    %c0_i32 = arith.constant 0 : i32
    %c0_i32_0 = arith.constant 0 : i32
    return %c0_i32, %arg0 : i32, i32
  }
  func.func @transform_7(%arg0: i32) -> (i32, i32) {
    %c0_i32 = arith.constant 0 : i32
    %c0_i32_0 = arith.constant 0 : i32
    return %c0_i32, %arg0 : i32, i32
  }
  func.func @transform_8(%arg0: i32) -> (i32, i32) {
    %c0_i32 = arith.constant 0 : i32
    %c0_i32_0 = arith.constant 0 : i32
    return %c0_i32, %arg0 : i32, i32
  }
  func.func @transform_9(%arg0: i32) -> (i32, i32) {
    %c0_i32 = arith.constant 0 : i32
    %c0_i32_0 = arith.constant 0 : i32
    return %c0_i32, %arg0 : i32, i32
  }
}

</mosaic_0001>

<llo_original>
// kernel: tpu_custom_call.1
$region0: #{tpu_custom_call.1}
  #allocation0 [shape = 'u32[]', space=smem, size = 0x4, offset = 0x4, fixed_abs, tag = 'smem constant byte address 0x4 - core index']
  #allocation1 [shape = 'u32[144,128]{1,0:T(1,128)}', space=vmem, size = 0x12000, scoped, tag = 'internal scratch']
  %s0 = inlined_call_operand.hbm [shape: bf16[2,768], index: 0, kind: input, shape index: {}]
  %s1 = inlined_call_operand.hbm [shape: s8[768,2304], index: 1, kind: input, shape index: {}]
  %s2 = inlined_call_operand.hbm [shape: f32[1,2304], index: 2, kind: input, shape index: {}]
  %s3 = inlined_call_operand.hbm [shape: f32[1,2304], index: 3, kind: input, shape index: {}]
  %s4 = inlined_call_operand.hbm [shape: f32[1,2304], index: 4, kind: input, shape index: {}]
  %s5 = inlined_call_operand.hbm [shape: s8[768,2048], index: 5, kind: input, shape index: {}]
  %s6 = inlined_call_operand.hbm [shape: f32[1,2048], index: 6, kind: input, shape index: {}]
  %s7 = inlined_call_operand.hbm [shape: f32[1,2048], index: 7, kind: input, shape index: {}]
  %s8 = inlined_call_operand.hbm [shape: f32[2,2304], index: 8, kind: output, shape index: {0}]
  %s9 = inlined_call_operand.hbm [shape: bf16[2,2048], index: 9, kind: output, shape index: {1}]
  %10 = xla_tuple %s8, %s9
  %s11 = sld [smem:[#allocation0]]
  $region105: #{tpu_custom_call.1} parent=0
    _
  %s13 = ssub.s32 1, %s11
  %s14 = scalar_select 0, %s13, %s11
  $region1: #{tpu_custom_call.1} parent=0
    #allocation2 [shape = 'u8[3072]{0}', space=vmem, size = 0xc00, scoped, tag = 'input window, operand 0, single buffered']
    #allocation3 [shape = 's32[2]{0}', space=sflag, size = 0x8, scoped, tag = 'scoped memory for tpu_custom_call.1']
    #allocation4 [shape = 's32[2]{0}', space=sflag, size = 0x8, scoped, tag = 'scoped memory for tpu_custom_call.1']
    #allocation5 [shape = 'u8[1769472]{0}', space=vmem, size = 0x1b0000, scoped, tag = 'input window, operand 1']
    #allocation6 [shape = 's32[2]{0}', space=sflag, size = 0x8, scoped, tag = 'scoped memory for tpu_custom_call.1']
    #allocation7 [shape = 'u8[9216]{0}', space=vmem, size = 0x2400, scoped, tag = 'input window, operand 2']
    #allocation8 [shape = 'u8[9216]{0}', space=vmem, size = 0x2400, scoped, tag = 'input window, operand 3']
    #allocation9 [shape = 's32[2]{0}', space=sflag, size = 0x8, scoped, tag = 'scoped memory for tpu_custom_call.1']
    #allocation10 [shape = 'u8[9216]{0}', space=vmem, size = 0x2400, scoped, tag = 'input window, operand 4']
    #allocation11 [shape = 'u8[1572864]{0}', space=vmem, size = 0x180000, scoped, tag = 'input window, operand 5']
    #allocation12 [shape = 's32[2]{0}', space=sflag, size = 0x8, scoped, tag = 'scoped memory for tpu_custom_call.1']
    #allocation13 [shape = 'u8[8192]{0}', space=vmem, size = 0x2000, scoped, tag = 'input window, operand 6']
    #allocation14 [shape = 'u8[8192]{0}', space=vmem, size = 0x2000, scoped, tag = 'input window, operand 7']
    #allocation15 [shape = 's32[2]{0}', space=sflag, size = 0x8, scoped, tag = 'scoped memory for tpu_custom_call.1']
    #allocation16 [shape = 'u8[18432]{0}', space=vmem, size = 0x4800, scoped, tag = 'output window, operand 0']
    #allocation17 [shape = 'u8[8192]{0}', space=vmem, size = 0x2000, scoped, tag = 'output window, operand 1']
    #allocation18 [shape = 's32[2]{0}', space=sflag, size = 0x8, scoped, tag = 'scoped memory for tpu_custom_call.1']
    %15 = vsyncpa [#allocation3], 0
    %16 = vsyncpa [#allocation6], 0
    %s17 = scalar_lea.sflag [#allocation6], 1
    %18 = vsyncpa %s17, 0
    %19 = vsyncpa [#allocation9], 0
    %s20 = scalar_lea.sflag [#allocation9], 1
    %21 = vsyncpa %s20, 0
    %22 = vsyncpa [#allocation12], 0
    %s23 = scalar_lea.sflag [#allocation12], 1
    %24 = vsyncpa %s23, 0
    %25 = vsyncpa [#allocation15], 0
    %s26 = scalar_lea.sflag [#allocation15], 1
    %27 = vsyncpa %s26, 0
    %28 = vsyncpa [#allocation4], 0
    %s29 = scalar_lea.sflag [#allocation4], 1
    %30 = vsyncpa %s29, 0
    %31 = vsyncpa [#allocation18], 0
    %s32 = scalar_lea.sflag [#allocation18], 1
    %33 = vsyncpa %s32, 0
    loop: start=0, step=1, limit=4
    $region2: #{tpu_custom_call.1} parent=1 // loop_pre_header
      _
    $region3: #{tpu_custom_call.1} parent=1 // loop_header
      %s35 = sphi 0, %s39
      %p36 = scmp.ge.s32.totalorder %s35, 4
      %s43 = sphi 0, %s43
      %s45 = sphi 0, %s43
      %s46 = sphi 0, %s45
      %s60 = sphi 0, %s46
      %s66 = sphi 0, %s68
      %s69 = sphi 0, %s66
      %s70 = sphi 0, %s69
      %s86 = sphi 0, %s70
      %s92 = sphi 0, %s94
      %s95 = sphi 0, %s92
      %s96 = sphi 0, %s95
      %s112 = sphi 0, %s96
      %s118 = sphi 0, %s120
      %s121 = sphi 0, %s118
      %s122 = sphi 0, %s121
      %s138 = sphi 0, %s122
      %s144 = sphi 0, %s146
      %s147 = sphi 0, %s144
      %s148 = sphi 0, %s147
      %s164 = sphi 0, %s148
      %s170 = sphi 0, %s172
      %s173 = sphi 0, %s170
      %s174 = sphi 0, %s173
      %s190 = sphi 0, %s174
      %s196 = sphi 0, %s198
      %s199 = sphi 0, %s196
      %s200 = sphi 0, %s199
      %s216 = sphi 0, %s200
      %s222 = sphi 0, %s224
      %s225 = sphi 0, %s222
      %s226 = sphi 0, %s225
      %s242 = sphi 0, %s226
      %s248 = sphi 0, %s250
      %s251 = sphi 0, %s248
      %s252 = sphi 0, %s251
      %s268 = sphi 0, %s252
      %s274 = sphi 0, %s276
      %s277 = sphi 0, %s274
      %s278 = sphi 0, %s277
      %s294 = sphi 0, %s278
    $region4: #{tpu_custom_call.1} parent=1 // loop_header_branch
      %38 = sbr.rel (%p36) target = $region8
    $region5: #{tpu_custom_call.1} parent=1 // loop_body
      %s40 = ssub.s32 %s35, 1
      %s41 = ssub.s32 %s35, 2
      %s42 = sadd.s32 %s35, 1
      %s44 = sadd.s32 %s43, 1
      %p47 = scmp.eq.s32.totalorder %s35, 1
      %p48 = scmp.ne.s32.totalorder %s43, %s45
      %p49 = scmp.eq.s32.totalorder %s35, 0
      %p50 = por %p48, %p49
      %p51 = scmp.ne.s32.totalorder %s43, %s45
      %p52 = scmp.eq.s32.totalorder %s40, 1
      %p53 = por %p51, %p52
      %p54 = scmp.ne.s32.totalorder %s45, %s46
      %p55 = scmp.eq.s32.totalorder %s40, 0
      %p56 = por %p54, %p55
      %p57 = scmp.ne.s32.totalorder %s45, %s46
      %p58 = scmp.eq.s32.totalorder %s41, 1
      %p59 = por %p57, %p58
      %p61 = scmp.ne.s32.totalorder %s46, %s60
      %p62 = scmp.eq.s32.totalorder %s41, 0
      %p63 = por %p61, %p62
      %s64 = ssub.s32 %s35, %s42
      %p65 = scmp.eq.s32.totalorder %s64, 0
      %s67 = sadd.s32 %s66, 1
      %s68 = scalar_select %p65, %s66, %s67
      %p71 = pneg %p65
      %p72 = scmp.eq.s32.totalorder %s35, 1
      %p73 = por %p71, %p72
      %p74 = scmp.ne.s32.totalorder %s66, %s69
      %p75 = scmp.eq.s32.totalorder %s35, 0
      %p76 = por %p74, %p75
      %p77 = scmp.ne.s32.totalorder %s66, %s69
      %p78 = scmp.eq.s32.totalorder %s40, 1
      %p79 = por %p77, %p78
      %p80 = scmp.ne.s32.totalorder %s69, %s70
      %p81 = scmp.eq.s32.totalorder %s40, 0
      %p82 = por %p80, %p81
      %p83 = scmp.ne.s32.totalorder %s69, %s70
      %p84 = scmp.eq.s32.totalorder %s41, 1
      %p85 = por %p83, %p84
      %p87 = scmp.ne.s32.totalorder %s70, %s86
      %p88 = scmp.eq.s32.totalorder %s41, 0
      %p89 = por %p87, %p88
      %s90 = ssub.s32 %s35, %s42
      %p91 = scmp.eq.s32.totalorder %s90, 0
      %s93 = sadd.s32 %s92, 1
      %s94 = scalar_select %p91, %s92, %s93
      %p97 = pneg %p91
      %p98 = scmp.eq.s32.totalorder %s35, 1
      %p99 = por %p97, %p98
      %p100 = scmp.ne.s32.totalorder %s92, %s95
      %p101 = scmp.eq.s32.totalorder %s35, 0
      %p102 = por %p100, %p101
      %p103 = scmp.ne.s32.totalorder %s92, %s95
      %p104 = scmp.eq.s32.totalorder %s40, 1
      %p105 = por %p103, %p104
      %p106 = scmp.ne.s32.totalorder %s95, %s96
      %p107 = scmp.eq.s32.totalorder %s40, 0
      %p108 = por %p106, %p107
      %p109 = scmp.ne.s32.totalorder %s95, %s96
      %p110 = scmp.eq.s32.totalorder %s41, 1
      %p111 = por %p109, %p110
      %p113 = scmp.ne.s32.totalorder %s96, %s112
      %p114 = scmp.eq.s32.totalorder %s41, 0
      %p115 = por %p113, %p114
      %s116 = ssub.s32 %s35, %s42
      %p117 = scmp.eq.s32.totalorder %s116, 0
      %s119 = sadd.s32 %s118, 1
      %s120 = scalar_select %p117, %s118, %s119
      %p123 = pneg %p117
      %p124 = scmp.eq.s32.totalorder %s35, 1
      %p125 = por %p123, %p124
      %p126 = scmp.ne.s32.totalorder %s118, %s121
      %p127 = scmp.eq.s32.totalorder %s35, 0
      %p128 = por %p126, %p127
      %p129 = scmp.ne.s32.totalorder %s118, %s121
      %p130 = scmp.eq.s32.totalorder %s40, 1
      %p131 = por %p129, %p130
      %p132 = scmp.ne.s32.totalorder %s121, %s122
      %p133 = scmp.eq.s32.totalorder %s40, 0
      %p134 = por %p132, %p133
      %p135 = scmp.ne.s32.totalorder %s121, %s122
      %p136 = scmp.eq.s32.totalorder %s41, 1
      %p137 = por %p135, %p136
      %p139 = scmp.ne.s32.totalorder %s122, %s138
      %p140 = scmp.eq.s32.totalorder %s41, 0
      %p141 = por %p139, %p140
      %s142 = ssub.s32 %s35, %s42
      %p143 = scmp.eq.s32.totalorder %s142, 0
      %s145 = sadd.s32 %s144, 1
      %s146 = scalar_select %p143, %s144, %s145
      %p149 = pneg %p143
      %p150 = scmp.eq.s32.totalorder %s35, 1
      %p151 = por %p149, %p150
      %p152 = scmp.ne.s32.totalorder %s144, %s147
      %p153 = scmp.eq.s32.totalorder %s35, 0
      %p154 = por %p152, %p153
      %p155 = scmp.ne.s32.totalorder %s144, %s147
      %p156 = scmp.eq.s32.totalorder %s40, 1
      %p157 = por %p155, %p156
      %p158 = scmp.ne.s32.totalorder %s147, %s148
      %p159 = scmp.eq.s32.totalorder %s40, 0
      %p160 = por %p158, %p159
      %p161 = scmp.ne.s32.totalorder %s147, %s148
      %p162 = scmp.eq.s32.totalorder %s41, 1
      %p163 = por %p161, %p162
      %p165 = scmp.ne.s32.totalorder %s148, %s164
      %p166 = scmp.eq.s32.totalorder %s41, 0
      %p167 = por %p165, %p166
      %s168 = ssub.s32 %s35, %s42
      %p169 = scmp.eq.s32.totalorder %s168, 0
      %s171 = sadd.s32 %s170, 1
      %s172 = scalar_select %p169, %s170, %s171
      %p175 = pneg %p169
      %p176 = scmp.eq.s32.totalorder %s35, 1
      %p177 = por %p175, %p176
      %p178 = scmp.ne.s32.totalorder %s170, %s173
      %p179 = scmp.eq.s32.totalorder %s35, 0
      %p180 = por %p178, %p179
      %p181 = scmp.ne.s32.totalorder %s170, %s173
      %p182 = scmp.eq.s32.totalorder %s40, 1
      %p183 = por %p181, %p182
      %p184 = scmp.ne.s32.totalorder %s173, %s174
      %p185 = scmp.eq.s32.totalorder %s40, 0
      %p186 = por %p184, %p185
      %p187 = scmp.ne.s32.totalorder %s173, %s174
      %p188 = scmp.eq.s32.totalorder %s41, 1
      %p189 = por %p187, %p188
      %p191 = scmp.ne.s32.totalorder %s174, %s190
      %p192 = scmp.eq.s32.totalorder %s41, 0
      %p193 = por %p191, %p192
      %s194 = ssub.s32 %s35, %s42
      %p195 = scmp.eq.s32.totalorder %s194, 0
      %s197 = sadd.s32 %s196, 1
      %s198 = scalar_select %p195, %s196, %s197
      %p201 = pneg %p195
      %p202 = scmp.eq.s32.totalorder %s35, 1
      %p203 = por %p201, %p202
      %p204 = scmp.ne.s32.totalorder %s196, %s199
      %p205 = scmp.eq.s32.totalorder %s35, 0
      %p206 = por %p204, %p205
      %p207 = scmp.ne.s32.totalorder %s196, %s199
      %p208 = scmp.eq.s32.totalorder %s40, 1
      %p209 = por %p207, %p208
      %p210 = scmp.ne.s32.totalorder %s199, %s200
      %p211 = scmp.eq.s32.totalorder %s40, 0
      %p212 = por %p210, %p211
      %p213 = scmp.ne.s32.totalorder %s199, %s200
      %p214 = scmp.eq.s32.totalorder %s41, 1
      %p215 = por %p213, %p214
      %p217 = scmp.ne.s32.totalorder %s200, %s216
      %p218 = scmp.eq.s32.totalorder %s41, 0
      %p219 = por %p217, %p218
      %s220 = ssub.s32 %s35, %s42
      %p221 = scmp.eq.s32.totalorder %s220, 0
      %s223 = sadd.s32 %s222, 1
      %s224 = scalar_select %p221, %s222, %s223
      %p227 = pneg %p221
      %p228 = scmp.eq.s32.totalorder %s35, 1
      %p229 = por %p227, %p228
      %p230 = scmp.ne.s32.totalorder %s222, %s225
      %p231 = scmp.eq.s32.totalorder %s35, 0
      %p232 = por %p230, %p231
      %p233 = scmp.ne.s32.totalorder %s222, %s225
      %p234 = scmp.eq.s32.totalorder %s40, 1
      %p235 = por %p233, %p234
      %p236 = scmp.ne.s32.totalorder %s225, %s226
      %p237 = scmp.eq.s32.totalorder %s40, 0
      %p238 = por %p236, %p237
      %p239 = scmp.ne.s32.totalorder %s225, %s226
      %p240 = scmp.eq.s32.totalorder %s41, 1
      %p241 = por %p239, %p240
      %p243 = scmp.ne.s32.totalorder %s226, %s242
      %p244 = scmp.eq.s32.totalorder %s41, 0
      %p245 = por %p243, %p244
      %s246 = ssub.s32 %s35, %s42
      %p247 = scmp.eq.s32.totalorder %s246, 0
      %s249 = sadd.s32 %s248, 1
      %s250 = scalar_select %p247, %s248, %s249
      %p253 = pneg %p247
      %p254 = scmp.eq.s32.totalorder %s35, 1
      %p255 = por %p253, %p254
      %p256 = scmp.ne.s32.totalorder %s248, %s251
      %p257 = scmp.eq.s32.totalorder %s35, 0
      %p258 = por %p256, %p257
      %p259 = scmp.ne.s32.totalorder %s248, %s251
      %p260 = scmp.eq.s32.totalorder %s40, 1
      %p261 = por %p259, %p260
      %p262 = scmp.ne.s32.totalorder %s251, %s252
      %p263 = scmp.eq.s32.totalorder %s40, 0
      %p264 = por %p262, %p263
      %p265 = scmp.ne.s32.totalorder %s251, %s252
      %p266 = scmp.eq.s32.totalorder %s41, 1
      %p267 = por %p265, %p266
      %p269 = scmp.ne.s32.totalorder %s252, %s268
      %p270 = scmp.eq.s32.totalorder %s41, 0
      %p271 = por %p269, %p270
      %s272 = ssub.s32 %s35, %s42
      %p273 = scmp.eq.s32.totalorder %s272, 0
      %s275 = sadd.s32 %s274, 1
      %s276 = scalar_select %p273, %s274, %s275
      %p279 = pneg %p273
      %p280 = scmp.eq.s32.totalorder %s35, 1
      %p281 = por %p279, %p280
      %p282 = scmp.ne.s32.totalorder %s274, %s277
      %p283 = scmp.eq.s32.totalorder %s35, 0
      %p284 = por %p282, %p283
      %p285 = scmp.ne.s32.totalorder %s274, %s277
      %p286 = scmp.eq.s32.totalorder %s40, 1
      %p287 = por %p285, %p286
      %p288 = scmp.ne.s32.totalorder %s277, %s278
      %p289 = scmp.eq.s32.totalorder %s40, 0
      %p290 = por %p288, %p289
      %p291 = scmp.ne.s32.totalorder %s277, %s278
      %p292 = scmp.eq.s32.totalorder %s41, 1
      %p293 = por %p291, %p292
      %p295 = scmp.ne.s32.totalorder %s278, %s294
      %p296 = scmp.eq.s32.totalorder %s41, 0
      %p297 = por %p295, %p296
      %p298 = scmp.le.s32.totalorder 1, %s35
      %p299 = scmp.lt.s32.totalorder %s35, 3
      %p300 = pnand %p298, %p299
      %p301 = pneg %p300
      // Predicated region
      $region9: #{tpu_custom_call.1} parent=5 // pred_check
        _
      $region10: #{tpu_custom_call.1} parent=5 // pred_check_branch
        %303 = sbr.rel (%p300) target = $region12
      $region11: #{tpu_custom_call.1} parent=5 // pred_region
        %s304 = ssub.s32 %s35, 1
        // Predicated region
        $region13: #{tpu_custom_call.1} parent=11 // pred_check
          %p305 = pneg %p56
        $region14: #{tpu_custom_call.1} parent=11 // pred_check_branch
          %307 = sbr.rel (%p305) target = $region16
        $region15: #{tpu_custom_call.1} parent=11 // pred_region
          %s309 = ssub.s32 96, 96
          %310 = vsyncadd [#allocation3], %s309
          %s312 = sshll.u32 [#allocation2], 4
          %s313 = int_to_ptr.vmem [resolvable:$true] %s312
          %315 = dma.hbm_to_vmem [thread:$0]  %s0, 96, %s313, [#allocation3]
        $region16: #{tpu_custom_call.1} parent=11 // pred_fallthru
          _
      $region12: #{tpu_custom_call.1} parent=5 // pred_fallthru
        _
      %p316 = scmp.lt.s32.totalorder %s35, 2
      // Predicated region
      $region17: #{tpu_custom_call.1} parent=5 // pred_check
        %p317 = pneg %p316
      $region18: #{tpu_custom_call.1} parent=5 // pred_check_branch
        %319 = sbr.rel (%p317) target = $region20
      $region19: #{tpu_custom_call.1} parent=5 // pred_region
        // Predicated region
        $region21: #{tpu_custom_call.1} parent=19 // pred_check
          %p320 = pneg %p76
        $region22: #{tpu_custom_call.1} parent=19 // pred_check_branch
          %322 = sbr.rel (%p320) target = $region24
        $region23: #{tpu_custom_call.1} parent=19 // pred_region
          %s323 = sand.u32 %s35, 1
          %s324 = scalar_lea.sflag [#allocation6], %s323
          %s325 = sand.u32 %s66, 1
          %s326 = smul.addr %s325, 1728
          %s327 = scalar_lea.vmem [#allocation5], %s326
          %s328 = smul.u32 9, %s35
          %s330 = ssub.s32 27648, 27648
          %331 = vsyncadd %s324, %s330
          %s332 = smul.addr %s328, 128
          %s333 = scalar_lea.hbm %s1, %s332
          %s334 = sshll.u32 %s327, 4
          %s335 = int_to_ptr.vmem [resolvable:$true] %s334
          %340 = dma.hbm_to_vmem [thread:$0]  %s333, 27648, %s335, %s324, 2304, 1152, 72
        $region24: #{tpu_custom_call.1} parent=19 // pred_fallthru
          _
        // Predicated region
        $region25: #{tpu_custom_call.1} parent=19 // pred_check
          %p341 = pneg %p102
        $region26: #{tpu_custom_call.1} parent=19 // pred_check_branch
          %343 = sbr.rel (%p341) target = $region28
        $region27: #{tpu_custom_call.1} parent=19 // pred_region
          %s344 = sand.u32 %s35, 1
          %s345 = scalar_lea.sflag [#allocation6], %s344
          %s346 = sand.u32 %s92, 1
          %s347 = smul.addr %s346, 9
          %s348 = scalar_lea.vmem [#allocation7], %s347
          %s349 = smul.u32 9, %s35
          %s351 = ssub.s32 144, 144
          %352 = vsyncadd %s345, %s351
          %s353 = smul.addr %s349, 16
          %s354 = scalar_lea.hbm %s2, %s353
          %s356 = sshll.u32 %s348, 4
          %s357 = int_to_ptr.vmem [resolvable:$true] %s356
          %359 = dma.hbm_to_vmem [thread:$0]  %s354, 144, %s357, %s345
        $region28: #{tpu_custom_call.1} parent=19 // pred_fallthru
          _
        // Predicated region
        $region29: #{tpu_custom_call.1} parent=19 // pred_check
          %p360 = pneg %p128
        $region30: #{tpu_custom_call.1} parent=19 // pred_check_branch
          %362 = sbr.rel (%p360) target = $region32
        $region31: #{tpu_custom_call.1} parent=19 // pred_region
          %s363 = sand.u32 %s35, 1
          %s364 = scalar_lea.sflag [#allocation9], %s363
          %s365 = sand.u32 %s118, 1
          %s366 = smul.addr %s365, 9
          %s367 = scalar_lea.vmem [#allocation8], %s366
          %s368 = smul.u32 9, %s35
          %s370 = ssub.s32 144, 144
          %371 = vsyncadd %s364, %s370
          %s372 = smul.addr %s368, 16
          %s373 = scalar_lea.hbm %s3, %s372
          %s375 = sshll.u32 %s367, 4
          %s376 = int_to_ptr.vmem [resolvable:$true] %s375
          %378 = dma.hbm_to_vmem [thread:$0]  %s373, 144, %s376, %s364
        $region32: #{tpu_custom_call.1} parent=19 // pred_fallthru
          _
        // Predicated region
        $region33: #{tpu_custom_call.1} parent=19 // pred_check
          %p379 = pneg %p154
        $region34: #{tpu_custom_call.1} parent=19 // pred_check_branch
          %381 = sbr.rel (%p379) target = $region36
        $region35: #{tpu_custom_call.1} parent=19 // pred_region
          %s382 = sand.u32 %s35, 1
          %s383 = scalar_lea.sflag [#allocation9], %s382
          %s384 = sand.u32 %s144, 1
          %s385 = smul.addr %s384, 9
          %s386 = scalar_lea.vmem [#allocation10], %s385
          %s387 = smul.u32 9, %s35
          %s389 = ssub.s32 144, 144
          %390 = vsyncadd %s383, %s389
          %s391 = smul.addr %s387, 16
          %s392 = scalar_lea.hbm %s4, %s391
          %s394 = sshll.u32 %s386, 4
          %s395 = int_to_ptr.vmem [resolvable:$true] %s394
          %397 = dma.hbm_to_vmem [thread:$0]  %s392, 144, %s395, %s383
        $region36: #{tpu_custom_call.1} parent=19 // pred_fallthru
          _
        // Predicated region
        $region37: #{tpu_custom_call.1} parent=19 // pred_check
          %p398 = pneg %p180
        $region38: #{tpu_custom_call.1} parent=19 // pred_check_branch
          %400 = sbr.rel (%p398) target = $region40
        $region39: #{tpu_custom_call.1} parent=19 // pred_region
          %s401 = sand.u32 %s35, 1
          %s402 = scalar_lea.sflag [#allocation12], %s401
          %s403 = sand.u32 %s170, 1
          %s404 = smul.addr %s403, 1536
          %s405 = scalar_lea.vmem [#allocation11], %s404
          %s406 = smul.u32 8, %s35
          %s408 = ssub.s32 24576, 24576
          %409 = vsyncadd %s402, %s408
          %s410 = smul.addr %s406, 128
          %s411 = scalar_lea.hbm %s5, %s410
          %s412 = sshll.u32 %s405, 4
          %s413 = int_to_ptr.vmem [resolvable:$true] %s412
          %418 = dma.hbm_to_vmem [thread:$0]  %s411, 24576, %s413, %s402, 2048, 1024, 64
        $region40: #{tpu_custom_call.1} parent=19 // pred_fallthru
          _
        // Predicated region
        $region41: #{tpu_custom_call.1} parent=19 // pred_check
          %p419 = pneg %p206
        $region42: #{tpu_custom_call.1} parent=19 // pred_check_branch
          %421 = sbr.rel (%p419) target = $region44
        $region43: #{tpu_custom_call.1} parent=19 // pred_region
          %s422 = sand.u32 %s35, 1
          %s423 = scalar_lea.sflag [#allocation12], %s422
          %s424 = sand.u32 %s196, 1
          %s425 = smul.addr %s424, 8
          %s426 = scalar_lea.vmem [#allocation13], %s425
          %s427 = smul.u32 8, %s35
          %s429 = ssub.s32 128, 128
          %430 = vsyncadd %s423, %s429
          %s431 = smul.addr %s427, 16
          %s432 = scalar_lea.hbm %s6, %s431
          %s434 = sshll.u32 %s426, 4
          %s435 = int_to_ptr.vmem [resolvable:$true] %s434
          %437 = dma.hbm_to_vmem [thread:$0]  %s432, 128, %s435, %s423
        $region44: #{tpu_custom_call.1} parent=19 // pred_fallthru
          _
        // Predicated region
        $region45: #{tpu_custom_call.1} parent=19 // pred_check
          %p438 = pneg %p232
        $region46: #{tpu_custom_call.1} parent=19 // pred_check_branch
          %440 = sbr.rel (%p438) target = $region48
        $region47: #{tpu_custom_call.1} parent=19 // pred_region
          %s441 = sand.u32 %s222, 1
          %s442 = scalar_lea.sflag [#allocation15], %s441
          %s443 = sand.u32 %s222, 1
          %s444 = smul.addr %s443, 8
          %s445 = scalar_lea.vmem [#allocation14], %s444
          %s446 = smul.u32 8, %s35
          %s448 = ssub.s32 128, 128
          %449 = vsyncadd %s442, %s448
          %s450 = smul.addr %s446, 16
          %s451 = scalar_lea.hbm %s7, %s450
          %s453 = sshll.u32 %s445, 4
          %s454 = int_to_ptr.vmem [resolvable:$true] %s453
          %456 = dma.hbm_to_vmem [thread:$0]  %s451, 128, %s454, %s442
        $region48: #{tpu_custom_call.1} parent=19 // pred_fallthru
          _
      $region20: #{tpu_custom_call.1} parent=5 // pred_fallthru
        _
      %p457 = scmp.le.s32.totalorder 1, %s35
      %p458 = scmp.lt.s32.totalorder %s35, 3
      %p459 = pnand %p457, %p458
      %p460 = pneg %p459
      // Predicated region
      $region49: #{tpu_custom_call.1} parent=5 // pred_check
        _
      $region50: #{tpu_custom_call.1} parent=5 // pred_check_branch
        %462 = sbr.rel (%p459) target = $region52
      $region51: #{tpu_custom_call.1} parent=5 // pred_region
        %s463 = ssub.s32 %s35, 1
        // Predicated region
        $region53: #{tpu_custom_call.1} parent=51 // pred_check
          %p464 = pneg %p56
        $region54: #{tpu_custom_call.1} parent=51 // pred_check_branch
          %466 = sbr.rel (%p464) target = $region56
        $region55: #{tpu_custom_call.1} parent=51 // pred_region
          %467 = dma.done [#allocation3], 96
        $region56: #{tpu_custom_call.1} parent=51 // pred_fallthru
          _
        %s468 = sand.u32 %s40, 1
        %s469 = scalar_lea.sflag [#allocation6], %s468
        %s470 = sand.u32 %s69, 1
        %s471 = smul.addr %s470, 1728
        %s472 = scalar_lea.vmem [#allocation5], %s471
        // Predicated region
        $region57: #{tpu_custom_call.1} parent=51 // pred_check
          %p473 = pneg %p82
        $region58: #{tpu_custom_call.1} parent=51 // pred_check_branch
          %475 = sbr.rel (%p473) target = $region60
        $region59: #{tpu_custom_call.1} parent=51 // pred_region
          %476 = dma.done %s469, 27648
        $region60: #{tpu_custom_call.1} parent=51 // pred_fallthru
          _
        %s477 = sand.u32 %s40, 1
        %s478 = scalar_lea.sflag [#allocation6], %s477
        %s479 = sand.u32 %s95, 1
        %s480 = smul.addr %s479, 9
        %s481 = scalar_lea.vmem [#allocation7], %s480
        // Predicated region
        $region61: #{tpu_custom_call.1} parent=51 // pred_check
          %p482 = pneg %p108
        $region62: #{tpu_custom_call.1} parent=51 // pred_check_branch
          %484 = sbr.rel (%p482) target = $region64
        $region63: #{tpu_custom_call.1} parent=51 // pred_region
          %485 = dma.done %s478, 144
        $region64: #{tpu_custom_call.1} parent=51 // pred_fallthru
          _
        %s486 = sand.u32 %s40, 1
        %s487 = scalar_lea.sflag [#allocation9], %s486
        %s488 = sand.u32 %s121, 1
        %s489 = smul.addr %s488, 9
        %s490 = scalar_lea.vmem [#allocation8], %s489
        // Predicated region
        $region65: #{tpu_custom_call.1} parent=51 // pred_check
          %p491 = pneg %p134
        $region66: #{tpu_custom_call.1} parent=51 // pred_check_branch
          %493 = sbr.rel (%p491) target = $region68
        $region67: #{tpu_custom_call.1} parent=51 // pred_region
          %494 = dma.done %s487, 144
        $region68: #{tpu_custom_call.1} parent=51 // pred_fallthru
          _
        %s495 = sand.u32 %s40, 1
        %s496 = scalar_lea.sflag [#allocation9], %s495
        %s497 = sand.u32 %s147, 1
        %s498 = smul.addr %s497, 9
        %s499 = scalar_lea.vmem [#allocation10], %s498
        // Predicated region
        $region69: #{tpu_custom_call.1} parent=51 // pred_check
          %p500 = pneg %p160
        $region70: #{tpu_custom_call.1} parent=51 // pred_check_branch
          %502 = sbr.rel (%p500) target = $region72
        $region71: #{tpu_custom_call.1} parent=51 // pred_region
          %503 = dma.done %s496, 144
        $region72: #{tpu_custom_call.1} parent=51 // pred_fallthru
          _
        %s504 = sand.u32 %s40, 1
        %s505 = scalar_lea.sflag [#allocation12], %s504
        %s506 = sand.u32 %s173, 1
        %s507 = smul.addr %s506, 1536
        %s508 = scalar_lea.vmem [#allocation11], %s507
        // Predicated region
        $region73: #{tpu_custom_call.1} parent=51 // pred_check
          %p509 = pneg %p186
        $region74: #{tpu_custom_call.1} parent=51 // pred_check_branch
          %511 = sbr.rel (%p509) target = $region76
        $region75: #{tpu_custom_call.1} parent=51 // pred_region
          %512 = dma.done %s505, 24576
        $region76: #{tpu_custom_call.1} parent=51 // pred_fallthru
          _
        %s513 = sand.u32 %s40, 1
        %s514 = scalar_lea.sflag [#allocation12], %s513
        %s515 = sand.u32 %s199, 1
        %s516 = smul.addr %s515, 8
        %s517 = scalar_lea.vmem [#allocation13], %s516
        // Predicated region
        $region77: #{tpu_custom_call.1} parent=51 // pred_check
          %p518 = pneg %p212
        $region78: #{tpu_custom_call.1} parent=51 // pred_check_branch
          %520 = sbr.rel (%p518) target = $region80
        $region79: #{tpu_custom_call.1} parent=51 // pred_region
          %521 = dma.done %s514, 128
        $region80: #{tpu_custom_call.1} parent=51 // pred_fallthru
          _
        %s522 = sand.u32 %s225, 1
        %s523 = scalar_lea.sflag [#allocation15], %s522
        %s524 = sand.u32 %s225, 1
        %s525 = smul.addr %s524, 8
        %s526 = scalar_lea.vmem [#allocation14], %s525
        // Predicated region
        $region81: #{tpu_custom_call.1} parent=51 // pred_check
          %p527 = pneg %p238
        $region82: #{tpu_custom_call.1} parent=51 // pred_check_branch
          %529 = sbr.rel (%p527) target = $region84
        $region83: #{tpu_custom_call.1} parent=51 // pred_region
          %530 = dma.done %s523, 128
        $region84: #{tpu_custom_call.1} parent=51 // pred_fallthru
          _
        %p531 = pneg %p56
        %p532 = pneg %p53
        %s533 = sand.u32 %s40, 1
        %s534 = scalar_lea.sflag [#allocation6], %s533
        %s535 = sand.u32 %s69, 1
        %s536 = smul.addr %s535, 1728
        %s537 = scalar_lea.vmem [#allocation5], %s536
        %p538 = pneg %p82
        %p539 = pneg %p79
        %s540 = sand.u32 %s40, 1
        %s541 = scalar_lea.sflag [#allocation6], %s540
        %s542 = sand.u32 %s95, 1
        %s543 = smul.addr %s542, 9
        %s544 = scalar_lea.vmem [#allocation7], %s543
        %p545 = pneg %p108
        %p546 = pneg %p105
        %s547 = sand.u32 %s40, 1
        %s548 = scalar_lea.sflag [#allocation9], %s547
        %s549 = sand.u32 %s121, 1
        %s550 = smul.addr %s549, 9
        %s551 = scalar_lea.vmem [#allocation8], %s550
        %p552 = pneg %p134
        %p553 = pneg %p131
        %s554 = sand.u32 %s40, 1
        %s555 = scalar_lea.sflag [#allocation9], %s554
        %s556 = sand.u32 %s147, 1
        %s557 = smul.addr %s556, 9
        %s558 = scalar_lea.vmem [#allocation10], %s557
        %p559 = pneg %p160
        %p560 = pneg %p157
        %s561 = sand.u32 %s40, 1
        %s562 = scalar_lea.sflag [#allocation12], %s561
        %s563 = sand.u32 %s173, 1
        %s564 = smul.addr %s563, 1536
        %s565 = scalar_lea.vmem [#allocation11], %s564
        %p566 = pneg %p186
        %p567 = pneg %p183
        %s568 = sand.u32 %s40, 1
        %s569 = scalar_lea.sflag [#allocation12], %s568
        %s570 = sand.u32 %s199, 1
        %s571 = smul.addr %s570, 8
        %s572 = scalar_lea.vmem [#allocation13], %s571
        %p573 = pneg %p212
        %p574 = pneg %p209
        %s575 = sand.u32 %s225, 1
        %s576 = scalar_lea.sflag [#allocation15], %s575
        %s577 = sand.u32 %s225, 1
        %s578 = smul.addr %s577, 8
        %s579 = scalar_lea.vmem [#allocation14], %s578
        %p580 = pneg %p238
        %p581 = pneg %p235
        %p582 = pneg %p264
        %p583 = pneg %p261
        %s584 = sand.u32 %s251, 1
        %s585 = scalar_lea.sflag [#allocation4], %s584
        %s586 = sand.u32 %s251, 1
        %s587 = smul.addr %s586, 18
        %s588 = scalar_lea.vmem [#allocation16], %s587
        %p589 = pneg %p290
        %p590 = pneg %p287
        %s591 = sand.u32 %s277, 1
        %s592 = scalar_lea.sflag [#allocation18], %s591
        %s593 = sand.u32 %s277, 1
        %s594 = smul.addr %s593, 8
        %s595 = scalar_lea.vmem [#allocation17], %s594
        %s596 = smul.u32 9, %s40
        %s597 = smul.u32 9, %s40
        %s598 = smul.u32 9, %s40
        %s599 = smul.u32 9, %s40
        %s600 = smul.u32 8, %s40
        %s601 = smul.u32 8, %s40
        %s602 = smul.u32 8, %s40
        %s603 = smul.u32 9, %s40
        %s604 = smul.u32 8, %s40
        %v606 = vld [vmem:[#allocation2] sm:$0x3f]
        %v607 = vld [vmem:[%s472] sm:$0xff]
        %v608 = vld [vmem:[%s472 + $0x8] sm:$0xff]
        %v609 = vld [vmem:[%s472 + $0x10] sm:$0xff]
        %v610 = vld [vmem:[%s472 + $0x18] sm:$0xff]
        %v611 = vld [vmem:[%s472 + $0x20] sm:$0xff]
        %v612 = vld [vmem:[%s472 + $0x28] sm:$0xff]
        %v613 = vld [vmem:[%s472 + $0x30] sm:$0xff]
        %v614 = vld [vmem:[%s472 + $0x38] sm:$0xff]
        %v615 = vld [vmem:[%s472 + $0x40] sm:$0xff]
        %v616 = vld [vmem:[%s472 + $0x48] sm:$0xff]
        %v617 = vld [vmem:[%s472 + $0x50] sm:$0xff]
        %v618 = vld [vmem:[%s472 + $0x58] sm:$0xff]
        %v619 = vld [vmem:[%s472 + $0x60] sm:$0xff]
        %v620 = vld [vmem:[%s472 + $0x68] sm:$0xff]
        %v621 = vld [vmem:[%s472 + $0x70] sm:$0xff]
        %v622 = vld [vmem:[%s472 + $0x78] sm:$0xff]
        %v623 = vld [vmem:[%s472 + $0x80] sm:$0xff]
        %v624 = vld [vmem:[%s472 + $0x88] sm:$0xff]
        %v625 = vld [vmem:[%s472 + $0x90] sm:$0xff]
        %v626 = vld [vmem:[%s472 + $0x98] sm:$0xff]
        %v627 = vld [vmem:[%s472 + $0xa0] sm:$0xff]
        %v628 = vld [vmem:[%s472 + $0xa8] sm:$0xff]
        %v629 = vld [vmem:[%s472 + $0xb0] sm:$0xff]
        %v630 = vld [vmem:[%s472 + $0xb8] sm:$0xff]
        %v631 = vld [vmem:[%s472 + $0xc0] sm:$0xff]
        %v632 = vld [vmem:[%s472 + $0xc8] sm:$0xff]
        %v633 = vld [vmem:[%s472 + $0xd0] sm:$0xff]
        %v634 = vld [vmem:[%s472 + $0xd8] sm:$0xff]
        %v635 = vld [vmem:[%s472 + $0xe0] sm:$0xff]
        %v636 = vld [vmem:[%s472 + $0xe8] sm:$0xff]
        %v637 = vld [vmem:[%s472 + $0xf0] sm:$0xff]
        %v638 = vld [vmem:[%s472 + $0xf8] sm:$0xff]
        %v639 = vld [vmem:[%s472 + $0x100] sm:$0xff]
        %v640 = vld [vmem:[%s472 + $0x108] sm:$0xff]
        %v641 = vld [vmem:[%s472 + $0x110] sm:$0xff]
        %v642 = vld [vmem:[%s472 + $0x118] sm:$0xff]
        %v643 = vld [vmem:[%s472 + $0x120] sm:$0xff]
        %v644 = vld [vmem:[%s472 + $0x128] sm:$0xff]
        %v645 = vld [vmem:[%s472 + $0x130] sm:$0xff]
        %v646 = vld [vmem:[%s472 + $0x138] sm:$0xff]
        %v647 = vld [vmem:[%s472 + $0x140] sm:$0xff]
        %v648 = vld [vmem:[%s472 + $0x148] sm:$0xff]
        %v649 = vld [vmem:[%s472 + $0x150] sm:$0xff]
        %v650 = vld [vmem:[%s472 + $0x158] sm:$0xff]
        %v651 = vld [vmem:[%s472 + $0x160] sm:$0xff]
        %v652 = vld [vmem:[%s472 + $0x168] sm:$0xff]
        %v653 = vld [vmem:[%s472 + $0x170] sm:$0xff]
        %v654 = vld [vmem:[%s472 + $0x178] sm:$0xff]
        %v655 = vld [vmem:[%s472 + $0x180] sm:$0xff]
        %v656 = vld [vmem:[%s472 + $0x188] sm:$0xff]
        %v657 = vld [vmem:[%s472 + $0x190] sm:$0xff]
        %v658 = vld [vmem:[%s472 + $0x198] sm:$0xff]
        %v659 = vld [vmem:[%s472 + $0x1a0] sm:$0xff]
        %v660 = vld [vmem:[%s472 + $0x1a8] sm:$0xff]
        %v661 = vld [vmem:[%s472 + $0x1b0] sm:$0xff]
        %v662 = vld [vmem:[%s472 + $0x1b8] sm:$0xff]
        %v663 = vld [vmem:[%s472 + $0x1c0] sm:$0xff]
        %v664 = vld [vmem:[%s472 + $0x1c8] sm:$0xff]
        %v665 = vld [vmem:[%s472 + $0x1d0] sm:$0xff]
        %v666 = vld [vmem:[%s472 + $0x1d8] sm:$0xff]
        %v667 = vld [vmem:[%s472 + $0x1e0] sm:$0xff]
        %v668 = vld [vmem:[%s472 + $0x1e8] sm:$0xff]
        %v669 = vld [vmem:[%s472 + $0x1f0] sm:$0xff]
        %v670 = vld [vmem:[%s472 + $0x1f8] sm:$0xff]
        %v671 = vld [vmem:[%s472 + $0x200] sm:$0xff]
        %v672 = vld [vmem:[%s472 + $0x208] sm:$0xff]
        %v673 = vld [vmem:[%s472 + $0x210] sm:$0xff]
        %v674 = vld [vmem:[%s472 + $0x218] sm:$0xff]
        %v675 = vld [vmem:[%s472 + $0x220] sm:$0xff]
        %v676 = vld [vmem:[%s472 + $0x228] sm:$0xff]
        %v677 = vld [vmem:[%s472 + $0x230] sm:$0xff]
        %v678 = vld [vmem:[%s472 + $0x238] sm:$0xff]
        %v679 = vld [vmem:[%s472 + $0x240] sm:$0xff]
        %v680 = vld [vmem:[%s472 + $0x248] sm:$0xff]
        %v681 = vld [vmem:[%s472 + $0x250] sm:$0xff]
        %v682 = vld [vmem:[%s472 + $0x258] sm:$0xff]
        %v683 = vld [vmem:[%s472 + $0x260] sm:$0xff]
        %v684 = vld [vmem:[%s472 + $0x268] sm:$0xff]
        %v685 = vld [vmem:[%s472 + $0x270] sm:$0xff]
        %v686 = vld [vmem:[%s472 + $0x278] sm:$0xff]
        %v687 = vld [vmem:[%s472 + $0x280] sm:$0xff]
        %v688 = vld [vmem:[%s472 + $0x288] sm:$0xff]
        %v689 = vld [vmem:[%s472 + $0x290] sm:$0xff]
        %v690 = vld [vmem:[%s472 + $0x298] sm:$0xff]
        %v691 = vld [vmem:[%s472 + $0x2a0] sm:$0xff]
        %v692 = vld [vmem:[%s472 + $0x2a8] sm:$0xff]
        %v693 = vld [vmem:[%s472 + $0x2b0] sm:$0xff]
        %v694 = vld [vmem:[%s472 + $0x2b8] sm:$0xff]
        %v695 = vld [vmem:[%s472 + $0x2c0] sm:$0xff]
        %v696 = vld [vmem:[%s472 + $0x2c8] sm:$0xff]
        %v697 = vld [vmem:[%s472 + $0x2d0] sm:$0xff]
        %v698 = vld [vmem:[%s472 + $0x2d8] sm:$0xff]
        %v699 = vld [vmem:[%s472 + $0x2e0] sm:$0xff]
        %v700 = vld [vmem:[%s472 + $0x2e8] sm:$0xff]
        %v701 = vld [vmem:[%s472 + $0x2f0] sm:$0xff]
        %v702 = vld [vmem:[%s472 + $0x2f8] sm:$0xff]
        %v703 = vld [vmem:[%s472 + $0x300] sm:$0xff]
        %v704 = vld [vmem:[%s472 + $0x308] sm:$0xff]
        %v705 = vld [vmem:[%s472 + $0x310] sm:$0xff]
        %v706 = vld [vmem:[%s472 + $0x318] sm:$0xff]
        %v707 = vld [vmem:[%s472 + $0x320] sm:$0xff]
        %v708 = vld [vmem:[%s472 + $0x328] sm:$0xff]
        %v709 = vld [vmem:[%s472 + $0x330] sm:$0xff]
        %v710 = vld [vmem:[%s472 + $0x338] sm:$0xff]
        %v711 = vld [vmem:[%s472 + $0x340] sm:$0xff]
        %v712 = vld [vmem:[%s472 + $0x348] sm:$0xff]
        %v713 = vld [vmem:[%s472 + $0x350] sm:$0xff]
        %v714 = vld [vmem:[%s472 + $0x358] sm:$0xff]
        %v715 = vld [vmem:[%s472 + $0x360] sm:$0xff]
        %v716 = vld [vmem:[%s472 + $0x368] sm:$0xff]
        %v717 = vld [vmem:[%s472 + $0x370] sm:$0xff]
        %v718 = vld [vmem:[%s472 + $0x378] sm:$0xff]
        %v719 = vld [vmem:[%s472 + $0x380] sm:$0xff]
        %v720 = vld [vmem:[%s472 + $0x388] sm:$0xff]
        %v721 = vld [vmem:[%s472 + $0x390] sm:$0xff]
        %v722 = vld [vmem:[%s472 + $0x398] sm:$0xff]
        %v723 = vld [vmem:[%s472 + $0x3a0] sm:$0xff]
        %v724 = vld [vmem:[%s472 + $0x3a8] sm:$0xff]
        %v725 = vld [vmem:[%s472 + $0x3b0] sm:$0xff]
        %v726 = vld [vmem:[%s472 + $0x3b8] sm:$0xff]
        %v727 = vld [vmem:[%s472 + $0x3c0] sm:$0xff]
        %v728 = vld [vmem:[%s472 + $0x3c8] sm:$0xff]
        %v729 = vld [vmem:[%s472 + $0x3d0] sm:$0xff]
        %v730 = vld [vmem:[%s472 + $0x3d8] sm:$0xff]
        %v731 = vld [vmem:[%s472 + $0x3e0] sm:$0xff]
        %v732 = vld [vmem:[%s472 + $0x3e8] sm:$0xff]
        %v733 = vld [vmem:[%s472 + $0x3f0] sm:$0xff]
        %v734 = vld [vmem:[%s472 + $0x3f8] sm:$0xff]
        %v735 = vld [vmem:[%s472 + $0x400] sm:$0xff]
        %v736 = vld [vmem:[%s472 + $0x408] sm:$0xff]
        %v737 = vld [vmem:[%s472 + $0x410] sm:$0xff]
        %v738 = vld [vmem:[%s472 + $0x418] sm:$0xff]
        %v739 = vld [vmem:[%s472 + $0x420] sm:$0xff]
        %v740 = vld [vmem:[%s472 + $0x428] sm:$0xff]
        %v741 = vld [vmem:[%s472 + $0x430] sm:$0xff]
        %v742 = vld [vmem:[%s472 + $0x438] sm:$0xff]
        %v743 = vld [vmem:[%s472 + $0x440] sm:$0xff]
        %v744 = vld [vmem:[%s472 + $0x448] sm:$0xff]
        %v745 = vld [vmem:[%s472 + $0x450] sm:$0xff]
        %v746 = vld [vmem:[%s472 + $0x458] sm:$0xff]
        %v747 = vld [vmem:[%s472 + $0x460] sm:$0xff]
        %v748 = vld [vmem:[%s472 + $0x468] sm:$0xff]
        %v749 = vld [vmem:[%s472 + $0x470] sm:$0xff]
        %v750 = vld [vmem:[%s472 + $0x478] sm:$0xff]
        %v751 = vld [vmem:[%s472 + $0x480] sm:$0xff]
        %v752 = vld [vmem:[%s472 + $0x488] sm:$0xff]
        %v753 = vld [vmem:[%s472 + $0x490] sm:$0xff]
        %v754 = vld [vmem:[%s472 + $0x498] sm:$0xff]
        %v755 = vld [vmem:[%s472 + $0x4a0] sm:$0xff]
        %v756 = vld [vmem:[%s472 + $0x4a8] sm:$0xff]
        %v757 = vld [vmem:[%s472 + $0x4b0] sm:$0xff]
        %v758 = vld [vmem:[%s472 + $0x4b8] sm:$0xff]
        %v759 = vld [vmem:[%s472 + $0x4c0] sm:$0xff]
        %v760 = vld [vmem:[%s472 + $0x4c8] sm:$0xff]
        %v761 = vld [vmem:[%s472 + $0x4d0] sm:$0xff]
        %v762 = vld [vmem:[%s472 + $0x4d8] sm:$0xff]
        %v763 = vld [vmem:[%s472 + $0x4e0] sm:$0xff]
        %v764 = vld [vmem:[%s472 + $0x4e8] sm:$0xff]
        %v765 = vld [vmem:[%s472 + $0x4f0] sm:$0xff]
        %v766 = vld [vmem:[%s472 + $0x4f8] sm:$0xff]
        %v767 = vld [vmem:[%s472 + $0x500] sm:$0xff]
        %v768 = vld [vmem:[%s472 + $0x508] sm:$0xff]
        %v769 = vld [vmem:[%s472 + $0x510] sm:$0xff]
        %v770 = vld [vmem:[%s472 + $0x518] sm:$0xff]
        %v771 = vld [vmem:[%s472 + $0x520] sm:$0xff]
        %v772 = vld [vmem:[%s472 + $0x528] sm:$0xff]
        %v773 = vld [vmem:[%s472 + $0x530] sm:$0xff]
        %v774 = vld [vmem:[%s472 + $0x538] sm:$0xff]
        %v775 = vld [vmem:[%s472 + $0x540] sm:$0xff]
        %v776 = vld [vmem:[%s472 + $0x548] sm:$0xff]
        %v777 = vld [vmem:[%s472 + $0x550] sm:$0xff]
        %v778 = vld [vmem:[%s472 + $0x558] sm:$0xff]
        %v779 = vld [vmem:[%s472 + $0x560] sm:$0xff]
        %v780 = vld [vmem:[%s472 + $0x568] sm:$0xff]
        %v781 = vld [vmem:[%s472 + $0x570] sm:$0xff]
        %v782 = vld [vmem:[%s472 + $0x578] sm:$0xff]
        %v783 = vld [vmem:[%s472 + $0x580] sm:$0xff]
        %v784 = vld [vmem:[%s472 + $0x588] sm:$0xff]
        %v785 = vld [vmem:[%s472 + $0x590] sm:$0xff]
        %v786 = vld [vmem:[%s472 + $0x598] sm:$0xff]
        %v787 = vld [vmem:[%s472 + $0x5a0] sm:$0xff]
        %v788 = vld [vmem:[%s472 + $0x5a8] sm:$0xff]
        %v789 = vld [vmem:[%s472 + $0x5b0] sm:$0xff]
        %v790 = vld [vmem:[%s472 + $0x5b8] sm:$0xff]
        %v791 = vld [vmem:[%s472 + $0x5c0] sm:$0xff]
        %v792 = vld [vmem:[%s472 + $0x5c8] sm:$0xff]
        %v793 = vld [vmem:[%s472 + $0x5d0] sm:$0xff]
        %v794 = vld [vmem:[%s472 + $0x5d8] sm:$0xff]
        %v795 = vld [vmem:[%s472 + $0x5e0] sm:$0xff]
        %v796 = vld [vmem:[%s472 + $0x5e8] sm:$0xff]
        %v797 = vld [vmem:[%s472 + $0x5f0] sm:$0xff]
        %v798 = vld [vmem:[%s472 + $0x5f8] sm:$0xff]
        %v799 = vld [vmem:[%s472 + $0x600] sm:$0xff]
        %v800 = vld [vmem:[%s472 + $0x608] sm:$0xff]
        %v801 = vld [vmem:[%s472 + $0x610] sm:$0xff]
        %v802 = vld [vmem:[%s472 + $0x618] sm:$0xff]
        %v803 = vld [vmem:[%s472 + $0x620] sm:$0xff]
        %v804 = vld [vmem:[%s472 + $0x628] sm:$0xff]
        %v805 = vld [vmem:[%s472 + $0x630] sm:$0xff]
        %v806 = vld [vmem:[%s472 + $0x638] sm:$0xff]
        %v807 = vld [vmem:[%s472 + $0x640] sm:$0xff]
        %v808 = vld [vmem:[%s472 + $0x648] sm:$0xff]
        %v809 = vld [vmem:[%s472 + $0x650] sm:$0xff]
        %v810 = vld [vmem:[%s472 + $0x658] sm:$0xff]
        %v811 = vld [vmem:[%s472 + $0x660] sm:$0xff]
        %v812 = vld [vmem:[%s472 + $0x668] sm:$0xff]
        %v813 = vld [vmem:[%s472 + $0x670] sm:$0xff]
        %v814 = vld [vmem:[%s472 + $0x678] sm:$0xff]
        %v815 = vld [vmem:[%s472 + $0x680] sm:$0xff]
        %v816 = vld [vmem:[%s472 + $0x688] sm:$0xff]
        %v817 = vld [vmem:[%s472 + $0x690] sm:$0xff]
        %v818 = vld [vmem:[%s472 + $0x698] sm:$0xff]
        %v819 = vld [vmem:[%s472 + $0x6a0] sm:$0xff]
        %v820 = vld [vmem:[%s472 + $0x6a8] sm:$0xff]
        %v821 = vld [vmem:[%s472 + $0x6b0] sm:$0xff]
        %v822 = vld [vmem:[%s472 + $0x6b8] sm:$0xff]
        %v823 = vunpack.c.l.s8.bf16 %v607
        %v824 = vunpack.c.l.s8.bf16 %v608
        %v825 = vunpack.c.l.s8.bf16 %v609
        %v826 = vunpack.c.l.s8.bf16 %v610
        %v827 = vunpack.c.l.s8.bf16 %v611
        %v828 = vunpack.c.l.s8.bf16 %v612
        %v829 = vunpack.c.l.s8.bf16 %v613
        %v830 = vunpack.c.l.s8.bf16 %v614
        %v831 = vunpack.c.l.s8.bf16 %v615
        %v832 = vunpack.c.h.s8.bf16 %v607
        %v833 = vunpack.c.h.s8.bf16 %v608
        %v834 = vunpack.c.h.s8.bf16 %v609
        %v835 = vunpack.c.h.s8.bf16 %v610
        %v836 = vunpack.c.h.s8.bf16 %v611
        %v837 = vunpack.c.h.s8.bf16 %v612
        %v838 = vunpack.c.h.s8.bf16 %v613
        %v839 = vunpack.c.h.s8.bf16 %v614
        %v840 = vunpack.c.h.s8.bf16 %v615
        %v841 = vunpack.c.l.s8.bf16 %v616
        %v842 = vunpack.c.l.s8.bf16 %v617
        %v843 = vunpack.c.l.s8.bf16 %v618
        %v844 = vunpack.c.l.s8.bf16 %v619
        %v845 = vunpack.c.l.s8.bf16 %v620
        %v846 = vunpack.c.l.s8.bf16 %v621
        %v847 = vunpack.c.l.s8.bf16 %v622
        %v848 = vunpack.c.l.s8.bf16 %v623
        %v849 = vunpack.c.l.s8.bf16 %v624
        %v850 = vunpack.c.h.s8.bf16 %v616
        %v851 = vunpack.c.h.s8.bf16 %v617
        %v852 = vunpack.c.h.s8.bf16 %v618
        %v853 = vunpack.c.h.s8.bf16 %v619
        %v854 = vunpack.c.h.s8.bf16 %v620
        %v855 = vunpack.c.h.s8.bf16 %v621
        %v856 = vunpack.c.h.s8.bf16 %v622
        %v857 = vunpack.c.h.s8.bf16 %v623
        %v858 = vunpack.c.h.s8.bf16 %v624
        %v859 = vunpack.c.l.s8.bf16 %v625
        %v860 = vunpack.c.l.s8.bf16 %v626
        %v861 = vunpack.c.l.s8.bf16 %v627
        %v862 = vunpack.c.l.s8.bf16 %v628
        %v863 = vunpack.c.l.s8.bf16 %v629
        %v864 = vunpack.c.l.s8.bf16 %v630
        %v865 = vunpack.c.l.s8.bf16 %v631
        %v866 = vunpack.c.l.s8.bf16 %v632
        %v867 = vunpack.c.l.s8.bf16 %v633
        %v868 = vunpack.c.h.s8.bf16 %v625
        %v869 = vunpack.c.h.s8.bf16 %v626
        %v870 = vunpack.c.h.s8.bf16 %v627
        %v871 = vunpack.c.h.s8.bf16 %v628
        %v872 = vunpack.c.h.s8.bf16 %v629
        %v873 = vunpack.c.h.s8.bf16 %v630
        %v874 = vunpack.c.h.s8.bf16 %v631
        %v875 = vunpack.c.h.s8.bf16 %v632
        %v876 = vunpack.c.h.s8.bf16 %v633
        %v877 = vunpack.c.l.s8.bf16 %v634
        %v878 = vunpack.c.l.s8.bf16 %v635
        %v879 = vunpack.c.l.s8.bf16 %v636
        %v880 = vunpack.c.l.s8.bf16 %v637
        %v881 = vunpack.c.l.s8.bf16 %v638
        %v882 = vunpack.c.l.s8.bf16 %v639
        %v883 = vunpack.c.l.s8.bf16 %v640
        %v884 = vunpack.c.l.s8.bf16 %v641
        %v885 = vunpack.c.l.s8.bf16 %v642
        %v886 = vunpack.c.h.s8.bf16 %v634
        %v887 = vunpack.c.h.s8.bf16 %v635
        %v888 = vunpack.c.h.s8.bf16 %v636
        %v889 = vunpack.c.h.s8.bf16 %v637
        %v890 = vunpack.c.h.s8.bf16 %v638
        %v891 = vunpack.c.h.s8.bf16 %v639
        %v892 = vunpack.c.h.s8.bf16 %v640
        %v893 = vunpack.c.h.s8.bf16 %v641
        %v894 = vunpack.c.h.s8.bf16 %v642
        %v895 = vunpack.c.l.s8.bf16 %v643
        %v896 = vunpack.c.l.s8.bf16 %v644
        %v897 = vunpack.c.l.s8.bf16 %v645
        %v898 = vunpack.c.l.s8.bf16 %v646
        %v899 = vunpack.c.l.s8.bf16 %v647
        %v900 = vunpack.c.l.s8.bf16 %v648
        %v901 = vunpack.c.l.s8.bf16 %v649
        %v902 = vunpack.c.l.s8.bf16 %v650
        %v903 = vunpack.c.l.s8.bf16 %v651
        %v904 = vunpack.c.h.s8.bf16 %v643
        %v905 = vunpack.c.h.s8.bf16 %v644
        %v906 = vunpack.c.h.s8.bf16 %v645
        %v907 = vunpack.c.h.s8.bf16 %v646
        %v908 = vunpack.c.h.s8.bf16 %v647
        %v909 = vunpack.c.h.s8.bf16 %v648
        %v910 = vunpack.c.h.s8.bf16 %v649
        %v911 = vunpack.c.h.s8.bf16 %v650
        %v912 = vunpack.c.h.s8.bf16 %v651
        %v913 = vunpack.c.l.s8.bf16 %v652
        %v914 = vunpack.c.l.s8.bf16 %v653
        %v915 = vunpack.c.l.s8.bf16 %v654
        %v916 = vunpack.c.l.s8.bf16 %v655
        %v917 = vunpack.c.l.s8.bf16 %v656
        %v918 = vunpack.c.l.s8.bf16 %v657
        %v919 = vunpack.c.l.s8.bf16 %v658
        %v920 = vunpack.c.l.s8.bf16 %v659
        %v921 = vunpack.c.l.s8.bf16 %v660
        %v922 = vunpack.c.h.s8.bf16 %v652
        %v923 = vunpack.c.h.s8.bf16 %v653
        %v924 = vunpack.c.h.s8.bf16 %v654
        %v925 = vunpack.c.h.s8.bf16 %v655
        %v926 = vunpack.c.h.s8.bf16 %v656
        %v927 = vunpack.c.h.s8.bf16 %v657
        %v928 = vunpack.c.h.s8.bf16 %v658
        %v929 = vunpack.c.h.s8.bf16 %v659
        %v930 = vunpack.c.h.s8.bf16 %v660
        %v931 = vunpack.c.l.s8.bf16 %v661
        %v932 = vunpack.c.l.s8.bf16 %v662
        %v933 = vunpack.c.l.s8.bf16 %v663
        %v934 = vunpack.c.l.s8.bf16 %v664
        %v935 = vunpack.c.l.s8.bf16 %v665
        %v936 = vunpack.c.l.s8.bf16 %v666
        %v937 = vunpack.c.l.s8.bf16 %v667
        %v938 = vunpack.c.l.s8.bf16 %v668
        %v939 = vunpack.c.l.s8.bf16 %v669
        %v940 = vunpack.c.h.s8.bf16 %v661
        %v941 = vunpack.c.h.s8.bf16 %v662
        %v942 = vunpack.c.h.s8.bf16 %v663
        %v943 = vunpack.c.h.s8.bf16 %v664
        %v944 = vunpack.c.h.s8.bf16 %v665
        %v945 = vunpack.c.h.s8.bf16 %v666
        %v946 = vunpack.c.h.s8.bf16 %v667
        %v947 = vunpack.c.h.s8.bf16 %v668
        %v948 = vunpack.c.h.s8.bf16 %v669
        %v949 = vunpack.c.l.s8.bf16 %v670
        %v950 = vunpack.c.l.s8.bf16 %v671
        %v951 = vunpack.c.l.s8.bf16 %v672
        %v952 = vunpack.c.l.s8.bf16 %v673
        %v953 = vunpack.c.l.s8.bf16 %v674
        %v954 = vunpack.c.l.s8.bf16 %v675
        %v955 = vunpack.c.l.s8.bf16 %v676
        %v956 = vunpack.c.l.s8.bf16 %v677
        %v957 = vunpack.c.l.s8.bf16 %v678
        %v958 = vunpack.c.h.s8.bf16 %v670
        %v959 = vunpack.c.h.s8.bf16 %v671
        %v960 = vunpack.c.h.s8.bf16 %v672
        %v961 = vunpack.c.h.s8.bf16 %v673
        %v962 = vunpack.c.h.s8.bf16 %v674
        %v963 = vunpack.c.h.s8.bf16 %v675
        %v964 = vunpack.c.h.s8.bf16 %v676
        %v965 = vunpack.c.h.s8.bf16 %v677
        %v966 = vunpack.c.h.s8.bf16 %v678
        %v967 = vunpack.c.l.s8.bf16 %v679
        %v968 = vunpack.c.l.s8.bf16 %v680
        %v969 = vunpack.c.l.s8.bf16 %v681
        %v970 = vunpack.c.l.s8.bf16 %v682
        %v971 = vunpack.c.l.s8.bf16 %v683
        %v972 = vunpack.c.l.s8.bf16 %v684
        %v973 = vunpack.c.l.s8.bf16 %v685
        %v974 = vunpack.c.l.s8.bf16 %v686
        %v975 = vunpack.c.l.s8.bf16 %v687
        %v976 = vunpack.c.h.s8.bf16 %v679
        %v977 = vunpack.c.h.s8.bf16 %v680
        %v978 = vunpack.c.h.s8.bf16 %v681
        %v979 = vunpack.c.h.s8.bf16 %v682
        %v980 = vunpack.c.h.s8.bf16 %v683
        %v981 = vunpack.c.h.s8.bf16 %v684
        %v982 = vunpack.c.h.s8.bf16 %v685
        %v983 = vunpack.c.h.s8.bf16 %v686
        %v984 = vunpack.c.h.s8.bf16 %v687
        %v985 = vunpack.c.l.s8.bf16 %v688
        %v986 = vunpack.c.l.s8.bf16 %v689
        %v987 = vunpack.c.l.s8.bf16 %v690
        %v988 = vunpack.c.l.s8.bf16 %v691
        %v989 = vunpack.c.l.s8.bf16 %v692
        %v990 = vunpack.c.l.s8.bf16 %v693
        %v991 = vunpack.c.l.s8.bf16 %v694
        %v992 = vunpack.c.l.s8.bf16 %v695
        %v993 = vunpack.c.l.s8.bf16 %v696
        %v994 = vunpack.c.h.s8.bf16 %v688
        %v995 = vunpack.c.h.s8.bf16 %v689
        %v996 = vunpack.c.h.s8.bf16 %v690
        %v997 = vunpack.c.h.s8.bf16 %v691
        %v998 = vunpack.c.h.s8.bf16 %v692
        %v999 = vunpack.c.h.s8.bf16 %v693
        %v1000 = vunpack.c.h.s8.bf16 %v694
        %v1001 = vunpack.c.h.s8.bf16 %v695
        %v1002 = vunpack.c.h.s8.bf16 %v696
        %v1003 = vunpack.c.l.s8.bf16 %v697
        %v1004 = vunpack.c.l.s8.bf16 %v698
        %v1005 = vunpack.c.l.s8.bf16 %v699
        %v1006 = vunpack.c.l.s8.bf16 %v700
        %v1007 = vunpack.c.l.s8.bf16 %v701
        %v1008 = vunpack.c.l.s8.bf16 %v702
        %v1009 = vunpack.c.l.s8.bf16 %v703
        %v1010 = vunpack.c.l.s8.bf16 %v704
        %v1011 = vunpack.c.l.s8.bf16 %v705
        %v1012 = vunpack.c.h.s8.bf16 %v697
        %v1013 = vunpack.c.h.s8.bf16 %v698
        %v1014 = vunpack.c.h.s8.bf16 %v699
        %v1015 = vunpack.c.h.s8.bf16 %v700
        %v1016 = vunpack.c.h.s8.bf16 %v701
        %v1017 = vunpack.c.h.s8.bf16 %v702
        %v1018 = vunpack.c.h.s8.bf16 %v703
        %v1019 = vunpack.c.h.s8.bf16 %v704
        %v1020 = vunpack.c.h.s8.bf16 %v705
        %v1021 = vunpack.c.l.s8.bf16 %v706
        %v1022 = vunpack.c.l.s8.bf16 %v707
        %v1023 = vunpack.c.l.s8.bf16 %v708
        %v1024 = vunpack.c.l.s8.bf16 %v709
        %v1025 = vunpack.c.l.s8.bf16 %v710
        %v1026 = vunpack.c.l.s8.bf16 %v711
        %v1027 = vunpack.c.l.s8.bf16 %v712
        %v1028 = vunpack.c.l.s8.bf16 %v713
        %v1029 = vunpack.c.l.s8.bf16 %v714
        %v1030 = vunpack.c.h.s8.bf16 %v706
        %v1031 = vunpack.c.h.s8.bf16 %v707
        %v1032 = vunpack.c.h.s8.bf16 %v708
        %v1033 = vunpack.c.h.s8.bf16 %v709
        %v1034 = vunpack.c.h.s8.bf16 %v710
        %v1035 = vunpack.c.h.s8.bf16 %v711
        %v1036 = vunpack.c.h.s8.bf16 %v712
        %v1037 = vunpack.c.h.s8.bf16 %v713
        %v1038 = vunpack.c.h.s8.bf16 %v714
        %v1039 = vunpack.c.l.s8.bf16 %v715
        %v1040 = vunpack.c.l.s8.bf16 %v716
        %v1041 = vunpack.c.l.s8.bf16 %v717
        %v1042 = vunpack.c.l.s8.bf16 %v718
        %v1043 = vunpack.c.l.s8.bf16 %v719
        %v1044 = vunpack.c.l.s8.bf16 %v720
        %v1045 = vunpack.c.l.s8.bf16 %v721
        %v1046 = vunpack.c.l.s8.bf16 %v722
        %v1047 = vunpack.c.l.s8.bf16 %v723
        %v1048 = vunpack.c.h.s8.bf16 %v715
        %v1049 = vunpack.c.h.s8.bf16 %v716
        %v1050 = vunpack.c.h.s8.bf16 %v717
        %v1051 = vunpack.c.h.s8.bf16 %v718
        %v1052 = vunpack.c.h.s8.bf16 %v719
        %v1053 = vunpack.c.h.s8.bf16 %v720
        %v1054 = vunpack.c.h.s8.bf16 %v721
        %v1055 = vunpack.c.h.s8.bf16 %v722
        %v1056 = vunpack.c.h.s8.bf16 %v723
        %v1057 = vunpack.c.l.s8.bf16 %v724
        %v1058 = vunpack.c.l.s8.bf16 %v725
        %v1059 = vunpack.c.l.s8.bf16 %v726
        %v1060 = vunpack.c.l.s8.bf16 %v727
        %v1061 = vunpack.c.l.s8.bf16 %v728
        %v1062 = vunpack.c.l.s8.bf16 %v729
        %v1063 = vunpack.c.l.s8.bf16 %v730
        %v1064 = vunpack.c.l.s8.bf16 %v731
        %v1065 = vunpack.c.l.s8.bf16 %v732
        %v1066 = vunpack.c.h.s8.bf16 %v724
        %v1067 = vunpack.c.h.s8.bf16 %v725
        %v1068 = vunpack.c.h.s8.bf16 %v726
        %v1069 = vunpack.c.h.s8.bf16 %v727
        %v1070 = vunpack.c.h.s8.bf16 %v728
        %v1071 = vunpack.c.h.s8.bf16 %v729
        %v1072 = vunpack.c.h.s8.bf16 %v730
        %v1073 = vunpack.c.h.s8.bf16 %v731
        %v1074 = vunpack.c.h.s8.bf16 %v732
        %v1075 = vunpack.c.l.s8.bf16 %v733
        %v1076 = vunpack.c.l.s8.bf16 %v734
        %v1077 = vunpack.c.l.s8.bf16 %v735
        %v1078 = vunpack.c.l.s8.bf16 %v736
        %v1079 = vunpack.c.l.s8.bf16 %v737
        %v1080 = vunpack.c.l.s8.bf16 %v738
        %v1081 = vunpack.c.l.s8.bf16 %v739
        %v1082 = vunpack.c.l.s8.bf16 %v740
        %v1083 = vunpack.c.l.s8.bf16 %v741
        %v1084 = vunpack.c.h.s8.bf16 %v733
        %v1085 = vunpack.c.h.s8.bf16 %v734
        %v1086 = vunpack.c.h.s8.bf16 %v735
        %v1087 = vunpack.c.h.s8.bf16 %v736
        %v1088 = vunpack.c.h.s8.bf16 %v737
        %v1089 = vunpack.c.h.s8.bf16 %v738
        %v1090 = vunpack.c.h.s8.bf16 %v739
        %v1091 = vunpack.c.h.s8.bf16 %v740
        %v1092 = vunpack.c.h.s8.bf16 %v741
        %v1093 = vunpack.c.l.s8.bf16 %v742
        %v1094 = vunpack.c.l.s8.bf16 %v743
        %v1095 = vunpack.c.l.s8.bf16 %v744
        %v1096 = vunpack.c.l.s8.bf16 %v745
        %v1097 = vunpack.c.l.s8.bf16 %v746
        %v1098 = vunpack.c.l.s8.bf16 %v747
        %v1099 = vunpack.c.l.s8.bf16 %v748
        %v1100 = vunpack.c.l.s8.bf16 %v749
        %v1101 = vunpack.c.l.s8.bf16 %v750
        %v1102 = vunpack.c.h.s8.bf16 %v742
        %v1103 = vunpack.c.h.s8.bf16 %v743
        %v1104 = vunpack.c.h.s8.bf16 %v744
        %v1105 = vunpack.c.h.s8.bf16 %v745
        %v1106 = vunpack.c.h.s8.bf16 %v746
        %v1107 = vunpack.c.h.s8.bf16 %v747
        %v1108 = vunpack.c.h.s8.bf16 %v748
        %v1109 = vunpack.c.h.s8.bf16 %v749
        %v1110 = vunpack.c.h.s8.bf16 %v750
        %v1111 = vunpack.c.l.s8.bf16 %v751
        %v1112 = vunpack.c.l.s8.bf16 %v752
        %v1113 = vunpack.c.l.s8.bf16 %v753
        %v1114 = vunpack.c.l.s8.bf16 %v754
        %v1115 = vunpack.c.l.s8.bf16 %v755
        %v1116 = vunpack.c.l.s8.bf16 %v756
        %v1117 = vunpack.c.l.s8.bf16 %v757
        %v1118 = vunpack.c.l.s8.bf16 %v758
        %v1119 = vunpack.c.l.s8.bf16 %v759
        %v1120 = vunpack.c.h.s8.bf16 %v751
        %v1121 = vunpack.c.h.s8.bf16 %v752
        %v1122 = vunpack.c.h.s8.bf16 %v753
        %v1123 = vunpack.c.h.s8.bf16 %v754
        %v1124 = vunpack.c.h.s8.bf16 %v755
        %v1125 = vunpack.c.h.s8.bf16 %v756
        %v1126 = vunpack.c.h.s8.bf16 %v757
        %v1127 = vunpack.c.h.s8.bf16 %v758
        %v1128 = vunpack.c.h.s8.bf16 %v759
        %v1129 = vunpack.c.l.s8.bf16 %v760
        %v1130 = vunpack.c.l.s8.bf16 %v761
        %v1131 = vunpack.c.l.s8.bf16 %v762
        %v1132 = vunpack.c.l.s8.bf16 %v763
        %v1133 = vunpack.c.l.s8.bf16 %v764
        %v1134 = vunpack.c.l.s8.bf16 %v765
        %v1135 = vunpack.c.l.s8.bf16 %v766
        %v1136 = vunpack.c.l.s8.bf16 %v767
        %v1137 = vunpack.c.l.s8.bf16 %v768
        %v1138 = vunpack.c.h.s8.bf16 %v760
        %v1139 = vunpack.c.h.s8.bf16 %v761
        %v1140 = vunpack.c.h.s8.bf16 %v762
        %v1141 = vunpack.c.h.s8.bf16 %v763
        %v1142 = vunpack.c.h.s8.bf16 %v764
        %v1143 = vunpack.c.h.s8.bf16 %v765
        %v1144 = vunpack.c.h.s8.bf16 %v766
        %v1145 = vunpack.c.h.s8.bf16 %v767
        %v1146 = vunpack.c.h.s8.bf16 %v768
        %v1147 = vunpack.c.l.s8.bf16 %v769
        %v1148 = vunpack.c.l.s8.bf16 %v770
        %v1149 = vunpack.c.l.s8.bf16 %v771
        %v1150 = vunpack.c.l.s8.bf16 %v772
        %v1151 = vunpack.c.l.s8.bf16 %v773
        %v1152 = vunpack.c.l.s8.bf16 %v774
        %v1153 = vunpack.c.l.s8.bf16 %v775
        %v1154 = vunpack.c.l.s8.bf16 %v776
        %v1155 = vunpack.c.l.s8.bf16 %v777
        %v1156 = vunpack.c.h.s8.bf16 %v769
        %v1157 = vunpack.c.h.s8.bf16 %v770
        %v1158 = vunpack.c.h.s8.bf16 %v771
        %v1159 = vunpack.c.h.s8.bf16 %v772
        %v1160 = vunpack.c.h.s8.bf16 %v773
        %v1161 = vunpack.c.h.s8.bf16 %v774
        %v1162 = vunpack.c.h.s8.bf16 %v775
        %v1163 = vunpack.c.h.s8.bf16 %v776
        %v1164 = vunpack.c.h.s8.bf16 %v777
        %v1165 = vunpack.c.l.s8.bf16 %v778
        %v1166 = vunpack.c.l.s8.bf16 %v779
        %v1167 = vunpack.c.l.s8.bf16 %v780
        %v1168 = vunpack.c.l.s8.bf16 %v781
        %v1169 = vunpack.c.l.s8.bf16 %v782
        %v1170 = vunpack.c.l.s8.bf16 %v783
        %v1171 = vunpack.c.l.s8.bf16 %v784
        %v1172 = vunpack.c.l.s8.bf16 %v785
        %v1173 = vunpack.c.l.s8.bf16 %v786
        %v1174 = vunpack.c.h.s8.bf16 %v778
        %v1175 = vunpack.c.h.s8.bf16 %v779
        %v1176 = vunpack.c.h.s8.bf16 %v780
        %v1177 = vunpack.c.h.s8.bf16 %v781
        %v1178 = vunpack.c.h.s8.bf16 %v782
        %v1179 = vunpack.c.h.s8.bf16 %v783
        %v1180 = vunpack.c.h.s8.bf16 %v784
        %v1181 = vunpack.c.h.s8.bf16 %v785
        %v1182 = vunpack.c.h.s8.bf16 %v786
        %v1183 = vunpack.c.l.s8.bf16 %v787
        %v1184 = vunpack.c.l.s8.bf16 %v788
        %v1185 = vunpack.c.l.s8.bf16 %v789
        %v1186 = vunpack.c.l.s8.bf16 %v790
        %v1187 = vunpack.c.l.s8.bf16 %v791
        %v1188 = vunpack.c.l.s8.bf16 %v792
        %v1189 = vunpack.c.l.s8.bf16 %v793
        %v1190 = vunpack.c.l.s8.bf16 %v794
        %v1191 = vunpack.c.l.s8.bf16 %v795
        %v1192 = vunpack.c.h.s8.bf16 %v787
        %v1193 = vunpack.c.h.s8.bf16 %v788
        %v1194 = vunpack.c.h.s8.bf16 %v789
        %v1195 = vunpack.c.h.s8.bf16 %v790
        %v1196 = vunpack.c.h.s8.bf16 %v791
        %v1197 = vunpack.c.h.s8.bf16 %v792
        %v1198 = vunpack.c.h.s8.bf16 %v793
        %v1199 = vunpack.c.h.s8.bf16 %v794
        %v1200 = vunpack.c.h.s8.bf16 %v795
        %v1201 = vunpack.c.l.s8.bf16 %v796
        %v1202 = vunpack.c.l.s8.bf16 %v797
        %v1203 = vunpack.c.l.s8.bf16 %v798
        %v1204 = vunpack.c.l.s8.bf16 %v799
        %v1205 = vunpack.c.l.s8.bf16 %v800
        %v1206 = vunpack.c.l.s8.bf16 %v801
        %v1207 = vunpack.c.l.s8.bf16 %v802
        %v1208 = vunpack.c.l.s8.bf16 %v803
        %v1209 = vunpack.c.l.s8.bf16 %v804
        %v1210 = vunpack.c.h.s8.bf16 %v796
        %v1211 = vunpack.c.h.s8.bf16 %v797
        %v1212 = vunpack.c.h.s8.bf16 %v798
        %v1213 = vunpack.c.h.s8.bf16 %v799
        %v1214 = vunpack.c.h.s8.bf16 %v800
        %v1215 = vunpack.c.h.s8.bf16 %v801
        %v1216 = vunpack.c.h.s8.bf16 %v802
        %v1217 = vunpack.c.h.s8.bf16 %v803
        %v1218 = vunpack.c.h.s8.bf16 %v804
        %v1219 = vunpack.c.l.s8.bf16 %v805
        %v1220 = vunpack.c.l.s8.bf16 %v806
        %v1221 = vunpack.c.l.s8.bf16 %v807
        %v1222 = vunpack.c.l.s8.bf16 %v808
        %v1223 = vunpack.c.l.s8.bf16 %v809
        %v1224 = vunpack.c.l.s8.bf16 %v810
        %v1225 = vunpack.c.l.s8.bf16 %v811
        %v1226 = vunpack.c.l.s8.bf16 %v812
        %v1227 = vunpack.c.l.s8.bf16 %v813
        %v1228 = vunpack.c.h.s8.bf16 %v805
        %v1229 = vunpack.c.h.s8.bf16 %v806
        %v1230 = vunpack.c.h.s8.bf16 %v807
        %v1231 = vunpack.c.h.s8.bf16 %v808
        %v1232 = vunpack.c.h.s8.bf16 %v809
        %v1233 = vunpack.c.h.s8.bf16 %v810
        %v1234 = vunpack.c.h.s8.bf16 %v811
        %v1235 = vunpack.c.h.s8.bf16 %v812
        %v1236 = vunpack.c.h.s8.bf16 %v813
        %v1237 = vunpack.c.l.s8.bf16 %v814
        %v1238 = vunpack.c.l.s8.bf16 %v815
        %v1239 = vunpack.c.l.s8.bf16 %v816
        %v1240 = vunpack.c.l.s8.bf16 %v817
        %v1241 = vunpack.c.l.s8.bf16 %v818
        %v1242 = vunpack.c.l.s8.bf16 %v819
        %v1243 = vunpack.c.l.s8.bf16 %v820
        %v1244 = vunpack.c.l.s8.bf16 %v821
        %v1245 = vunpack.c.l.s8.bf16 %v822
        %v1246 = vunpack.c.h.s8.bf16 %v814
        %v1247 = vunpack.c.h.s8.bf16 %v815
        %v1248 = vunpack.c.h.s8.bf16 %v816
        %v1249 = vunpack.c.h.s8.bf16 %v817
        %v1250 = vunpack.c.h.s8.bf16 %v818
        %v1251 = vunpack.c.h.s8.bf16 %v819
        %v1252 = vunpack.c.h.s8.bf16 %v820
        %v1253 = vunpack.c.h.s8.bf16 %v821
        %v1254 = vunpack.c.h.s8.bf16 %v822
        %v1256 = vcombine.high %v606, %v606
        %v1258 = vunpack.c.l.s4 1966171168
        %v1259 = vunpack.c.0.s8 %v1258
        %v1260 = vlaneseq
        %v1261 = vshrl.u32 %v1260, 7
        %v1262 = vsub.s32 %v1259, %v1261
        %v1263 = vrot.slane %v606, %v1262
        %v1265 = vunpack.c.l.s4 1966171168
        %v1266 = vunpack.c.0.s8 %v1265
        %v1267 = vlaneseq
        %v1268 = vshrl.u32 %v1267, 7
        %v1269 = vsub.s32 %v1266, %v1268
        %v1270 = vrot.slane %v1256, %v1269
        %v1271 = vcombine.high %v1263, %v1263
        %v1272 = vcombine.high %v1270, %v1270
        %v1274 = vunpack.c.l.s4 1966171168
        %v1275 = vunpack.c.0.s8 %v1274
        %v1276 = vlaneseq
        %v1277 = vshrl.u32 %v1276, 7
        %v1278 = vsub.s32 %v1275, %v1277
        %v1279 = vrot.slane %v1263, %v1278
        %v1281 = vunpack.c.l.s4 1966171168
        %v1282 = vunpack.c.0.s8 %v1281
        %v1283 = vlaneseq
        %v1284 = vshrl.u32 %v1283, 7
        %v1285 = vsub.s32 %v1282, %v1284
        %v1286 = vrot.slane %v1270, %v1285
        %v1288 = vunpack.c.l.s4 1966171168
        %v1289 = vunpack.c.0.s8 %v1288
        %v1290 = vlaneseq
        %v1291 = vshrl.u32 %v1290, 7
        %v1292 = vsub.s32 %v1289, %v1291
        %v1293 = vrot.slane %v1271, %v1292
        %v1295 = vunpack.c.l.s4 1966171168
        %v1296 = vunpack.c.0.s8 %v1295
        %v1297 = vlaneseq
        %v1298 = vshrl.u32 %v1297, 7
        %v1299 = vsub.s32 %v1296, %v1298
        %v1300 = vrot.slane %v1272, %v1299
        %v1301 = vcombine.high %v1279, %v1279
        %v1302 = vcombine.high %v1293, %v1293
        %1309 = vmatprep.subr.bf16.mxu0 %v824
        %1310 = vmatpush1.bf16.msra.mxu0 %v823
        %1311 = vmatprep.subr.bf16.mxu0 %v833
        %1312 = vmatpush1.bf16.msra.mxu0 %v832
        %1313 = vmatprep.subr.bf16.mxu0 %v842
        %1314 = vmatpush1.bf16.msra.mxu0 %v841
        %1315 = vmatprep.subr.bf16.mxu0 %v851
        %1316 = vmatpush1.bf16.msra.mxu0 %v850
        %1317 = vmatprep.subr.bf16.mxu0 %v860
        %1318 = vmatpush1.bf16.msra.mxu0 %v859
        %1319 = vmatprep.subr.bf16.mxu0 %v869
        %1320 = vmatpush1.bf16.msra.mxu0 %v868
        %1321 = vmatprep.subr.bf16.mxu0 %v878
        %1322 = vmatpush1.bf16.msra.mxu0 %v877
        %1323 = vmatprep.subr.bf16.mxu0 %v887
        %1324 = vmatpush1.bf16.msra.mxu0 %v886
        %1325 = vmatprep.subr.bf16.mxu0 %v896
        %1326 = vmatpush1.bf16.msra.mxu0 %v895
        %1327 = vmatprep.subr.bf16.mxu0 %v905
        %1328 = vmatpush1.bf16.msra.mxu0 %v904
        %1329 = vmatprep.subr.bf16.mxu0 %v914
        %1330 = vmatpush1.bf16.msra.mxu0 %v913
        %1331 = vmatprep.subr.bf16.mxu0 %v923
        %1332 = vmatpush1.bf16.msra.mxu0 %v922
        %1333 = vmatprep.subr.bf16.mxu0 %v932
        %1334 = vmatpush1.bf16.msra.mxu0 %v931
        %1335 = vmatprep.subr.bf16.mxu0 %v941
        %1336 = vmatpush1.bf16.msra.mxu0 %v940
        %1337 = vmatprep.subr.bf16.mxu0 %v950
        %1338 = vmatpush1.bf16.msra.mxu0 %v949
        %1339 = vmatprep.subr.bf16.mxu0 %v959
        %1340 = vmatpush1.bf16.msra.mxu0 %v958
        %1341 = vmatprep.mubr.bf16.mxu0 %v1293
        %1342 = vmatmul.mubr.bf16.gmra.mrb[0].mxu0 %v1279
        %v1343 = vpop.f32.mrb[0].mxu0
        %v1344 = vadd.f32 0.0, %v1343
        %v1345 = vpop.f32.mrb[0].mxu0
        %v1346 = vadd.f32 0.0, %v1345
        %v1347 = vpop.f32.mrb[0].mxu0
        %v1348 = vpop.f32.mrb[0].mxu0
        %1349 = vdwg.mxu0
        %1350 = vmatprep.subr.bf16.mxu0 %v968
        %1351 = vmatpush1.bf16.msra.mxu0 %v967
        %1352 = vmatprep.subr.bf16.mxu0 %v977
        %1353 = vmatpush1.bf16.msra.mxu0 %v976
        %1354 = vmatprep.subr.bf16.mxu0 %v986
        %1355 = vmatpush1.bf16.msra.mxu0 %v985
        %1356 = vmatprep.subr.bf16.mxu0 %v995
        %1357 = vmatpush1.bf16.msra.mxu0 %v994
        %1358 = vmatprep.subr.bf16.mxu0 %v1004
        %1359 = vmatpush1.bf16.msra.mxu0 %v1003
        %1360 = vmatprep.subr.bf16.mxu0 %v1013
        %1361 = vmatpush1.bf16.msra.mxu0 %v1012
        %1362 = vmatprep.subr.bf16.mxu0 %v1022
        %1363 = vmatpush1.bf16.msra.mxu0 %v1021
        %1364 = vmatprep.subr.bf16.mxu0 %v1031
        %1365 = vmatpush1.bf16.msra.mxu0 %v1030
        %1366 = vmatprep.subr.bf16.mxu0 %v1040
        %1367 = vmatpush1.bf16.msra.mxu0 %v1039
        %1368 = vmatprep.subr.bf16.mxu0 %v1049
        %1369 = vmatpush1.bf16.msra.mxu0 %v1048
        %1370 = vmatprep.subr.bf16.mxu0 %v1058
        %1371 = vmatpush1.bf16.msra.mxu0 %v1057
        %1372 = vmatprep.subr.bf16.mxu0 %v1067
        %1373 = vmatpush1.bf16.msra.mxu0 %v1066
        %1374 = vmatprep.subr.bf16.mxu0 %v1076
        %1375 = vmatpush1.bf16.msra.mxu0 %v1075
        %1376 = vmatprep.subr.bf16.mxu0 %v1085
        %1377 = vmatpush1.bf16.msra.mxu0 %v1084
        %1378 = vmatprep.subr.bf16.mxu0 %v1094
        %1379 = vmatpush1.bf16.msra.mxu0 %v1093
        %1380 = vmatprep.subr.bf16.mxu0 %v1103
        %1381 = vmatpush1.bf16.msra.mxu0 %v1102
        %1382 = vmatprep.mubr.bf16.mxu0 %v1302
        %1383 = vmatmul.mubr.bf16.gmra.mrb[0].mxu0 %v1301
        %v1384 = vpop.f32.mrb[0].mxu0
        %v1385 = vadd.f32 %v1344, %v1384
        %v1386 = vpop.f32.mrb[0].mxu0
        %v1387 = vadd.f32 %v1346, %v1386
        %v1388 = vpop.f32.mrb[0].mxu0
        %v1389 = vpop.f32.mrb[0].mxu0
        %1390 = vdwg.mxu0
        %1391 = vmatprep.subr.bf16.mxu0 %v1112
        %1392 = vmatpush1.bf16.msra.mxu0 %v1111
        %1393 = vmatprep.subr.bf16.mxu0 %v1121
        %1394 = vmatpush1.bf16.msra.mxu0 %v1120
        %1395 = vmatprep.subr.bf16.mxu0 %v1130
        %1396 = vmatpush1.bf16.msra.mxu0 %v1129
        %1397 = vmatprep.subr.bf16.mxu0 %v1139
        %1398 = vmatpush1.bf16.msra.mxu0 %v1138
        %1399 = vmatprep.subr.bf16.mxu0 %v1148
        %1400 = vmatpush1.bf16.msra.mxu0 %v1147
        %1401 = vmatprep.subr.bf16.mxu0 %v1157
        %1402 = vmatpush1.bf16.msra.mxu0 %v1156
        %1403 = vmatprep.subr.bf16.mxu0 %v1166
        %1404 = vmatpush1.bf16.msra.mxu0 %v1165
        %1405 = vmatprep.subr.bf16.mxu0 %v1175
        %1406 = vmatpush1.bf16.msra.mxu0 %v1174
        %1407 = vmatprep.subr.bf16.mxu0 %v1184
        %1408 = vmatpush1.bf16.msra.mxu0 %v1183
        %1409 = vmatprep.subr.bf16.mxu0 %v1193
        %1410 = vmatpush1.bf16.msra.mxu0 %v1192
        %1411 = vmatprep.subr.bf16.mxu0 %v1202
        %1412 = vmatpush1.bf16.msra.mxu0 %v1201
        %1413 = vmatprep.subr.bf16.mxu0 %v1211
        %1414 = vmatpush1.bf16.msra.mxu0 %v1210
        %1415 = vmatprep.subr.bf16.mxu0 %v1220
        %1416 = vmatpush1.bf16.msra.mxu0 %v1219
        %1417 = vmatprep.subr.bf16.mxu0 %v1229
        %1418 = vmatpush1.bf16.msra.mxu0 %v1228
        %1419 = vmatprep.subr.bf16.mxu0 %v1238
        %1420 = vmatpush1.bf16.msra.mxu0 %v1237
        %1421 = vmatprep.subr.bf16.mxu0 %v1247
        %1422 = vmatpush1.bf16.msra.mxu0 %v1246
        %1423 = vmatprep.mubr.bf16.mxu0 %v1300
        %1424 = vmatmul.mubr.bf16.gmra.mrb[0].mxu0 %v1286
        %v1425 = vpop.f32.mrb[0].mxu0
        %v1426 = vadd.f32 %v1385, %v1425
        %v1427 = vpop.f32.mrb[0].mxu0
        %v1428 = vadd.f32 %v1387, %v1427
        %v1429 = vpop.f32.mrb[0].mxu0
        %v1430 = vpop.f32.mrb[0].mxu0
        %1431 = vdwg.mxu0
        %1432 = vmatprep.subr.bf16.mxu0 %v826
        %1433 = vmatpush1.bf16.msra.mxu0 %v825
        %1434 = vmatprep.subr.bf16.mxu0 %v835
        %1435 = vmatpush1.bf16.msra.mxu0 %v834
        %1436 = vmatprep.subr.bf16.mxu0 %v844
        %1437 = vmatpush1.bf16.msra.mxu0 %v843
        %1438 = vmatprep.subr.bf16.mxu0 %v853
        %1439 = vmatpush1.bf16.msra.mxu0 %v852
        %1440 = vmatprep.subr.bf16.mxu0 %v862
        %1441 = vmatpush1.bf16.msra.mxu0 %v861
        %1442 = vmatprep.subr.bf16.mxu0 %v871
        %1443 = vmatpush1.bf16.msra.mxu0 %v870
        %1444 = vmatprep.subr.bf16.mxu0 %v880
        %1445 = vmatpush1.bf16.msra.mxu0 %v879
        %1446 = vmatprep.subr.bf16.mxu0 %v889
        %1447 = vmatpush1.bf16.msra.mxu0 %v888
        %1448 = vmatprep.subr.bf16.mxu0 %v898
        %1449 = vmatpush1.bf16.msra.mxu0 %v897
        %1450 = vmatprep.subr.bf16.mxu0 %v907
        %1451 = vmatpush1.bf16.msra.mxu0 %v906
        %1452 = vmatprep.subr.bf16.mxu0 %v916
        %1453 = vmatpush1.bf16.msra.mxu0 %v915
        %1454 = vmatprep.subr.bf16.mxu0 %v925
        %1455 = vmatpush1.bf16.msra.mxu0 %v924
        %1456 = vmatprep.subr.bf16.mxu0 %v934
        %1457 = vmatpush1.bf16.msra.mxu0 %v933
        %1458 = vmatprep.subr.bf16.mxu0 %v943
        %1459 = vmatpush1.bf16.msra.mxu0 %v942
        %1460 = vmatprep.subr.bf16.mxu0 %v952
        %1461 = vmatpush1.bf16.msra.mxu0 %v951
        %1462 = vmatprep.subr.bf16.mxu0 %v961
        %1463 = vmatpush1.bf16.msra.mxu0 %v960
        %1464 = vmatprep.mubr.bf16.mxu0 %v1293
        %1465 = vmatmul.mubr.bf16.gmra.mrb[0].mxu0 %v1279
        %v1466 = vpop.f32.mrb[0].mxu0
        %v1467 = vadd.f32 0.0, %v1466
        %v1468 = vpop.f32.mrb[0].mxu0
        %v1469 = vadd.f32 0.0, %v1468
        %v1470 = vpop.f32.mrb[0].mxu0
        %v1471 = vpop.f32.mrb[0].mxu0
        %1472 = vdwg.mxu0
        %1473 = vmatprep.subr.bf16.mxu0 %v970
        %1474 = vmatpush1.bf16.msra.mxu0 %v969
        %1475 = vmatprep.subr.bf16.mxu0 %v979
        %1476 = vmatpush1.bf16.msra.mxu0 %v978
        %1477 = vmatprep.subr.bf16.mxu0 %v988
        %1478 = vmatpush1.bf16.msra.mxu0 %v987
        %1479 = vmatprep.subr.bf16.mxu0 %v997
        %1480 = vmatpush1.bf16.msra.mxu0 %v996
        %1481 = vmatprep.subr.bf16.mxu0 %v1006
        %1482 = vmatpush1.bf16.msra.mxu0 %v1005
        %1483 = vmatprep.subr.bf16.mxu0 %v1015
        %1484 = vmatpush1.bf16.msra.mxu0 %v1014
        %1485 = vmatprep.subr.bf16.mxu0 %v1024
        %1486 = vmatpush1.bf16.msra.mxu0 %v1023
        %1487 = vmatprep.subr.bf16.mxu0 %v1033
        %1488 = vmatpush1.bf16.msra.mxu0 %v1032
        %1489 = vmatprep.subr.bf16.mxu0 %v1042
        %1490 = vmatpush1.bf16.msra.mxu0 %v1041
        %1491 = vmatprep.subr.bf16.mxu0 %v1051
        %1492 = vmatpush1.bf16.msra.mxu0 %v1050
        %1493 = vmatprep.subr.bf16.mxu0 %v1060
        %1494 = vmatpush1.bf16.msra.mxu0 %v1059
        %1495 = vmatprep.subr.bf16.mxu0 %v1069
        %1496 = vmatpush1.bf16.msra.mxu0 %v1068
        %1497 = vmatprep.subr.bf16.mxu0 %v1078
        %1498 = vmatpush1.bf16.msra.mxu0 %v1077
        %1499 = vmatprep.subr.bf16.mxu0 %v1087
        %1500 = vmatpush1.bf16.msra.mxu0 %v1086
        %1501 = vmatprep.subr.bf16.mxu0 %v1096
        %1502 = vmatpush1.bf16.msra.mxu0 %v1095
        %1503 = vmatprep.subr.bf16.mxu0 %v1105
        %1504 = vmatpush1.bf16.msra.mxu0 %v1104
        %1505 = vmatprep.mubr.bf16.mxu0 %v1302
        %1506 = vmatmul.mubr.bf16.gmra.mrb[0].mxu0 %v1301
        %v1507 = vpop.f32.mrb[0].mxu0
        %v1508 = vadd.f32 %v1467, %v1507
        %v1509 = vpop.f32.mrb[0].mxu0
        %v1510 = vadd.f32 %v1469, %v1509
        %v1511 = vpop.f32.mrb[0].mxu0
        %v1512 = vpop.f32.mrb[0].mxu0
        %1513 = vdwg.mxu0
        %1514 = vmatprep.subr.bf16.mxu0 %v1114
        %1515 = vmatpush1.bf16.msra.mxu0 %v1113
        %1516 = vmatprep.subr.bf16.mxu0 %v1123
        %1517 = vmatpush1.bf16.msra.mxu0 %v1122
        %1518 = vmatprep.subr.bf16.mxu0 %v1132
        %1519 = vmatpush1.bf16.msra.mxu0 %v1131
        %1520 = vmatprep.subr.bf16.mxu0 %v1141
        %1521 = vmatpush1.bf16.msra.mxu0 %v1140
        %1522 = vmatprep.subr.bf16.mxu0 %v1150
        %1523 = vmatpush1.bf16.msra.mxu0 %v1149
        %1524 = vmatprep.subr.bf16.mxu0 %v1159
        %1525 = vmatpush1.bf16.msra.mxu0 %v1158
        %1526 = vmatprep.subr.bf16.mxu0 %v1168
        %1527 = vmatpush1.bf16.msra.mxu0 %v1167
        %1528 = vmatprep.subr.bf16.mxu0 %v1177
        %1529 = vmatpush1.bf16.msra.mxu0 %v1176
        %1530 = vmatprep.subr.bf16.mxu0 %v1186
        %1531 = vmatpush1.bf16.msra.mxu0 %v1185
        %1532 = vmatprep.subr.bf16.mxu0 %v1195
        %1533 = vmatpush1.bf16.msra.mxu0 %v1194
        %1534 = vmatprep.subr.bf16.mxu0 %v1204
        %1535 = vmatpush1.bf16.msra.mxu0 %v1203
        %1536 = vmatprep.subr.bf16.mxu0 %v1213
        %1537 = vmatpush1.bf16.msra.mxu0 %v1212
        %1538 = vmatprep.subr.bf16.mxu0 %v1222
        %1539 = vmatpush1.bf16.msra.mxu0 %v1221
        %1540 = vmatprep.subr.bf16.mxu0 %v1231
        %1541 = vmatpush1.bf16.msra.mxu0 %v1230
        %1542 = vmatprep.subr.bf16.mxu0 %v1240
        %1543 = vmatpush1.bf16.msra.mxu0 %v1239
        %1544 = vmatprep.subr.bf16.mxu0 %v1249
        %1545 = vmatpush1.bf16.msra.mxu0 %v1248
        %1546 = vmatprep.mubr.bf16.mxu0 %v1300
        %1547 = vmatmul.mubr.bf16.gmra.mrb[0].mxu0 %v1286
        %v1548 = vpop.f32.mrb[0].mxu0
        %v1549 = vadd.f32 %v1508, %v1548
        %v1550 = vpop.f32.mrb[0].mxu0
        %v1551 = vadd.f32 %v1510, %v1550
        %v1552 = vpop.f32.mrb[0].mxu0
        %v1553 = vpop.f32.mrb[0].mxu0
        %1554 = vdwg.mxu0
        %1555 = vmatprep.subr.bf16.mxu0 %v828
        %1556 = vmatpush1.bf16.msra.mxu0 %v827
        %1557 = vmatprep.subr.bf16.mxu0 %v837
        %1558 = vmatpush1.bf16.msra.mxu0 %v836
        %1559 = vmatprep.subr.bf16.mxu0 %v846
        %1560 = vmatpush1.bf16.msra.mxu0 %v845
        %1561 = vmatprep.subr.bf16.mxu0 %v855
        %1562 = vmatpush1.bf16.msra.mxu0 %v854
        %1563 = vmatprep.subr.bf16.mxu0 %v864
        %1564 = vmatpush1.bf16.msra.mxu0 %v863
        %1565 = vmatprep.subr.bf16.mxu0 %v873
        %1566 = vmatpush1.bf16.msra.mxu0 %v872
        %1567 = vmatprep.subr.bf16.mxu0 %v882
        %1568 = vmatpush1.bf16.msra.mxu0 %v881
        %1569 = vmatprep.subr.bf16.mxu0 %v891
        %1570 = vmatpush1.bf16.msra.mxu0 %v890
        %1571 = vmatprep.subr.bf16.mxu0 %v900
        %1572 = vmatpush1.bf16.msra.mxu0 %v899
        %1573 = vmatprep.subr.bf16.mxu0 %v909
        %1574 = vmatpush1.bf16.msra.mxu0 %v908
        %1575 = vmatprep.subr.bf16.mxu0 %v918
        %1576 = vmatpush1.bf16.msra.mxu0 %v917
        %1577 = vmatprep.subr.bf16.mxu0 %v927
        %1578 = vmatpush1.bf16.msra.mxu0 %v926
        %1579 = vmatprep.subr.bf16.mxu0 %v936
        %1580 = vmatpush1.bf16.msra.mxu0 %v935
        %1581 = vmatprep.subr.bf16.mxu0 %v945
        %1582 = vmatpush1.bf16.msra.mxu0 %v944
        %1583 = vmatprep.subr.bf16.mxu0 %v954
        %1584 = vmatpush1.bf16.msra.mxu0 %v953
        %1585 = vmatprep.subr.bf16.mxu0 %v963
        %1586 = vmatpush1.bf16.msra.mxu0 %v962
        %1587 = vmatprep.mubr.bf16.mxu0 %v1293
        %1588 = vmatmul.mubr.bf16.gmra.mrb[0].mxu0 %v1279
        %v1589 = vpop.f32.mrb[0].mxu0
        %v1590 = vadd.f32 0.0, %v1589
        %v1591 = vpop.f32.mrb[0].mxu0
        %v1592 = vadd.f32 0.0, %v1591
        %v1593 = vpop.f32.mrb[0].mxu0
        %v1594 = vpop.f32.mrb[0].mxu0
        %1595 = vdwg.mxu0
        %1596 = vmatprep.subr.bf16.mxu0 %v972
        %1597 = vmatpush1.bf16.msra.mxu0 %v971
        %1598 = vmatprep.subr.bf16.mxu0 %v981
        %1599 = vmatpush1.bf16.msra.mxu0 %v980
        %1600 = vmatprep.subr.bf16.mxu0 %v990
        %1601 = vmatpush1.bf16.msra.mxu0 %v989
        %1602 = vmatprep.subr.bf16.mxu0 %v999
        %1603 = vmatpush1.bf16.msra.mxu0 %v998
        %1604 = vmatprep.subr.bf16.mxu0 %v1008
        %1605 = vmatpush1.bf16.msra.mxu0 %v1007
        %1606 = vmatprep.subr.bf16.mxu0 %v1017
        %1607 = vmatpush1.bf16.msra.mxu0 %v1016
        %1608 = vmatprep.subr.bf16.mxu0 %v1026
        %1609 = vmatpush1.bf16.msra.mxu0 %v1025
        %1610 = vmatprep.subr.bf16.mxu0 %v1035
        %1611 = vmatpush1.bf16.msra.mxu0 %v1034
        %1612 = vmatprep.subr.bf16.mxu0 %v1044
        %1613 = vmatpush1.bf16.msra.mxu0 %v1043
        %1614 = vmatprep.subr.bf16.mxu0 %v1053
        %1615 = vmatpush1.bf16.msra.mxu0 %v1052
        %1616 = vmatprep.subr.bf16.mxu0 %v1062
        %1617 = vmatpush1.bf16.msra.mxu0 %v1061
        %1618 = vmatprep.subr.bf16.mxu0 %v1071
        %1619 = vmatpush1.bf16.msra.mxu0 %v1070
        %1620 = vmatprep.subr.bf16.mxu0 %v1080
        %1621 = vmatpush1.bf16.msra.mxu0 %v1079
        %1622 = vmatprep.subr.bf16.mxu0 %v1089
        %1623 = vmatpush1.bf16.msra.mxu0 %v1088
        %1624 = vmatprep.subr.bf16.mxu0 %v1098
        %1625 = vmatpush1.bf16.msra.mxu0 %v1097
        %1626 = vmatprep.subr.bf16.mxu0 %v1107
        %1627 = vmatpush1.bf16.msra.mxu0 %v1106
        %1628 = vmatprep.mubr.bf16.mxu0 %v1302
        %1629 = vmatmul.mubr.bf16.gmra.mrb[0].mxu0 %v1301
        %v1630 = vpop.f32.mrb[0].mxu0
        %v1631 = vadd.f32 %v1590, %v1630
        %v1632 = vpop.f32.mrb[0].mxu0
        %v1633 = vadd.f32 %v1592, %v1632
        %v1634 = vpop.f32.mrb[0].mxu0
        %v1635 = vpop.f32.mrb[0].mxu0
        %1636 = vdwg.mxu0
        %1637 = vmatprep.subr.bf16.mxu0 %v1116
        %1638 = vmatpush1.bf16.msra.mxu0 %v1115
        %1639 = vmatprep.subr.bf16.mxu0 %v1125
        %1640 = vmatpush1.bf16.msra.mxu0 %v1124
        %1641 = vmatprep.subr.bf16.mxu0 %v1134
        %1642 = vmatpush1.bf16.msra.mxu0 %v1133
        %1643 = vmatprep.subr.bf16.mxu0 %v1143
        %1644 = vmatpush1.bf16.msra.mxu0 %v1142
        %1645 = vmatprep.subr.bf16.mxu0 %v1152
        %1646 = vmatpush1.bf16.msra.mxu0 %v1151
        %1647 = vmatprep.subr.bf16.mxu0 %v1161
        %1648 = vmatpush1.bf16.msra.mxu0 %v1160
        %1649 = vmatprep.subr.bf16.mxu0 %v1170
        %1650 = vmatpush1.bf16.msra.mxu0 %v1169
        %1651 = vmatprep.subr.bf16.mxu0 %v1179
        %1652 = vmatpush1.bf16.msra.mxu0 %v1178
        %1653 = vmatprep.subr.bf16.mxu0 %v1188
        %1654 = vmatpush1.bf16.msra.mxu0 %v1187
        %1655 = vmatprep.subr.bf16.mxu0 %v1197
        %1656 = vmatpush1.bf16.msra.mxu0 %v1196
        %1657 = vmatprep.subr.bf16.mxu0 %v1206
        %1658 = vmatpush1.bf16.msra.mxu0 %v1205
        %1659 = vmatprep.subr.bf16.mxu0 %v1215
        %1660 = vmatpush1.bf16.msra.mxu0 %v1214
        %1661 = vmatprep.subr.bf16.mxu0 %v1224
        %1662 = vmatpush1.bf16.msra.mxu0 %v1223
        %1663 = vmatprep.subr.bf16.mxu0 %v1233
        %1664 = vmatpush1.bf16.msra.mxu0 %v1232
        %1665 = vmatprep.subr.bf16.mxu0 %v1242
        %1666 = vmatpush1.bf16.msra.mxu0 %v1241
        %1667 = vmatprep.subr.bf16.mxu0 %v1251
        %1668 = vmatpush1.bf16.msra.mxu0 %v1250
        %1669 = vmatprep.mubr.bf16.mxu0 %v1300
        %1670 = vmatmul.mubr.bf16.gmra.mrb[0].mxu0 %v1286
        %v1671 = vpop.f32.mrb[0].mxu0
        %v1672 = vadd.f32 %v1631, %v1671
        %v1673 = vpop.f32.mrb[0].mxu0
        %v1674 = vadd.f32 %v1633, %v1673
        %v1675 = vpop.f32.mrb[0].mxu0
        %v1676 = vpop.f32.mrb[0].mxu0
        %1677 = vdwg.mxu0
        %1678 = vmatprep.subr.bf16.mxu0 %v830
        %1679 = vmatpush1.bf16.msra.mxu0 %v829
        %1680 = vmatprep.subr.bf16.mxu0 %v839
        %1681 = vmatpush1.bf16.msra.mxu0 %v838
        %1682 = vmatprep.subr.bf16.mxu0 %v848
        %1683 = vmatpush1.bf16.msra.mxu0 %v847
        %1684 = vmatprep.subr.bf16.mxu0 %v857
        %1685 = vmatpush1.bf16.msra.mxu0 %v856
        %1686 = vmatprep.subr.bf16.mxu0 %v866
        %1687 = vmatpush1.bf16.msra.mxu0 %v865
        %1688 = vmatprep.subr.bf16.mxu0 %v875
        %1689 = vmatpush1.bf16.msra.mxu0 %v874
        %1690 = vmatprep.subr.bf16.mxu0 %v884
        %1691 = vmatpush1.bf16.msra.mxu0 %v883
        %1692 = vmatprep.subr.bf16.mxu0 %v893
        %1693 = vmatpush1.bf16.msra.mxu0 %v892
        %1694 = vmatprep.subr.bf16.mxu0 %v902
        %1695 = vmatpush1.bf16.msra.mxu0 %v901
        %1696 = vmatprep.subr.bf16.mxu0 %v911
        %1697 = vmatpush1.bf16.msra.mxu0 %v910
        %1698 = vmatprep.subr.bf16.mxu0 %v920
        %1699 = vmatpush1.bf16.msra.mxu0 %v919
        %1700 = vmatprep.subr.bf16.mxu0 %v929
        %1701 = vmatpush1.bf16.msra.mxu0 %v928
        %1702 = vmatprep.subr.bf16.mxu0 %v938
        %1703 = vmatpush1.bf16.msra.mxu0 %v937
        %1704 = vmatprep.subr.bf16.mxu0 %v947
        %1705 = vmatpush1.bf16.msra.mxu0 %v946
        %1706 = vmatprep.subr.bf16.mxu0 %v956
        %1707 = vmatpush1.bf16.msra.mxu0 %v955
        %1708 = vmatprep.subr.bf16.mxu0 %v965
        %1709 = vmatpush1.bf16.msra.mxu0 %v964
        %1710 = vmatprep.mubr.bf16.mxu0 %v1293
        %1711 = vmatmul.mubr.bf16.gmra.mrb[0].mxu0 %v1279
        %v1712 = vpop.f32.mrb[0].mxu0
        %v1713 = vadd.f32 0.0, %v1712
        %v1714 = vpop.f32.mrb[0].mxu0
        %v1715 = vadd.f32 0.0, %v1714
        %v1716 = vpop.f32.mrb[0].mxu0
        %v1717 = vpop.f32.mrb[0].mxu0
        %1718 = vdwg.mxu0
        %1719 = vmatprep.subr.bf16.mxu0 %v974
        %1720 = vmatpush1.bf16.msra.mxu0 %v973
        %1721 = vmatprep.subr.bf16.mxu0 %v983
        %1722 = vmatpush1.bf16.msra.mxu0 %v982
        %1723 = vmatprep.subr.bf16.mxu0 %v992
        %1724 = vmatpush1.bf16.msra.mxu0 %v991
        %1725 = vmatprep.subr.bf16.mxu0 %v1001
        %1726 = vmatpush1.bf16.msra.mxu0 %v1000
        %1727 = vmatprep.subr.bf16.mxu0 %v1010
        %1728 = vmatpush1.bf16.msra.mxu0 %v1009
        %1729 = vmatprep.subr.bf16.mxu0 %v1019
        %1730 = vmatpush1.bf16.msra.mxu0 %v1018
        %1731 = vmatprep.subr.bf16.mxu0 %v1028
        %1732 = vmatpush1.bf16.msra.mxu0 %v1027
        %1733 = vmatprep.subr.bf16.mxu0 %v1037
        %1734 = vmatpush1.bf16.msra.mxu0 %v1036
        %1735 = vmatprep.subr.bf16.mxu0 %v1046
        %1736 = vmatpush1.bf16.msra.mxu0 %v1045
        %1737 = vmatprep.subr.bf16.mxu0 %v1055
        %1738 = vmatpush1.bf16.msra.mxu0 %v1054
        %1739 = vmatprep.subr.bf16.mxu0 %v1064
        %1740 = vmatpush1.bf16.msra.mxu0 %v1063
        %1741 = vmatprep.subr.bf16.mxu0 %v1073
        %1742 = vmatpush1.bf16.msra.mxu0 %v1072
        %1743 = vmatprep.subr.bf16.mxu0 %v1082
        %1744 = vmatpush1.bf16.msra.mxu0 %v1081
        %1745 = vmatprep.subr.bf16.mxu0 %v1091
        %1746 = vmatpush1.bf16.msra.mxu0 %v1090
        %1747 = vmatprep.subr.bf16.mxu0 %v1100
        %1748 = vmatpush1.bf16.msra.mxu0 %v1099
        %1749 = vmatprep.subr.bf16.mxu0 %v1109
        %1750 = vmatpush1.bf16.msra.mxu0 %v1108
        %1751 = vmatprep.mubr.bf16.mxu0 %v1302
        %1752 = vmatmul.mubr.bf16.gmra.mrb[0].mxu0 %v1301
        %v1753 = vpop.f32.mrb[0].mxu0
        %v1754 = vadd.f32 %v1713, %v1753
        %v1755 = vpop.f32.mrb[0].mxu0
        %v1756 = vadd.f32 %v1715, %v1755
        %v1757 = vpop.f32.mrb[0].mxu0
        %v1758 = vpop.f32.mrb[0].mxu0
        %1759 = vdwg.mxu0
        %1760 = vmatprep.subr.bf16.mxu0 %v1118
        %1761 = vmatpush1.bf16.msra.mxu0 %v1117
        %1762 = vmatprep.subr.bf16.mxu0 %v1127
        %1763 = vmatpush1.bf16.msra.mxu0 %v1126
        %1764 = vmatprep.subr.bf16.mxu0 %v1136
        %1765 = vmatpush1.bf16.msra.mxu0 %v1135
        %1766 = vmatprep.subr.bf16.mxu0 %v1145
        %1767 = vmatpush1.bf16.msra.mxu0 %v1144
        %1768 = vmatprep.subr.bf16.mxu0 %v1154
        %1769 = vmatpush1.bf16.msra.mxu0 %v1153
        %1770 = vmatprep.subr.bf16.mxu0 %v1163
        %1771 = vmatpush1.bf16.msra.mxu0 %v1162
        %1772 = vmatprep.subr.bf16.mxu0 %v1172
        %1773 = vmatpush1.bf16.msra.mxu0 %v1171
        %1774 = vmatprep.subr.bf16.mxu0 %v1181
        %1775 = vmatpush1.bf16.msra.mxu0 %v1180
        %1776 = vmatprep.subr.bf16.mxu0 %v1190
        %1777 = vmatpush1.bf16.msra.mxu0 %v1189
        %1778 = vmatprep.subr.bf16.mxu0 %v1199
        %1779 = vmatpush1.bf16.msra.mxu0 %v1198
        %1780 = vmatprep.subr.bf16.mxu0 %v1208
        %1781 = vmatpush1.bf16.msra.mxu0 %v1207
        %1782 = vmatprep.subr.bf16.mxu0 %v1217
        %1783 = vmatpush1.bf16.msra.mxu0 %v1216
        %1784 = vmatprep.subr.bf16.mxu0 %v1226
        %1785 = vmatpush1.bf16.msra.mxu0 %v1225
        %1786 = vmatprep.subr.bf16.mxu0 %v1235
        %1787 = vmatpush1.bf16.msra.mxu0 %v1234
        %1788 = vmatprep.subr.bf16.mxu0 %v1244
        %1789 = vmatpush1.bf16.msra.mxu0 %v1243
        %1790 = vmatprep.subr.bf16.mxu0 %v1253
        %1791 = vmatpush1.bf16.msra.mxu0 %v1252
        %1792 = vmatprep.mubr.bf16.mxu0 %v1300
        %1793 = vmatmul.mubr.bf16.gmra.mrb[0].mxu0 %v1286
        %v1794 = vpop.f32.mrb[0].mxu0
        %v1795 = vadd.f32 %v1754, %v1794
        %v1796 = vpop.f32.mrb[0].mxu0
        %v1797 = vadd.f32 %v1756, %v1796
        %v1798 = vpop.f32.mrb[0].mxu0
        %v1799 = vpop.f32.mrb[0].mxu0
        %1800 = vdwg.mxu0
        %1801 = vmatprep.subr.bf16.mxu0 0
        %1802 = vmatpush1.bf16.msra.mxu0 %v831
        %1803 = vmatprep.subr.bf16.mxu0 0
        %1804 = vmatpush1.bf16.msra.mxu0 %v840
        %1805 = vmatprep.subr.bf16.mxu0 0
        %1806 = vmatpush1.bf16.msra.mxu0 %v849
        %1807 = vmatprep.subr.bf16.mxu0 0
        %1808 = vmatpush1.bf16.msra.mxu0 %v858
        %1809 = vmatprep.subr.bf16.mxu0 0
        %1810 = vmatpush1.bf16.msra.mxu0 %v867
        %1811 = vmatprep.subr.bf16.mxu0 0
        %1812 = vmatpush1.bf16.msra.mxu0 %v876
        %1813 = vmatprep.subr.bf16.mxu0 0
        %1814 = vmatpush1.bf16.msra.mxu0 %v885
        %1815 = vmatprep.subr.bf16.mxu0 0
        %1816 = vmatpush1.bf16.msra.mxu0 %v894
        %1817 = vmatprep.subr.bf16.mxu0 0
        %1818 = vmatpush1.bf16.msra.mxu0 %v903
        %1819 = vmatprep.subr.bf16.mxu0 0
        %1820 = vmatpush1.bf16.msra.mxu0 %v912
        %1821 = vmatprep.subr.bf16.mxu0 0
        %1822 = vmatpush1.bf16.msra.mxu0 %v921
        %1823 = vmatprep.subr.bf16.mxu0 0
        %1824 = vmatpush1.bf16.msra.mxu0 %v930
        %1825 = vmatprep.subr.bf16.mxu0 0
        %1826 = vmatpush1.bf16.msra.mxu0 %v939
        %1827 = vmatprep.subr.bf16.mxu0 0
        %1828 = vmatpush1.bf16.msra.mxu0 %v948
        %1829 = vmatprep.subr.bf16.mxu0 0
        %1830 = vmatpush1.bf16.msra.mxu0 %v957
        %1831 = vmatprep.subr.bf16.mxu0 0
        %1832 = vmatpush1.bf16.msra.mxu0 %v966
        %1833 = vmatprep.mubr.bf16.mxu0 %v1293
        %1834 = vmatmul.mubr.bf16.gmra.mrb[0].mxu0 %v1279
        %v1835 = vpop.f32.mrb[0].mxu0
        %v1836 = vadd.f32 0.0, %v1835
        %v1837 = vpop.f32.mrb[0].mxu0
        %v1838 = vpop.f32.mrb[0].mxu0
        %v1839 = vpop.f32.mrb[0].mxu0
        %1840 = vdwg.mxu0
        %1841 = vmatprep.subr.bf16.mxu0 0
        %1842 = vmatpush1.bf16.msra.mxu0 %v975
        %1843 = vmatprep.subr.bf16.mxu0 0
        %1844 = vmatpush1.bf16.msra.mxu0 %v984
        %1845 = vmatprep.subr.bf16.mxu0 0
        %1846 = vmatpush1.bf16.msra.mxu0 %v993
        %1847 = vmatprep.subr.bf16.mxu0 0
        %1848 = vmatpush1.bf16.msra.mxu0 %v1002
        %1849 = vmatprep.subr.bf16.mxu0 0
        %1850 = vmatpush1.bf16.msra.mxu0 %v1011
        %1851 = vmatprep.subr.bf16.mxu0 0
        %1852 = vmatpush1.bf16.msra.mxu0 %v1020
        %1853 = vmatprep.subr.bf16.mxu0 0
        %1854 = vmatpush1.bf16.msra.mxu0 %v1029
        %1855 = vmatprep.subr.bf16.mxu0 0
        %1856 = vmatpush1.bf16.msra.mxu0 %v1038
        %1857 = vmatprep.subr.bf16.mxu0 0
        %1858 = vmatpush1.bf16.msra.mxu0 %v1047
        %1859 = vmatprep.subr.bf16.mxu0 0
        %1860 = vmatpush1.bf16.msra.mxu0 %v1056
        %1861 = vmatprep.subr.bf16.mxu0 0
        %1862 = vmatpush1.bf16.msra.mxu0 %v1065
        %1863 = vmatprep.subr.bf16.mxu0 0
        %1864 = vmatpush1.bf16.msra.mxu0 %v1074
        %1865 = vmatprep.subr.bf16.mxu0 0
        %1866 = vmatpush1.bf16.msra.mxu0 %v1083
        %1867 = vmatprep.subr.bf16.mxu0 0
        %1868 = vmatpush1.bf16.msra.mxu0 %v1092
        %1869 = vmatprep.subr.bf16.mxu0 0
        %1870 = vmatpush1.bf16.msra.mxu0 %v1101
        %1871 = vmatprep.subr.bf16.mxu0 0
        %1872 = vmatpush1.bf16.msra.mxu0 %v1110
        %1873 = vmatprep.mubr.bf16.mxu0 %v1302
        %1874 = vmatmul.mubr.bf16.gmra.mrb[0].mxu0 %v1301
        %v1875 = vpop.f32.mrb[0].mxu0
        %v1876 = vadd.f32 %v1836, %v1875
        %v1877 = vpop.f32.mrb[0].mxu0
        %v1878 = vpop.f32.mrb[0].mxu0
        %v1879 = vpop.f32.mrb[0].mxu0
        %1880 = vdwg.mxu0
        %1881 = vmatprep.subr.bf16.mxu0 0
        %1882 = vmatpush1.bf16.msra.mxu0 %v1119
        %1883 = vmatprep.subr.bf16.mxu0 0
        %1884 = vmatpush1.bf16.msra.mxu0 %v1128
        %1885 = vmatprep.subr.bf16.mxu0 0
        %1886 = vmatpush1.bf16.msra.mxu0 %v1137
        %1887 = vmatprep.subr.bf16.mxu0 0
        %1888 = vmatpush1.bf16.msra.mxu0 %v1146
        %1889 = vmatprep.subr.bf16.mxu0 0
        %1890 = vmatpush1.bf16.msra.mxu0 %v1155
        %1891 = vmatprep.subr.bf16.mxu0 0
        %1892 = vmatpush1.bf16.msra.mxu0 %v1164
        %1893 = vmatprep.subr.bf16.mxu0 0
        %1894 = vmatpush1.bf16.msra.mxu0 %v1173
        %1895 = vmatprep.subr.bf16.mxu0 0
        %1896 = vmatpush1.bf16.msra.mxu0 %v1182
        %1897 = vmatprep.subr.bf16.mxu0 0
        %1898 = vmatpush1.bf16.msra.mxu0 %v1191
        %1899 = vmatprep.subr.bf16.mxu0 0
        %1900 = vmatpush1.bf16.msra.mxu0 %v1200
        %1901 = vmatprep.subr.bf16.mxu0 0
        %1902 = vmatpush1.bf16.msra.mxu0 %v1209
        %1903 = vmatprep.subr.bf16.mxu0 0
        %1904 = vmatpush1.bf16.msra.mxu0 %v1218
        %1905 = vmatprep.subr.bf16.mxu0 0
        %1906 = vmatpush1.bf16.msra.mxu0 %v1227
        %1907 = vmatprep.subr.bf16.mxu0 0
        %1908 = vmatpush1.bf16.msra.mxu0 %v1236
        %1909 = vmatprep.subr.bf16.mxu0 0
        %1910 = vmatpush1.bf16.msra.mxu0 %v1245
        %1911 = vmatprep.subr.bf16.mxu0 0
        %1912 = vmatpush1.bf16.msra.mxu0 %v1254
        %1913 = vmatprep.mubr.bf16.mxu0 %v1300
        %1914 = vmatmul.mubr.bf16.gmra.mrb[0].mxu0 %v1286
        %v1915 = vpop.f32.mrb[0].mxu0
        %v1916 = vadd.f32 %v1876, %v1915
        %v1917 = vpop.f32.mrb[0].mxu0
        %v1918 = vpop.f32.mrb[0].mxu0
        %v1919 = vpop.f32.mrb[0].mxu0
        %1920 = vdwg.mxu0
        %v1921 = vld [vmem:[%s481] sm:$0xff]
        %v1922 = vld [vmem:[%s481 + $0x8] sm:$0x1]
        %v1925 = vlaneseq
        %v1926 = vshrl.u32 %v1925, 7
        %v1927 = vsub.s32 0, %v1926
        %v1928 = vrot.slane %v1921, %v1927
        %v1929 = vlaneseq
        %v1930 = vshrl.u32 %v1929, 7
        %v1931 = vsub.s32 1, %v1930
        %v1932 = vrot.slane %v1921, %v1931
        %v1933 = vlaneseq
        %v1934 = vshrl.u32 %v1933, 7
        %v1935 = vsub.s32 2, %v1934
        %v1936 = vrot.slane %v1921, %v1935
        %v1937 = vlaneseq
        %v1938 = vshrl.u32 %v1937, 7
        %v1939 = vsub.s32 3, %v1938
        %v1940 = vrot.slane %v1921, %v1939
        %v1941 = vlaneseq
        %v1942 = vshrl.u32 %v1941, 7
        %v1943 = vsub.s32 4, %v1942
        %v1944 = vrot.slane %v1921, %v1943
        %v1945 = vlaneseq
        %v1946 = vshrl.u32 %v1945, 7
        %v1947 = vsub.s32 5, %v1946
        %v1948 = vrot.slane %v1921, %v1947
        %v1949 = vlaneseq
        %v1950 = vshrl.u32 %v1949, 7
        %v1951 = vsub.s32 6, %v1950
        %v1952 = vrot.slane %v1921, %v1951
        %v1953 = vlaneseq
        %v1954 = vshrl.u32 %v1953, 7
        %v1955 = vsub.s32 7, %v1954
        %v1956 = vrot.slane %v1921, %v1955
        %v1957 = vlaneseq
        %v1958 = vshrl.u32 %v1957, 7
        %v1959 = vsub.s32 0, %v1958
        %v1960 = vrot.slane %v1922, %v1959
        %v1970 = vmul.f32 %v1426, %v1928
        %v1971 = vmul.f32 %v1428, %v1932
        %v1972 = vmul.f32 %v1549, %v1936
        %v1973 = vmul.f32 %v1551, %v1940
        %v1974 = vmul.f32 %v1672, %v1944
        %v1975 = vmul.f32 %v1674, %v1948
        %v1976 = vmul.f32 %v1795, %v1952
        %v1977 = vmul.f32 %v1797, %v1956
        %v1978 = vmul.f32 %v1916, %v1960
        %v1979 = vld [vmem:[%s490] sm:$0xff]
        %v1980 = vld [vmem:[%s490 + $0x8] sm:$0x1]
        %v1983 = vlaneseq
        %v1984 = vshrl.u32 %v1983, 7
        %v1985 = vsub.s32 0, %v1984
        %v1986 = vrot.slane %v1979, %v1985
        %v1987 = vlaneseq
        %v1988 = vshrl.u32 %v1987, 7
        %v1989 = vsub.s32 1, %v1988
        %v1990 = vrot.slane %v1979, %v1989
        %v1991 = vlaneseq
        %v1992 = vshrl.u32 %v1991, 7
        %v1993 = vsub.s32 2, %v1992
        %v1994 = vrot.slane %v1979, %v1993
        %v1995 = vlaneseq
        %v1996 = vshrl.u32 %v1995, 7
        %v1997 = vsub.s32 3, %v1996
        %v1998 = vrot.slane %v1979, %v1997
        %v1999 = vlaneseq
        %v2000 = vshrl.u32 %v1999, 7
        %v2001 = vsub.s32 4, %v2000
        %v2002 = vrot.slane %v1979, %v2001
        %v2003 = vlaneseq
        %v2004 = vshrl.u32 %v2003, 7
        %v2005 = vsub.s32 5, %v2004
        %v2006 = vrot.slane %v1979, %v2005
        %v2007 = vlaneseq
        %v2008 = vshrl.u32 %v2007, 7
        %v2009 = vsub.s32 6, %v2008
        %v2010 = vrot.slane %v1979, %v2009
        %v2011 = vlaneseq
        %v2012 = vshrl.u32 %v2011, 7
        %v2013 = vsub.s32 7, %v2012
        %v2014 = vrot.slane %v1979, %v2013
        %v2015 = vlaneseq
        %v2016 = vshrl.u32 %v2015, 7
        %v2017 = vsub.s32 0, %v2016
        %v2018 = vrot.slane %v1980, %v2017
        %v2028 = vadd.f32 %v1970, %v1986
        %v2029 = vadd.f32 %v1971, %v1990
        %v2030 = vadd.f32 %v1972, %v1994
        %v2031 = vadd.f32 %v1973, %v1998
        %v2032 = vadd.f32 %v1974, %v2002
        %v2033 = vadd.f32 %v1975, %v2006
        %v2034 = vadd.f32 %v1976, %v2010
        %v2035 = vadd.f32 %v1977, %v2014
        %v2036 = vadd.f32 %v1978, %v2018
        %v2037 = vtanh.pop %v2028
        %v2038 = vtanh.pop %v2029
        %v2039 = vtanh.pop %v2030
        %v2040 = vtanh.pop %v2031
        %v2041 = vtanh.pop %v2032
        %v2042 = vtanh.pop %v2033
        %v2043 = vtanh.pop %v2034
        %v2044 = vtanh.pop %v2035
        %v2045 = vtanh.pop %v2036
        %v2046 = vld [vmem:[%s499] sm:$0xff]
        %v2047 = vld [vmem:[%s499 + $0x8] sm:$0x1]
        %v2050 = vlaneseq
        %v2051 = vshrl.u32 %v2050, 7
        %v2052 = vsub.s32 0, %v2051
        %v2053 = vrot.slane %v2046, %v2052
        %v2054 = vlaneseq
        %v2055 = vshrl.u32 %v2054, 7
        %v2056 = vsub.s32 1, %v2055
        %v2057 = vrot.slane %v2046, %v2056
        %v2058 = vlaneseq
        %v2059 = vshrl.u32 %v2058, 7
        %v2060 = vsub.s32 2, %v2059
        %v2061 = vrot.slane %v2046, %v2060
        %v2062 = vlaneseq
        %v2063 = vshrl.u32 %v2062, 7
        %v2064 = vsub.s32 3, %v2063
        %v2065 = vrot.slane %v2046, %v2064
        %v2066 = vlaneseq
        %v2067 = vshrl.u32 %v2066, 7
        %v2068 = vsub.s32 4, %v2067
        %v2069 = vrot.slane %v2046, %v2068
        %v2070 = vlaneseq
        %v2071 = vshrl.u32 %v2070, 7
        %v2072 = vsub.s32 5, %v2071
        %v2073 = vrot.slane %v2046, %v2072
        %v2074 = vlaneseq
        %v2075 = vshrl.u32 %v2074, 7
        %v2076 = vsub.s32 6, %v2075
        %v2077 = vrot.slane %v2046, %v2076
        %v2078 = vlaneseq
        %v2079 = vshrl.u32 %v2078, 7
        %v2080 = vsub.s32 7, %v2079
        %v2081 = vrot.slane %v2046, %v2080
        %v2082 = vlaneseq
        %v2083 = vshrl.u32 %v2082, 7
        %v2084 = vsub.s32 0, %v2083
        %v2085 = vrot.slane %v2047, %v2084
        %v2095 = vadd.f32 %v2037, %v2053
        %v2096 = vadd.f32 %v2038, %v2057
        %v2097 = vadd.f32 %v2039, %v2061
        %v2098 = vadd.f32 %v2040, %v2065
        %v2099 = vadd.f32 %v2041, %v2069
        %v2100 = vadd.f32 %v2042, %v2073
        %v2101 = vadd.f32 %v2043, %v2077
        %v2102 = vadd.f32 %v2044, %v2081
        %v2103 = vadd.f32 %v2045, %v2085
        %v2113 = vcombine.low %v2095, %v2096
        %v2114 = vcombine.low %v2097, %v2098
        %v2116 = vunpack.c.l.s4 1983009808
        %v2117 = vunpack.c.0.s8 %v2116
        %v2118 = vlaneseq
        %v2119 = vshrl.u32 %v2118, 7
        %v2120 = vsub.s32 %v2117, %v2119
        %v2121 = vrot.slane %v2113, %v2120
        %v2123 = vunpack.c.l.s4 1983009808
        %v2124 = vunpack.c.0.s8 %v2123
        %v2125 = vlaneseq
        %v2126 = vshrl.u32 %v2125, 7
        %v2127 = vsub.s32 %v2124, %v2126
        %v2128 = vrot.slane %v2114, %v2127
        %v2129 = vcombine.low %v2121, %v2128
        %v2130 = vcombine.low %v2099, %v2100
        %v2131 = vcombine.low %v2101, %v2102
        %v2133 = vunpack.c.l.s4 1983009808
        %v2134 = vunpack.c.0.s8 %v2133
        %v2135 = vlaneseq
        %v2136 = vshrl.u32 %v2135, 7
        %v2137 = vsub.s32 %v2134, %v2136
        %v2138 = vrot.slane %v2130, %v2137
        %v2140 = vunpack.c.l.s4 1983009808
        %v2141 = vunpack.c.0.s8 %v2140
        %v2142 = vlaneseq
        %v2143 = vshrl.u32 %v2142, 7
        %v2144 = vsub.s32 %v2141, %v2143
        %v2145 = vrot.slane %v2131, %v2144
        %v2146 = vcombine.low %v2138, %v2145
        %v2148 = vunpack.c.l.s4 1983009808
        %v2149 = vunpack.c.0.s8 %v2148
        %v2150 = vlaneseq
        %v2151 = vshrl.u32 %v2150, 7
        %v2152 = vsub.s32 %v2149, %v2151
        %v2153 = vrot.slane %v2103, %v2152
        %2157 = vst [vmem:[%s588] sm:$0xff] %v2129
        %2158 = vst [vmem:[%s588 + $0x8] sm:$0xff] %v2146
        %2159 = vst [vmem:[%s588 + $0x10] sm:$0x3] %v2153
        %v2160 = vld [vmem:[%s508] sm:$0xff]
        %v2161 = vld [vmem:[%s508 + $0x8] sm:$0xff]
        %v2162 = vld [vmem:[%s508 + $0x10] sm:$0xff]
        %v2163 = vld [vmem:[%s508 + $0x18] sm:$0xff]
        %v2164 = vld [vmem:[%s508 + $0x20] sm:$0xff]
        %v2165 = vld [vmem:[%s508 + $0x28] sm:$0xff]
        %v2166 = vld [vmem:[%s508 + $0x30] sm:$0xff]
        %v2167 = vld [vmem:[%s508 + $0x38] sm:$0xff]
        %v2168 = vld [vmem:[%s508 + $0x40] sm:$0xff]
        %v2169 = vld [vmem:[%s508 + $0x48] sm:$0xff]
        %v2170 = vld [vmem:[%s508 + $0x50] sm:$0xff]
        %v2171 = vld [vmem:[%s508 + $0x58] sm:$0xff]
        %v2172 = vld [vmem:[%s508 + $0x60] sm:$0xff]
        %v2173 = vld [vmem:[%s508 + $0x68] sm:$0xff]
        %v2174 = vld [vmem:[%s508 + $0x70] sm:$0xff]
        %v2175 = vld [vmem:[%s508 + $0x78] sm:$0xff]
        %v2176 = vld [vmem:[%s508 + $0x80] sm:$0xff]
        %v2177 = vld [vmem:[%s508 + $0x88] sm:$0xff]
        %v2178 = vld [vmem:[%s508 + $0x90] sm:$0xff]
        %v2179 = vld [vmem:[%s508 + $0x98] sm:$0xff]
        %v2180 = vld [vmem:[%s508 + $0xa0] sm:$0xff]
        %v2181 = vld [vmem:[%s508 + $0xa8] sm:$0xff]
        %v2182 = vld [vmem:[%s508 + $0xb0] sm:$0xff]
        %v2183 = vld [vmem:[%s508 + $0xb8] sm:$0xff]
        %v2184 = vld [vmem:[%s508 + $0xc0] sm:$0xff]
        %v2185 = vld [vmem:[%s508 + $0xc8] sm:$0xff]
        %v2186 = vld [vmem:[%s508 + $0xd0] sm:$0xff]
        %v2187 = vld [vmem:[%s508 + $0xd8] sm:$0xff]
        %v2188 = vld [vmem:[%s508 + $0xe0] sm:$0xff]
        %v2189 = vld [vmem:[%s508 + $0xe8] sm:$0xff]
        %v2190 = vld [vmem:[%s508 + $0xf0] sm:$0xff]
        %v2191 = vld [vmem:[%s508 + $0xf8] sm:$0xff]
        %v2192 = vld [vmem:[%s508 + $0x100] sm:$0xff]
        %v2193 = vld [vmem:[%s508 + $0x108] sm:$0xff]
        %v2194 = vld [vmem:[%s508 + $0x110] sm:$0xff]
        %v2195 = vld [vmem:[%s508 + $0x118] sm:$0xff]
        %v2196 = vld [vmem:[%s508 + $0x120] sm:$0xff]
        %v2197 = vld [vmem:[%s508 + $0x128] sm:$0xff]
        %v2198 = vld [vmem:[%s508 + $0x130] sm:$0xff]
        %v2199 = vld [vmem:[%s508 + $0x138] sm:$0xff]
        %v2200 = vld [vmem:[%s508 + $0x140] sm:$0xff]
        %v2201 = vld [vmem:[%s508 + $0x148] sm:$0xff]
        %v2202 = vld [vmem:[%s508 + $0x150] sm:$0xff]
        %v2203 = vld [vmem:[%s508 + $0x158] sm:$0xff]
        %v2204 = vld [vmem:[%s508 + $0x160] sm:$0xff]
        %v2205 = vld [vmem:[%s508 + $0x168] sm:$0xff]
        %v2206 = vld [vmem:[%s508 + $0x170] sm:$0xff]
        %v2207 = vld [vmem:[%s508 + $0x178] sm:$0xff]
        %v2208 = vld [vmem:[%s508 + $0x180] sm:$0xff]
        %v2209 = vld [vmem:[%s508 + $0x188] sm:$0xff]
        %v2210 = vld [vmem:[%s508 + $0x190] sm:$0xff]
        %v2211 = vld [vmem:[%s508 + $0x198] sm:$0xff]
        %v2212 = vld [vmem:[%s508 + $0x1a0] sm:$0xff]
        %v2213 = vld [vmem:[%s508 + $0x1a8] sm:$0xff]
        %v2214 = vld [vmem:[%s508 + $0x1b0] sm:$0xff]
        %v2215 = vld [vmem:[%s508 + $0x1b8] sm:$0xff]
        %v2216 = vld [vmem:[%s508 + $0x1c0] sm:$0xff]
        %v2217 = vld [vmem:[%s508 + $0x1c8] sm:$0xff]
        %v2218 = vld [vmem:[%s508 + $0x1d0] sm:$0xff]
        %v2219 = vld [vmem:[%s508 + $0x1d8] sm:$0xff]
        %v2220 = vld [vmem:[%s508 + $0x1e0] sm:$0xff]
        %v2221 = vld [vmem:[%s508 + $0x1e8] sm:$0xff]
        %v2222 = vld [vmem:[%s508 + $0x1f0] sm:$0xff]
        %v2223 = vld [vmem:[%s508 + $0x1f8] sm:$0xff]
        %v2224 = vld [vmem:[%s508 + $0x200] sm:$0xff]
        %v2225 = vld [vmem:[%s508 + $0x208] sm:$0xff]
        %v2226 = vld [vmem:[%s508 + $0x210] sm:$0xff]
        %v2227 = vld [vmem:[%s508 + $0x218] sm:$0xff]
        %v2228 = vld [vmem:[%s508 + $0x220] sm:$0xff]
        %v2229 = vld [vmem:[%s508 + $0x228] sm:$0xff]
        %v2230 = vld [vmem:[%s508 + $0x230] sm:$0xff]
        %v2231 = vld [vmem:[%s508 + $0x238] sm:$0xff]
        %v2232 = vld [vmem:[%s508 + $0x240] sm:$0xff]
        %v2233 = vld [vmem:[%s508 + $0x248] sm:$0xff]
        %v2234 = vld [vmem:[%s508 + $0x250] sm:$0xff]
        %v2235 = vld [vmem:[%s508 + $0x258] sm:$0xff]
        %v2236 = vld [vmem:[%s508 + $0x260] sm:$0xff]
        %v2237 = vld [vmem:[%s508 + $0x268] sm:$0xff]
        %v2238 = vld [vmem:[%s508 + $0x270] sm:$0xff]
        %v2239 = vld [vmem:[%s508 + $0x278] sm:$0xff]
        %v2240 = vld [vmem:[%s508 + $0x280] sm:$0xff]
        %v2241 = vld [vmem:[%s508 + $0x288] sm:$0xff]
        %v2242 = vld [vmem:[%s508 + $0x290] sm:$0xff]
        %v2243 = vld [vmem:[%s508 + $0x298] sm:$0xff]
        %v2244 = vld [vmem:[%s508 + $0x2a0] sm:$0xff]
        %v2245 = vld [vmem:[%s508 + $0x2a8] sm:$0xff]
        %v2246 = vld [vmem:[%s508 + $0x2b0] sm:$0xff]
        %v2247 = vld [vmem:[%s508 + $0x2b8] sm:$0xff]
        %v2248 = vld [vmem:[%s508 + $0x2c0] sm:$0xff]
        %v2249 = vld [vmem:[%s508 + $0x2c8] sm:$0xff]
        %v2250 = vld [vmem:[%s508 + $0x2d0] sm:$0xff]
        %v2251 = vld [vmem:[%s508 + $0x2d8] sm:$0xff]
        %v2252 = vld [vmem:[%s508 + $0x2e0] sm:$0xff]
        %v2253 = vld [vmem:[%s508 + $0x2e8] sm:$0xff]
        %v2254 = vld [vmem:[%s508 + $0x2f0] sm:$0xff]
        %v2255 = vld [vmem:[%s508 + $0x2f8] sm:$0xff]
        %v2256 = vld [vmem:[%s508 + $0x300] sm:$0xff]
        %v2257 = vld [vmem:[%s508 + $0x308] sm:$0xff]
        %v2258 = vld [vmem:[%s508 + $0x310] sm:$0xff]
        %v2259 = vld [vmem:[%s508 + $0x318] sm:$0xff]
        %v2260 = vld [vmem:[%s508 + $0x320] sm:$0xff]
        %v2261 = vld [vmem:[%s508 + $0x328] sm:$0xff]
        %v2262 = vld [vmem:[%s508 + $0x330] sm:$0xff]
        %v2263 = vld [vmem:[%s508 + $0x338] sm:$0xff]
        %v2264 = vld [vmem:[%s508 + $0x340] sm:$0xff]
        %v2265 = vld [vmem:[%s508 + $0x348] sm:$0xff]
        %v2266 = vld [vmem:[%s508 + $0x350] sm:$0xff]
        %v2267 = vld [vmem:[%s508 + $0x358] sm:$0xff]
        %v2268 = vld [vmem:[%s508 + $0x360] sm:$0xff]
        %v2269 = vld [vmem:[%s508 + $0x368] sm:$0xff]
        %v2270 = vld [vmem:[%s508 + $0x370] sm:$0xff]
        %v2271 = vld [vmem:[%s508 + $0x378] sm:$0xff]
        %v2272 = vld [vmem:[%s508 + $0x380] sm:$0xff]
        %v2273 = vld [vmem:[%s508 + $0x388] sm:$0xff]
        %v2274 = vld [vmem:[%s508 + $0x390] sm:$0xff]
        %v2275 = vld [vmem:[%s508 + $0x398] sm:$0xff]
        %v2276 = vld [vmem:[%s508 + $0x3a0] sm:$0xff]
        %v2277 = vld [vmem:[%s508 + $0x3a8] sm:$0xff]
        %v2278 = vld [vmem:[%s508 + $0x3b0] sm:$0xff]
        %v2279 = vld [vmem:[%s508 + $0x3b8] sm:$0xff]
        %v2280 = vld [vmem:[%s508 + $0x3c0] sm:$0xff]
        %v2281 = vld [vmem:[%s508 + $0x3c8] sm:$0xff]
        %v2282 = vld [vmem:[%s508 + $0x3d0] sm:$0xff]
        %v2283 = vld [vmem:[%s508 + $0x3d8] sm:$0xff]
        %v2284 = vld [vmem:[%s508 + $0x3e0] sm:$0xff]
        %v2285 = vld [vmem:[%s508 + $0x3e8] sm:$0xff]
        %v2286 = vld [vmem:[%s508 + $0x3f0] sm:$0xff]
        %v2287 = vld [vmem:[%s508 + $0x3f8] sm:$0xff]
        %v2288 = vld [vmem:[%s508 + $0x400] sm:$0xff]
        %v2289 = vld [vmem:[%s508 + $0x408] sm:$0xff]
        %v2290 = vld [vmem:[%s508 + $0x410] sm:$0xff]
        %v2291 = vld [vmem:[%s508 + $0x418] sm:$0xff]
        %v2292 = vld [vmem:[%s508 + $0x420] sm:$0xff]
        %v2293 = vld [vmem:[%s508 + $0x428] sm:$0xff]
        %v2294 = vld [vmem:[%s508 + $0x430] sm:$0xff]
        %v2295 = vld [vmem:[%s508 + $0x438] sm:$0xff]
        %v2296 = vld [vmem:[%s508 + $0x440] sm:$0xff]
        %v2297 = vld [vmem:[%s508 + $0x448] sm:$0xff]
        %v2298 = vld [vmem:[%s508 + $0x450] sm:$0xff]
        %v2299 = vld [vmem:[%s508 + $0x458] sm:$0xff]
        %v2300 = vld [vmem:[%s508 + $0x460] sm:$0xff]
        %v2301 = vld [vmem:[%s508 + $0x468] sm:$0xff]
        %v2302 = vld [vmem:[%s508 + $0x470] sm:$0xff]
        %v2303 = vld [vmem:[%s508 + $0x478] sm:$0xff]
        %v2304 = vld [vmem:[%s508 + $0x480] sm:$0xff]
        %v2305 = vld [vmem:[%s508 + $0x488] sm:$0xff]
        %v2306 = vld [vmem:[%s508 + $0x490] sm:$0xff]
        %v2307 = vld [vmem:[%s508 + $0x498] sm:$0xff]
        %v2308 = vld [vmem:[%s508 + $0x4a0] sm:$0xff]
        %v2309 = vld [vmem:[%s508 + $0x4a8] sm:$0xff]
        %v2310 = vld [vmem:[%s508 + $0x4b0] sm:$0xff]
        %v2311 = vld [vmem:[%s508 + $0x4b8] sm:$0xff]
        %v2312 = vld [vmem:[%s508 + $0x4c0] sm:$0xff]
        %v2313 = vld [vmem:[%s508 + $0x4c8] sm:$0xff]
        %v2314 = vld [vmem:[%s508 + $0x4d0] sm:$0xff]
        %v2315 = vld [vmem:[%s508 + $0x4d8] sm:$0xff]
        %v2316 = vld [vmem:[%s508 + $0x4e0] sm:$0xff]
        %v2317 = vld [vmem:[%s508 + $0x4e8] sm:$0xff]
        %v2318 = vld [vmem:[%s508 + $0x4f0] sm:$0xff]
        %v2319 = vld [vmem:[%s508 + $0x4f8] sm:$0xff]
        %v2320 = vld [vmem:[%s508 + $0x500] sm:$0xff]
        %v2321 = vld [vmem:[%s508 + $0x508] sm:$0xff]
        %v2322 = vld [vmem:[%s508 + $0x510] sm:$0xff]
        %v2323 = vld [vmem:[%s508 + $0x518] sm:$0xff]
        %v2324 = vld [vmem:[%s508 + $0x520] sm:$0xff]
        %v2325 = vld [vmem:[%s508 + $0x528] sm:$0xff]
        %v2326 = vld [vmem:[%s508 + $0x530] sm:$0xff]
        %v2327 = vld [vmem:[%s508 + $0x538] sm:$0xff]
        %v2328 = vld [vmem:[%s508 + $0x540] sm:$0xff]
        %v2329 = vld [vmem:[%s508 + $0x548] sm:$0xff]
        %v2330 = vld [vmem:[%s508 + $0x550] sm:$0xff]
        %v2331 = vld [vmem:[%s508 + $0x558] sm:$0xff]
        %v2332 = vld [vmem:[%s508 + $0x560] sm:$0xff]
        %v2333 = vld [vmem:[%s508 + $0x568] sm:$0xff]
        %v2334 = vld [vmem:[%s508 + $0x570] sm:$0xff]
        %v2335 = vld [vmem:[%s508 + $0x578] sm:$0xff]
        %v2336 = vld [vmem:[%s508 + $0x580] sm:$0xff]
        %v2337 = vld [vmem:[%s508 + $0x588] sm:$0xff]
        %v2338 = vld [vmem:[%s508 + $0x590] sm:$0xff]
        %v2339 = vld [vmem:[%s508 + $0x598] sm:$0xff]
        %v2340 = vld [vmem:[%s508 + $0x5a0] sm:$0xff]
        %v2341 = vld [vmem:[%s508 + $0x5a8] sm:$0xff]
        %v2342 = vld [vmem:[%s508 + $0x5b0] sm:$0xff]
        %v2343 = vld [vmem:[%s508 + $0x5b8] sm:$0xff]
        %v2344 = vld [vmem:[%s508 + $0x5c0] sm:$0xff]
        %v2345 = vld [vmem:[%s508 + $0x5c8] sm:$0xff]
        %v2346 = vld [vmem:[%s508 + $0x5d0] sm:$0xff]
        %v2347 = vld [vmem:[%s508 + $0x5d8] sm:$0xff]
        %v2348 = vld [vmem:[%s508 + $0x5e0] sm:$0xff]
        %v2349 = vld [vmem:[%s508 + $0x5e8] sm:$0xff]
        %v2350 = vld [vmem:[%s508 + $0x5f0] sm:$0xff]
        %v2351 = vld [vmem:[%s508 + $0x5f8] sm:$0xff]
        %v2352 = vunpack.c.l.s8.bf16 %v2160
        %v2353 = vunpack.c.l.s8.bf16 %v2161
        %v2354 = vunpack.c.l.s8.bf16 %v2162
        %v2355 = vunpack.c.l.s8.bf16 %v2163
        %v2356 = vunpack.c.l.s8.bf16 %v2164
        %v2357 = vunpack.c.l.s8.bf16 %v2165
        %v2358 = vunpack.c.l.s8.bf16 %v2166
        %v2359 = vunpack.c.l.s8.bf16 %v2167
        %v2360 = vunpack.c.h.s8.bf16 %v2160
        %v2361 = vunpack.c.h.s8.bf16 %v2161
        %v2362 = vunpack.c.h.s8.bf16 %v2162
        %v2363 = vunpack.c.h.s8.bf16 %v2163
        %v2364 = vunpack.c.h.s8.bf16 %v2164
        %v2365 = vunpack.c.h.s8.bf16 %v2165
        %v2366 = vunpack.c.h.s8.bf16 %v2166
        %v2367 = vunpack.c.h.s8.bf16 %v2167
        %v2368 = vunpack.c.l.s8.bf16 %v2168
        %v2369 = vunpack.c.l.s8.bf16 %v2169
        %v2370 = vunpack.c.l.s8.bf16 %v2170
        %v2371 = vunpack.c.l.s8.bf16 %v2171
        %v2372 = vunpack.c.l.s8.bf16 %v2172
        %v2373 = vunpack.c.l.s8.bf16 %v2173
        %v2374 = vunpack.c.l.s8.bf16 %v2174
        %v2375 = vunpack.c.l.s8.bf16 %v2175
        %v2376 = vunpack.c.h.s8.bf16 %v2168
        %v2377 = vunpack.c.h.s8.bf16 %v2169
        %v2378 = vunpack.c.h.s8.bf16 %v2170
        %v2379 = vunpack.c.h.s8.bf16 %v2171
        %v2380 = vunpack.c.h.s8.bf16 %v2172
        %v2381 = vunpack.c.h.s8.bf16 %v2173
        %v2382 = vunpack.c.h.s8.bf16 %v2174
        %v2383 = vunpack.c.h.s8.bf16 %v2175
        %v2384 = vunpack.c.l.s8.bf16 %v2176
        %v2385 = vunpack.c.l.s8.bf16 %v2177
        %v2386 = vunpack.c.l.s8.bf16 %v2178
        %v2387 = vunpack.c.l.s8.bf16 %v2179
        %v2388 = vunpack.c.l.s8.bf16 %v2180
        %v2389 = vunpack.c.l.s8.bf16 %v2181
        %v2390 = vunpack.c.l.s8.bf16 %v2182
        %v2391 = vunpack.c.l.s8.bf16 %v2183
        %v2392 = vunpack.c.h.s8.bf16 %v2176
        %v2393 = vunpack.c.h.s8.bf16 %v2177
        %v2394 = vunpack.c.h.s8.bf16 %v2178
        %v2395 = vunpack.c.h.s8.bf16 %v2179
        %v2396 = vunpack.c.h.s8.bf16 %v2180
        %v2397 = vunpack.c.h.s8.bf16 %v2181
        %v2398 = vunpack.c.h.s8.bf16 %v2182
        %v2399 = vunpack.c.h.s8.bf16 %v2183
        %v2400 = vunpack.c.l.s8.bf16 %v2184
        %v2401 = vunpack.c.l.s8.bf16 %v2185
        %v2402 = vunpack.c.l.s8.bf16 %v2186
        %v2403 = vunpack.c.l.s8.bf16 %v2187
        %v2404 = vunpack.c.l.s8.bf16 %v2188
        %v2405 = vunpack.c.l.s8.bf16 %v2189
        %v2406 = vunpack.c.l.s8.bf16 %v2190
        %v2407 = vunpack.c.l.s8.bf16 %v2191
        %v2408 = vunpack.c.h.s8.bf16 %v2184
        %v2409 = vunpack.c.h.s8.bf16 %v2185
        %v2410 = vunpack.c.h.s8.bf16 %v2186
        %v2411 = vunpack.c.h.s8.bf16 %v2187
        %v2412 = vunpack.c.h.s8.bf16 %v2188
        %v2413 = vunpack.c.h.s8.bf16 %v2189
        %v2414 = vunpack.c.h.s8.bf16 %v2190
        %v2415 = vunpack.c.h.s8.bf16 %v2191
        %v2416 = vunpack.c.l.s8.bf16 %v2192
        %v2417 = vunpack.c.l.s8.bf16 %v2193
        %v2418 = vunpack.c.l.s8.bf16 %v2194
        %v2419 = vunpack.c.l.s8.bf16 %v2195
        %v2420 = vunpack.c.l.s8.bf16 %v2196
        %v2421 = vunpack.c.l.s8.bf16 %v2197
        %v2422 = vunpack.c.l.s8.bf16 %v2198
        %v2423 = vunpack.c.l.s8.bf16 %v2199
        %v2424 = vunpack.c.h.s8.bf16 %v2192
        %v2425 = vunpack.c.h.s8.bf16 %v2193
        %v2426 = vunpack.c.h.s8.bf16 %v2194
        %v2427 = vunpack.c.h.s8.bf16 %v2195
        %v2428 = vunpack.c.h.s8.bf16 %v2196
        %v2429 = vunpack.c.h.s8.bf16 %v2197
        %v2430 = vunpack.c.h.s8.bf16 %v2198
        %v2431 = vunpack.c.h.s8.bf16 %v2199
        %v2432 = vunpack.c.l.s8.bf16 %v2200
        %v2433 = vunpack.c.l.s8.bf16 %v2201
        %v2434 = vunpack.c.l.s8.bf16 %v2202
        %v2435 = vunpack.c.l.s8.bf16 %v2203
        %v2436 = vunpack.c.l.s8.bf16 %v2204
        %v2437 = vunpack.c.l.s8.bf16 %v2205
        %v2438 = vunpack.c.l.s8.bf16 %v2206
        %v2439 = vunpack.c.l.s8.bf16 %v2207
        %v2440 = vunpack.c.h.s8.bf16 %v2200
        %v2441 = vunpack.c.h.s8.bf16 %v2201
        %v2442 = vunpack.c.h.s8.bf16 %v2202
        %v2443 = vunpack.c.h.s8.bf16 %v2203
        %v2444 = vunpack.c.h.s8.bf16 %v2204
        %v2445 = vunpack.c.h.s8.bf16 %v2205
        %v2446 = vunpack.c.h.s8.bf16 %v2206
        %v2447 = vunpack.c.h.s8.bf16 %v2207
        %v2448 = vunpack.c.l.s8.bf16 %v2208
        %v2449 = vunpack.c.l.s8.bf16 %v2209
        %v2450 = vunpack.c.l.s8.bf16 %v2210
        %v2451 = vunpack.c.l.s8.bf16 %v2211
        %v2452 = vunpack.c.l.s8.bf16 %v2212
        %v2453 = vunpack.c.l.s8.bf16 %v2213
        %v2454 = vunpack.c.l.s8.bf16 %v2214
        %v2455 = vunpack.c.l.s8.bf16 %v2215
        %v2456 = vunpack.c.h.s8.bf16 %v2208
        %v2457 = vunpack.c.h.s8.bf16 %v2209
        %v2458 = vunpack.c.h.s8.bf16 %v2210
        %v2459 = vunpack.c.h.s8.bf16 %v2211
        %v2460 = vunpack.c.h.s8.bf16 %v2212
        %v2461 = vunpack.c.h.s8.bf16 %v2213
        %v2462 = vunpack.c.h.s8.bf16 %v2214
        %v2463 = vunpack.c.h.s8.bf16 %v2215
        %v2464 = vunpack.c.l.s8.bf16 %v2216
        %v2465 = vunpack.c.l.s8.bf16 %v2217
        %v2466 = vunpack.c.l.s8.bf16 %v2218
        %v2467 = vunpack.c.l.s8.bf16 %v2219
        %v2468 = vunpack.c.l.s8.bf16 %v2220
        %v2469 = vunpack.c.l.s8.bf16 %v2221
        %v2470 = vunpack.c.l.s8.bf16 %v2222
        %v2471 = vunpack.c.l.s8.bf16 %v2223
        %v2472 = vunpack.c.h.s8.bf16 %v2216
        %v2473 = vunpack.c.h.s8.bf16 %v2217
        %v2474 = vunpack.c.h.s8.bf16 %v2218
        %v2475 = vunpack.c.h.s8.bf16 %v2219
        %v2476 = vunpack.c.h.s8.bf16 %v2220
        %v2477 = vunpack.c.h.s8.bf16 %v2221
        %v2478 = vunpack.c.h.s8.bf16 %v2222
        %v2479 = vunpack.c.h.s8.bf16 %v2223
        %v2480 = vunpack.c.l.s8.bf16 %v2224
        %v2481 = vunpack.c.l.s8.bf16 %v2225
        %v2482 = vunpack.c.l.s8.bf16 %v2226
        %v2483 = vunpack.c.l.s8.bf16 %v2227
        %v2484 = vunpack.c.l.s8.bf16 %v2228
        %v2485 = vunpack.c.l.s8.bf16 %v2229
        %v2486 = vunpack.c.l.s8.bf16 %v2230
        %v2487 = vunpack.c.l.s8.bf16 %v2231
        %v2488 = vunpack.c.h.s8.bf16 %v2224
        %v2489 = vunpack.c.h.s8.bf16 %v2225
        %v2490 = vunpack.c.h.s8.bf16 %v2226
        %v2491 = vunpack.c.h.s8.bf16 %v2227
        %v2492 = vunpack.c.h.s8.bf16 %v2228
        %v2493 = vunpack.c.h.s8.bf16 %v2229
        %v2494 = vunpack.c.h.s8.bf16 %v2230
        %v2495 = vunpack.c.h.s8.bf16 %v2231
        %v2496 = vunpack.c.l.s8.bf16 %v2232
        %v2497 = vunpack.c.l.s8.bf16 %v2233
        %v2498 = vunpack.c.l.s8.bf16 %v2234
        %v2499 = vunpack.c.l.s8.bf16 %v2235
        %v2500 = vunpack.c.l.s8.bf16 %v2236
        %v2501 = vunpack.c.l.s8.bf16 %v2237
        %v2502 = vunpack.c.l.s8.bf16 %v2238
        %v2503 = vunpack.c.l.s8.bf16 %v2239
        %v2504 = vunpack.c.h.s8.bf16 %v2232
        %v2505 = vunpack.c.h.s8.bf16 %v2233
        %v2506 = vunpack.c.h.s8.bf16 %v2234
        %v2507 = vunpack.c.h.s8.bf16 %v2235
        %v2508 = vunpack.c.h.s8.bf16 %v2236
        %v2509 = vunpack.c.h.s8.bf16 %v2237
        %v2510 = vunpack.c.h.s8.bf16 %v2238
        %v2511 = vunpack.c.h.s8.bf16 %v2239
        %v2512 = vunpack.c.l.s8.bf16 %v2240
        %v2513 = vunpack.c.l.s8.bf16 %v2241
        %v2514 = vunpack.c.l.s8.bf16 %v2242
        %v2515 = vunpack.c.l.s8.bf16 %v2243
        %v2516 = vunpack.c.l.s8.bf16 %v2244
        %v2517 = vunpack.c.l.s8.bf16 %v2245
        %v2518 = vunpack.c.l.s8.bf16 %v2246
        %v2519 = vunpack.c.l.s8.bf16 %v2247
        %v2520 = vunpack.c.h.s8.bf16 %v2240
        %v2521 = vunpack.c.h.s8.bf16 %v2241
        %v2522 = vunpack.c.h.s8.bf16 %v2242
        %v2523 = vunpack.c.h.s8.bf16 %v2243
        %v2524 = vunpack.c.h.s8.bf16 %v2244
        %v2525 = vunpack.c.h.s8.bf16 %v2245
        %v2526 = vunpack.c.h.s8.bf16 %v2246
        %v2527 = vunpack.c.h.s8.bf16 %v2247
        %v2528 = vunpack.c.l.s8.bf16 %v2248
        %v2529 = vunpack.c.l.s8.bf16 %v2249
        %v2530 = vunpack.c.l.s8.bf16 %v2250
        %v2531 = vunpack.c.l.s8.bf16 %v2251
        %v2532 = vunpack.c.l.s8.bf16 %v2252
        %v2533 = vunpack.c.l.s8.bf16 %v2253
        %v2534 = vunpack.c.l.s8.bf16 %v2254
        %v2535 = vunpack.c.l.s8.bf16 %v2255
        %v2536 = vunpack.c.h.s8.bf16 %v2248
        %v2537 = vunpack.c.h.s8.bf16 %v2249
        %v2538 = vunpack.c.h.s8.bf16 %v2250
        %v2539 = vunpack.c.h.s8.bf16 %v2251
        %v2540 = vunpack.c.h.s8.bf16 %v2252
        %v2541 = vunpack.c.h.s8.bf16 %v2253
        %v2542 = vunpack.c.h.s8.bf16 %v2254
        %v2543 = vunpack.c.h.s8.bf16 %v2255
        %v2544 = vunpack.c.l.s8.bf16 %v2256
        %v2545 = vunpack.c.l.s8.bf16 %v2257
        %v2546 = vunpack.c.l.s8.bf16 %v2258
        %v2547 = vunpack.c.l.s8.bf16 %v2259
        %v2548 = vunpack.c.l.s8.bf16 %v2260
        %v2549 = vunpack.c.l.s8.bf16 %v2261
        %v2550 = vunpack.c.l.s8.bf16 %v2262
        %v2551 = vunpack.c.l.s8.bf16 %v2263
        %v2552 = vunpack.c.h.s8.bf16 %v2256
        %v2553 = vunpack.c.h.s8.bf16 %v2257
        %v2554 = vunpack.c.h.s8.bf16 %v2258
        %v2555 = vunpack.c.h.s8.bf16 %v2259
        %v2556 = vunpack.c.h.s8.bf16 %v2260
        %v2557 = vunpack.c.h.s8.bf16 %v2261
        %v2558 = vunpack.c.h.s8.bf16 %v2262
        %v2559 = vunpack.c.h.s8.bf16 %v2263
        %v2560 = vunpack.c.l.s8.bf16 %v2264
        %v2561 = vunpack.c.l.s8.bf16 %v2265
        %v2562 = vunpack.c.l.s8.bf16 %v2266
        %v2563 = vunpack.c.l.s8.bf16 %v2267
        %v2564 = vunpack.c.l.s8.bf16 %v2268
        %v2565 = vunpack.c.l.s8.bf16 %v2269
        %v2566 = vunpack.c.l.s8.bf16 %v2270
        %v2567 = vunpack.c.l.s8.bf16 %v2271
        %v2568 = vunpack.c.h.s8.bf16 %v2264
        %v2569 = vunpack.c.h.s8.bf16 %v2265
        %v2570 = vunpack.c.h.s8.bf16 %v2266
        %v2571 = vunpack.c.h.s8.bf16 %v2267
        %v2572 = vunpack.c.h.s8.bf16 %v2268
        %v2573 = vunpack.c.h.s8.bf16 %v2269
        %v2574 = vunpack.c.h.s8.bf16 %v2270
        %v2575 = vunpack.c.h.s8.bf16 %v2271
        %v2576 = vunpack.c.l.s8.bf16 %v2272
        %v2577 = vunpack.c.l.s8.bf16 %v2273
        %v2578 = vunpack.c.l.s8.bf16 %v2274
        %v2579 = vunpack.c.l.s8.bf16 %v2275
        %v2580 = vunpack.c.l.s8.bf16 %v2276
        %v2581 = vunpack.c.l.s8.bf16 %v2277
        %v2582 = vunpack.c.l.s8.bf16 %v2278
        %v2583 = vunpack.c.l.s8.bf16 %v2279
        %v2584 = vunpack.c.h.s8.bf16 %v2272
        %v2585 = vunpack.c.h.s8.bf16 %v2273
        %v2586 = vunpack.c.h.s8.bf16 %v2274
        %v2587 = vunpack.c.h.s8.bf16 %v2275
        %v2588 = vunpack.c.h.s8.bf16 %v2276
        %v2589 = vunpack.c.h.s8.bf16 %v2277
        %v2590 = vunpack.c.h.s8.bf16 %v2278
        %v2591 = vunpack.c.h.s8.bf16 %v2279
        %v2592 = vunpack.c.l.s8.bf16 %v2280
        %v2593 = vunpack.c.l.s8.bf16 %v2281
        %v2594 = vunpack.c.l.s8.bf16 %v2282
        %v2595 = vunpack.c.l.s8.bf16 %v2283
        %v2596 = vunpack.c.l.s8.bf16 %v2284
        %v2597 = vunpack.c.l.s8.bf16 %v2285
        %v2598 = vunpack.c.l.s8.bf16 %v2286
        %v2599 = vunpack.c.l.s8.bf16 %v2287
        %v2600 = vunpack.c.h.s8.bf16 %v2280
        %v2601 = vunpack.c.h.s8.bf16 %v2281
        %v2602 = vunpack.c.h.s8.bf16 %v2282
        %v2603 = vunpack.c.h.s8.bf16 %v2283
        %v2604 = vunpack.c.h.s8.bf16 %v2284
        %v2605 = vunpack.c.h.s8.bf16 %v2285
        %v2606 = vunpack.c.h.s8.bf16 %v2286
        %v2607 = vunpack.c.h.s8.bf16 %v2287
        %v2608 = vunpack.c.l.s8.bf16 %v2288
        %v2609 = vunpack.c.l.s8.bf16 %v2289
        %v2610 = vunpack.c.l.s8.bf16 %v2290
        %v2611 = vunpack.c.l.s8.bf16 %v2291
        %v2612 = vunpack.c.l.s8.bf16 %v2292
        %v2613 = vunpack.c.l.s8.bf16 %v2293
        %v2614 = vunpack.c.l.s8.bf16 %v2294
        %v2615 = vunpack.c.l.s8.bf16 %v2295
        %v2616 = vunpack.c.h.s8.bf16 %v2288
        %v2617 = vunpack.c.h.s8.bf16 %v2289
        %v2618 = vunpack.c.h.s8.bf16 %v2290
        %v2619 = vunpack.c.h.s8.bf16 %v2291
        %v2620 = vunpack.c.h.s8.bf16 %v2292
        %v2621 = vunpack.c.h.s8.bf16 %v2293
        %v2622 = vunpack.c.h.s8.bf16 %v2294
        %v2623 = vunpack.c.h.s8.bf16 %v2295
        %v2624 = vunpack.c.l.s8.bf16 %v2296
        %v2625 = vunpack.c.l.s8.bf16 %v2297
        %v2626 = vunpack.c.l.s8.bf16 %v2298
        %v2627 = vunpack.c.l.s8.bf16 %v2299
        %v2628 = vunpack.c.l.s8.bf16 %v2300
        %v2629 = vunpack.c.l.s8.bf16 %v2301
        %v2630 = vunpack.c.l.s8.bf16 %v2302
        %v2631 = vunpack.c.l.s8.bf16 %v2303
        %v2632 = vunpack.c.h.s8.bf16 %v2296
        %v2633 = vunpack.c.h.s8.bf16 %v2297
        %v2634 = vunpack.c.h.s8.bf16 %v2298
        %v2635 = vunpack.c.h.s8.bf16 %v2299
        %v2636 = vunpack.c.h.s8.bf16 %v2300
        %v2637 = vunpack.c.h.s8.bf16 %v2301
        %v2638 = vunpack.c.h.s8.bf16 %v2302
        %v2639 = vunpack.c.h.s8.bf16 %v2303
        %v2640 = vunpack.c.l.s8.bf16 %v2304
        %v2641 = vunpack.c.l.s8.bf16 %v2305
        %v2642 = vunpack.c.l.s8.bf16 %v2306
        %v2643 = vunpack.c.l.s8.bf16 %v2307
        %v2644 = vunpack.c.l.s8.bf16 %v2308
        %v2645 = vunpack.c.l.s8.bf16 %v2309
        %v2646 = vunpack.c.l.s8.bf16 %v2310
        %v2647 = vunpack.c.l.s8.bf16 %v2311
        %v2648 = vunpack.c.h.s8.bf16 %v2304
        %v2649 = vunpack.c.h.s8.bf16 %v2305
        %v2650 = vunpack.c.h.s8.bf16 %v2306
        %v2651 = vunpack.c.h.s8.bf16 %v2307
        %v2652 = vunpack.c.h.s8.bf16 %v2308
        %v2653 = vunpack.c.h.s8.bf16 %v2309
        %v2654 = vunpack.c.h.s8.bf16 %v2310
        %v2655 = vunpack.c.h.s8.bf16 %v2311
        %v2656 = vunpack.c.l.s8.bf16 %v2312
        %v2657 = vunpack.c.l.s8.bf16 %v2313
        %v2658 = vunpack.c.l.s8.bf16 %v2314
        %v2659 = vunpack.c.l.s8.bf16 %v2315
        %v2660 = vunpack.c.l.s8.bf16 %v2316
        %v2661 = vunpack.c.l.s8.bf16 %v2317
        %v2662 = vunpack.c.l.s8.bf16 %v2318
        %v2663 = vunpack.c.l.s8.bf16 %v2319
        %v2664 = vunpack.c.h.s8.bf16 %v2312
        %v2665 = vunpack.c.h.s8.bf16 %v2313
        %v2666 = vunpack.c.h.s8.bf16 %v2314
        %v2667 = vunpack.c.h.s8.bf16 %v2315
        %v2668 = vunpack.c.h.s8.bf16 %v2316
        %v2669 = vunpack.c.h.s8.bf16 %v2317
        %v2670 = vunpack.c.h.s8.bf16 %v2318
        %v2671 = vunpack.c.h.s8.bf16 %v2319
        %v2672 = vunpack.c.l.s8.bf16 %v2320
        %v2673 = vunpack.c.l.s8.bf16 %v2321
        %v2674 = vunpack.c.l.s8.bf16 %v2322
        %v2675 = vunpack.c.l.s8.bf16 %v2323
        %v2676 = vunpack.c.l.s8.bf16 %v2324
        %v2677 = vunpack.c.l.s8.bf16 %v2325
        %v2678 = vunpack.c.l.s8.bf16 %v2326
        %v2679 = vunpack.c.l.s8.bf16 %v2327
        %v2680 = vunpack.c.h.s8.bf16 %v2320
        %v2681 = vunpack.c.h.s8.bf16 %v2321
        %v2682 = vunpack.c.h.s8.bf16 %v2322
        %v2683 = vunpack.c.h.s8.bf16 %v2323
        %v2684 = vunpack.c.h.s8.bf16 %v2324
        %v2685 = vunpack.c.h.s8.bf16 %v2325
        %v2686 = vunpack.c.h.s8.bf16 %v2326
        %v2687 = vunpack.c.h.s8.bf16 %v2327
        %v2688 = vunpack.c.l.s8.bf16 %v2328
        %v2689 = vunpack.c.l.s8.bf16 %v2329
        %v2690 = vunpack.c.l.s8.bf16 %v2330
        %v2691 = vunpack.c.l.s8.bf16 %v2331
        %v2692 = vunpack.c.l.s8.bf16 %v2332
        %v2693 = vunpack.c.l.s8.bf16 %v2333
        %v2694 = vunpack.c.l.s8.bf16 %v2334
        %v2695 = vunpack.c.l.s8.bf16 %v2335
        %v2696 = vunpack.c.h.s8.bf16 %v2328
        %v2697 = vunpack.c.h.s8.bf16 %v2329
        %v2698 = vunpack.c.h.s8.bf16 %v2330
        %v2699 = vunpack.c.h.s8.bf16 %v2331
        %v2700 = vunpack.c.h.s8.bf16 %v2332
        %v2701 = vunpack.c.h.s8.bf16 %v2333
        %v2702 = vunpack.c.h.s8.bf16 %v2334
        %v2703 = vunpack.c.h.s8.bf16 %v2335
        %v2704 = vunpack.c.l.s8.bf16 %v2336
        %v2705 = vunpack.c.l.s8.bf16 %v2337
        %v2706 = vunpack.c.l.s8.bf16 %v2338
        %v2707 = vunpack.c.l.s8.bf16 %v2339
        %v2708 = vunpack.c.l.s8.bf16 %v2340
        %v2709 = vunpack.c.l.s8.bf16 %v2341
        %v2710 = vunpack.c.l.s8.bf16 %v2342
        %v2711 = vunpack.c.l.s8.bf16 %v2343
        %v2712 = vunpack.c.h.s8.bf16 %v2336
        %v2713 = vunpack.c.h.s8.bf16 %v2337
        %v2714 = vunpack.c.h.s8.bf16 %v2338
        %v2715 = vunpack.c.h.s8.bf16 %v2339
        %v2716 = vunpack.c.h.s8.bf16 %v2340
        %v2717 = vunpack.c.h.s8.bf16 %v2341
        %v2718 = vunpack.c.h.s8.bf16 %v2342
        %v2719 = vunpack.c.h.s8.bf16 %v2343
        %v2720 = vunpack.c.l.s8.bf16 %v2344
        %v2721 = vunpack.c.l.s8.bf16 %v2345
        %v2722 = vunpack.c.l.s8.bf16 %v2346
        %v2723 = vunpack.c.l.s8.bf16 %v2347
        %v2724 = vunpack.c.l.s8.bf16 %v2348
        %v2725 = vunpack.c.l.s8.bf16 %v2349
        %v2726 = vunpack.c.l.s8.bf16 %v2350
        %v2727 = vunpack.c.l.s8.bf16 %v2351
        %v2728 = vunpack.c.h.s8.bf16 %v2344
        %v2729 = vunpack.c.h.s8.bf16 %v2345
        %v2730 = vunpack.c.h.s8.bf16 %v2346
        %v2731 = vunpack.c.h.s8.bf16 %v2347
        %v2732 = vunpack.c.h.s8.bf16 %v2348
        %v2733 = vunpack.c.h.s8.bf16 %v2349
        %v2734 = vunpack.c.h.s8.bf16 %v2350
        %v2735 = vunpack.c.h.s8.bf16 %v2351
        %2736 = vmatprep.subr.bf16.mxu0 %v2353
        %2737 = vmatpush1.bf16.msra.mxu0 %v2352
        %2738 = vmatprep.subr.bf16.mxu0 %v2361
        %2739 = vmatpush1.bf16.msra.mxu0 %v2360
        %2740 = vmatprep.subr.bf16.mxu0 %v2369
        %2741 = vmatpush1.bf16.msra.mxu0 %v2368
        %2742 = vmatprep.subr.bf16.mxu0 %v2377
        %2743 = vmatpush1.bf16.msra.mxu0 %v2376
        %2744 = vmatprep.subr.bf16.mxu0 %v2385
        %2745 = vmatpush1.bf16.msra.mxu0 %v2384
        %2746 = vmatprep.subr.bf16.mxu0 %v2393
        %2747 = vmatpush1.bf16.msra.mxu0 %v2392
        %2748 = vmatprep.subr.bf16.mxu0 %v2401
        %2749 = vmatpush1.bf16.msra.mxu0 %v2400
        %2750 = vmatprep.subr.bf16.mxu0 %v2409
        %2751 = vmatpush1.bf16.msra.mxu0 %v2408
        %2752 = vmatprep.subr.bf16.mxu0 %v2417
        %2753 = vmatpush1.bf16.msra.mxu0 %v2416
        %2754 = vmatprep.subr.bf16.mxu0 %v2425
        %2755 = vmatpush1.bf16.msra.mxu0 %v2424
        %2756 = vmatprep.subr.bf16.mxu0 %v2433
        %2757 = vmatpush1.bf16.msra.mxu0 %v2432
        %2758 = vmatprep.subr.bf16.mxu0 %v2441
        %2759 = vmatpush1.bf16.msra.mxu0 %v2440
        %2760 = vmatprep.subr.bf16.mxu0 %v2449
        %2761 = vmatpush1.bf16.msra.mxu0 %v2448
        %2762 = vmatprep.subr.bf16.mxu0 %v2457
        %2763 = vmatpush1.bf16.msra.mxu0 %v2456
        %2764 = vmatprep.subr.bf16.mxu0 %v2465
        %2765 = vmatpush1.bf16.msra.mxu0 %v2464
        %2766 = vmatprep.subr.bf16.mxu0 %v2473
        %2767 = vmatpush1.bf16.msra.mxu0 %v2472
        %2768 = vmatprep.mubr.bf16.mxu0 %v1293
        %2769 = vmatmul.mubr.bf16.gmra.mrb[0].mxu0 %v1279
        %v2770 = vpop.f32.mrb[0].mxu0
        %v2771 = vadd.f32 0.0, %v2770
        %v2772 = vpop.f32.mrb[0].mxu0
        %v2773 = vadd.f32 0.0, %v2772
        %v2774 = vpop.f32.mrb[0].mxu0
        %v2775 = vpop.f32.mrb[0].mxu0
        %2776 = vdwg.mxu0
        %2777 = vmatprep.subr.bf16.mxu0 %v2481
        %2778 = vmatpush1.bf16.msra.mxu0 %v2480
        %2779 = vmatprep.subr.bf16.mxu0 %v2489
        %2780 = vmatpush1.bf16.msra.mxu0 %v2488
        %2781 = vmatprep.subr.bf16.mxu0 %v2497
        %2782 = vmatpush1.bf16.msra.mxu0 %v2496
        %2783 = vmatprep.subr.bf16.mxu0 %v2505
        %2784 = vmatpush1.bf16.msra.mxu0 %v2504
        %2785 = vmatprep.subr.bf16.mxu0 %v2513
        %2786 = vmatpush1.bf16.msra.mxu0 %v2512
        %2787 = vmatprep.subr.bf16.mxu0 %v2521
        %2788 = vmatpush1.bf16.msra.mxu0 %v2520
        %2789 = vmatprep.subr.bf16.mxu0 %v2529
        %2790 = vmatpush1.bf16.msra.mxu0 %v2528
        %2791 = vmatprep.subr.bf16.mxu0 %v2537
        %2792 = vmatpush1.bf16.msra.mxu0 %v2536
        %2793 = vmatprep.subr.bf16.mxu0 %v2545
        %2794 = vmatpush1.bf16.msra.mxu0 %v2544
        %2795 = vmatprep.subr.bf16.mxu0 %v2553
        %2796 = vmatpush1.bf16.msra.mxu0 %v2552
        %2797 = vmatprep.subr.bf16.mxu0 %v2561
        %2798 = vmatpush1.bf16.msra.mxu0 %v2560
        %2799 = vmatprep.subr.bf16.mxu0 %v2569
        %2800 = vmatpush1.bf16.msra.mxu0 %v2568
        %2801 = vmatprep.subr.bf16.mxu0 %v2577
        %2802 = vmatpush1.bf16.msra.mxu0 %v2576
        %2803 = vmatprep.subr.bf16.mxu0 %v2585
        %2804 = vmatpush1.bf16.msra.mxu0 %v2584
        %2805 = vmatprep.subr.bf16.mxu0 %v2593
        %2806 = vmatpush1.bf16.msra.mxu0 %v2592
        %2807 = vmatprep.subr.bf16.mxu0 %v2601
        %2808 = vmatpush1.bf16.msra.mxu0 %v2600
        %2809 = vmatprep.mubr.bf16.mxu0 %v1302
        %2810 = vmatmul.mubr.bf16.gmra.mrb[0].mxu0 %v1301
        %v2811 = vpop.f32.mrb[0].mxu0
        %v2812 = vadd.f32 %v2771, %v2811
        %v2813 = vpop.f32.mrb[0].mxu0
        %v2814 = vadd.f32 %v2773, %v2813
        %v2815 = vpop.f32.mrb[0].mxu0
        %v2816 = vpop.f32.mrb[0].mxu0
        %2817 = vdwg.mxu0
        %2818 = vmatprep.subr.bf16.mxu0 %v2609
        %2819 = vmatpush1.bf16.msra.mxu0 %v2608
        %2820 = vmatprep.subr.bf16.mxu0 %v2617
        %2821 = vmatpush1.bf16.msra.mxu0 %v2616
        %2822 = vmatprep.subr.bf16.mxu0 %v2625
        %2823 = vmatpush1.bf16.msra.mxu0 %v2624
        %2824 = vmatprep.subr.bf16.mxu0 %v2633
        %2825 = vmatpush1.bf16.msra.mxu0 %v2632
        %2826 = vmatprep.subr.bf16.mxu0 %v2641
        %2827 = vmatpush1.bf16.msra.mxu0 %v2640
        %2828 = vmatprep.subr.bf16.mxu0 %v2649
        %2829 = vmatpush1.bf16.msra.mxu0 %v2648
        %2830 = vmatprep.subr.bf16.mxu0 %v2657
        %2831 = vmatpush1.bf16.msra.mxu0 %v2656
        %2832 = vmatprep.subr.bf16.mxu0 %v2665
        %2833 = vmatpush1.bf16.msra.mxu0 %v2664
        %2834 = vmatprep.subr.bf16.mxu0 %v2673
        %2835 = vmatpush1.bf16.msra.mxu0 %v2672
        %2836 = vmatprep.subr.bf16.mxu0 %v2681
        %2837 = vmatpush1.bf16.msra.mxu0 %v2680
        %2838 = vmatprep.subr.bf16.mxu0 %v2689
        %2839 = vmatpush1.bf16.msra.mxu0 %v2688
        %2840 = vmatprep.subr.bf16.mxu0 %v2697
        %2841 = vmatpush1.bf16.msra.mxu0 %v2696
        %2842 = vmatprep.subr.bf16.mxu0 %v2705
        %2843 = vmatpush1.bf16.msra.mxu0 %v2704
        %2844 = vmatprep.subr.bf16.mxu0 %v2713
        %2845 = vmatpush1.bf16.msra.mxu0 %v2712
        %2846 = vmatprep.subr.bf16.mxu0 %v2721
        %2847 = vmatpush1.bf16.msra.mxu0 %v2720
        %2848 = vmatprep.subr.bf16.mxu0 %v2729
        %2849 = vmatpush1.bf16.msra.mxu0 %v2728
        %2850 = vmatprep.mubr.bf16.mxu0 %v1300
        %2851 = vmatmul.mubr.bf16.gmra.mrb[0].mxu0 %v1286
        %v2852 = vpop.f32.mrb[0].mxu0
        %v2853 = vadd.f32 %v2812, %v2852
        %v2854 = vpop.f32.mrb[0].mxu0
        %v2855 = vadd.f32 %v2814, %v2854
        %v2856 = vpop.f32.mrb[0].mxu0
        %v2857 = vpop.f32.mrb[0].mxu0
        %2858 = vdwg.mxu0
        %2859 = vmatprep.subr.bf16.mxu0 %v2355
        %2860 = vmatpush1.bf16.msra.mxu0 %v2354
        %2861 = vmatprep.subr.bf16.mxu0 %v2363
        %2862 = vmatpush1.bf16.msra.mxu0 %v2362
        %2863 = vmatprep.subr.bf16.mxu0 %v2371
        %2864 = vmatpush1.bf16.msra.mxu0 %v2370
        %2865 = vmatprep.subr.bf16.mxu0 %v2379
        %2866 = vmatpush1.bf16.msra.mxu0 %v2378
        %2867 = vmatprep.subr.bf16.mxu0 %v2387
        %2868 = vmatpush1.bf16.msra.mxu0 %v2386
        %2869 = vmatprep.subr.bf16.mxu0 %v2395
        %2870 = vmatpush1.bf16.msra.mxu0 %v2394
        %2871 = vmatprep.subr.bf16.mxu0 %v2403
        %2872 = vmatpush1.bf16.msra.mxu0 %v2402
        %2873 = vmatprep.subr.bf16.mxu0 %v2411
        %2874 = vmatpush1.bf16.msra.mxu0 %v2410
        %2875 = vmatprep.subr.bf16.mxu0 %v2419
        %2876 = vmatpush1.bf16.msra.mxu0 %v2418
        %2877 = vmatprep.subr.bf16.mxu0 %v2427
        %2878 = vmatpush1.bf16.msra.mxu0 %v2426
        %2879 = vmatprep.subr.bf16.mxu0 %v2435
        %2880 = vmatpush1.bf16.msra.mxu0 %v2434
        %2881 = vmatprep.subr.bf16.mxu0 %v2443
        %2882 = vmatpush1.bf16.msra.mxu0 %v2442
        %2883 = vmatprep.subr.bf16.mxu0 %v2451
        %2884 = vmatpush1.bf16.msra.mxu0 %v2450
        %2885 = vmatprep.subr.bf16.mxu0 %v2459
        %2886 = vmatpush1.bf16.msra.mxu0 %v2458
        %2887 = vmatprep.subr.bf16.mxu0 %v2467
        %2888 = vmatpush1.bf16.msra.mxu0 %v2466
        %2889 = vmatprep.subr.bf16.mxu0 %v2475
        %2890 = vmatpush1.bf16.msra.mxu0 %v2474
        %2891 = vmatprep.mubr.bf16.mxu0 %v1293
        %2892 = vmatmul.mubr.bf16.gmra.mrb[0].mxu0 %v1279
        %v2893 = vpop.f32.mrb[0].mxu0
        %v2894 = vadd.f32 0.0, %v2893
        %v2895 = vpop.f32.mrb[0].mxu0
        %v2896 = vadd.f32 0.0, %v2895
        %v2897 = vpop.f32.mrb[0].mxu0
        %v2898 = vpop.f32.mrb[0].mxu0
        %2899 = vdwg.mxu0
        %2900 = vmatprep.subr.bf16.mxu0 %v2483
        %2901 = vmatpush1.bf16.msra.mxu0 %v2482
        %2902 = vmatprep.subr.bf16.mxu0 %v2491
        %2903 = vmatpush1.bf16.msra.mxu0 %v2490
        %2904 = vmatprep.subr.bf16.mxu0 %v2499
        %2905 = vmatpush1.bf16.msra.mxu0 %v2498
        %2906 = vmatprep.subr.bf16.mxu0 %v2507
        %2907 = vmatpush1.bf16.msra.mxu0 %v2506
        %2908 = vmatprep.subr.bf16.mxu0 %v2515
        %2909 = vmatpush1.bf16.msra.mxu0 %v2514
        %2910 = vmatprep.subr.bf16.mxu0 %v2523
        %2911 = vmatpush1.bf16.msra.mxu0 %v2522
        %2912 = vmatprep.subr.bf16.mxu0 %v2531
        %2913 = vmatpush1.bf16.msra.mxu0 %v2530
        %2914 = vmatprep.subr.bf16.mxu0 %v2539
        %2915 = vmatpush1.bf16.msra.mxu0 %v2538
        %2916 = vmatprep.subr.bf16.mxu0 %v2547
        %2917 = vmatpush1.bf16.msra.mxu0 %v2546
        %2918 = vmatprep.subr.bf16.mxu0 %v2555
        %2919 = vmatpush1.bf16.msra.mxu0 %v2554
        %2920 = vmatprep.subr.bf16.mxu0 %v2563
        %2921 = vmatpush1.bf16.msra.mxu0 %v2562
        %2922 = vmatprep.subr.bf16.mxu0 %v2571
        %2923 = vmatpush1.bf16.msra.mxu0 %v2570
        %2924 = vmatprep.subr.bf16.mxu0 %v2579
        %2925 = vmatpush1.bf16.msra.mxu0 %v2578
        %2926 = vmatprep.subr.bf16.mxu0 %v2587
        %2927 = vmatpush1.bf16.msra.mxu0 %v2586
        %2928 = vmatprep.subr.bf16.mxu0 %v2595
        %2929 = vmatpush1.bf16.msra.mxu0 %v2594
        %2930 = vmatprep.subr.bf16.mxu0 %v2603
        %2931 = vmatpush1.bf16.msra.mxu0 %v2602
        %2932 = vmatprep.mubr.bf16.mxu0 %v1302
        %2933 = vmatmul.mubr.bf16.gmra.mrb[0].mxu0 %v1301
        %v2934 = vpop.f32.mrb[0].mxu0
        %v2935 = vadd.f32 %v2894, %v2934
        %v2936 = vpop.f32.mrb[0].mxu0
        %v2937 = vadd.f32 %v2896, %v2936
        %v2938 = vpop.f32.mrb[0].mxu0
        %v2939 = vpop.f32.mrb[0].mxu0
        %2940 = vdwg.mxu0
        %2941 = vmatprep.subr.bf16.mxu0 %v2611
        %2942 = vmatpush1.bf16.msra.mxu0 %v2610
        %2943 = vmatprep.subr.bf16.mxu0 %v2619
        %2944 = vmatpush1.bf16.msra.mxu0 %v2618
        %2945 = vmatprep.subr.bf16.mxu0 %v2627
        %2946 = vmatpush1.bf16.msra.mxu0 %v2626
        %2947 = vmatprep.subr.bf16.mxu0 %v2635
        %2948 = vmatpush1.bf16.msra.mxu0 %v2634
        %2949 = vmatprep.subr.bf16.mxu0 %v2643
        %2950 = vmatpush1.bf16.msra.mxu0 %v2642
        %2951 = vmatprep.subr.bf16.mxu0 %v2651
        %2952 = vmatpush1.bf16.msra.mxu0 %v2650
        %2953 = vmatprep.subr.bf16.mxu0 %v2659
        %2954 = vmatpush1.bf16.msra.mxu0 %v2658
        %2955 = vmatprep.subr.bf16.mxu0 %v2667
        %2956 = vmatpush1.bf16.msra.mxu0 %v2666
        %2957 = vmatprep.subr.bf16.mxu0 %v2675
        %2958 = vmatpush1.bf16.msra.mxu0 %v2674
        %2959 = vmatprep.subr.bf16.mxu0 %v2683
        %2960 = vmatpush1.bf16.msra.mxu0 %v2682
        %2961 = vmatprep.subr.bf16.mxu0 %v2691
        %2962 = vmatpush1.bf16.msra.mxu0 %v2690
        %2963 = vmatprep.subr.bf16.mxu0 %v2699
        %2964 = vmatpush1.bf16.msra.mxu0 %v2698
        %2965 = vmatprep.subr.bf16.mxu0 %v2707
        %2966 = vmatpush1.bf16.msra.mxu0 %v2706
        %2967 = vmatprep.subr.bf16.mxu0 %v2715
        %2968 = vmatpush1.bf16.msra.mxu0 %v2714
        %2969 = vmatprep.subr.bf16.mxu0 %v2723
        %2970 = vmatpush1.bf16.msra.mxu0 %v2722
        %2971 = vmatprep.subr.bf16.mxu0 %v2731
        %2972 = vmatpush1.bf16.msra.mxu0 %v2730
        %2973 = vmatprep.mubr.bf16.mxu0 %v1300
        %2974 = vmatmul.mubr.bf16.gmra.mrb[0].mxu0 %v1286
        %v2975 = vpop.f32.mrb[0].mxu0
        %v2976 = vadd.f32 %v2935, %v2975
        %v2977 = vpop.f32.mrb[0].mxu0
        %v2978 = vadd.f32 %v2937, %v2977
        %v2979 = vpop.f32.mrb[0].mxu0
        %v2980 = vpop.f32.mrb[0].mxu0
        %2981 = vdwg.mxu0
        %2982 = vmatprep.subr.bf16.mxu0 %v2357
        %2983 = vmatpush1.bf16.msra.mxu0 %v2356
        %2984 = vmatprep.subr.bf16.mxu0 %v2365
        %2985 = vmatpush1.bf16.msra.mxu0 %v2364
        %2986 = vmatprep.subr.bf16.mxu0 %v2373
        %2987 = vmatpush1.bf16.msra.mxu0 %v2372
        %2988 = vmatprep.subr.bf16.mxu0 %v2381
        %2989 = vmatpush1.bf16.msra.mxu0 %v2380
        %2990 = vmatprep.subr.bf16.mxu0 %v2389
        %2991 = vmatpush1.bf16.msra.mxu0 %v2388
        %2992 = vmatprep.subr.bf16.mxu0 %v2397
        %2993 = vmatpush1.bf16.msra.mxu0 %v2396
        %2994 = vmatprep.subr.bf16.mxu0 %v2405
        %2995 = vmatpush1.bf16.msra.mxu0 %v2404
        %2996 = vmatprep.subr.bf16.mxu0 %v2413
        %2997 = vmatpush1.bf16.msra.mxu0 %v2412
        %2998 = vmatprep.subr.bf16.mxu0 %v2421
        %2999 = vmatpush1.bf16.msra.mxu0 %v2420
        %3000 = vmatprep.subr.bf16.mxu0 %v2429
        %3001 = vmatpush1.bf16.msra.mxu0 %v2428
        %3002 = vmatprep.subr.bf16.mxu0 %v2437
        %3003 = vmatpush1.bf16.msra.mxu0 %v2436
        %3004 = vmatprep.subr.bf16.mxu0 %v2445
        %3005 = vmatpush1.bf16.msra.mxu0 %v2444
        %3006 = vmatprep.subr.bf16.mxu0 %v2453
        %3007 = vmatpush1.bf16.msra.mxu0 %v2452
        %3008 = vmatprep.subr.bf16.mxu0 %v2461
        %3009 = vmatpush1.bf16.msra.mxu0 %v2460
        %3010 = vmatprep.subr.bf16.mxu0 %v2469
        %3011 = vmatpush1.bf16.msra.mxu0 %v2468
        %3012 = vmatprep.subr.bf16.mxu0 %v2477
        %3013 = vmatpush1.bf16.msra.mxu0 %v2476
        %3014 = vmatprep.mubr.bf16.mxu0 %v1293
        %3015 = vmatmul.mubr.bf16.gmra.mrb[0].mxu0 %v1279
        %v3016 = vpop.f32.mrb[0].mxu0
        %v3017 = vadd.f32 0.0, %v3016
        %v3018 = vpop.f32.mrb[0].mxu0
        %v3019 = vadd.f32 0.0, %v3018
        %v3020 = vpop.f32.mrb[0].mxu0
        %v3021 = vpop.f32.mrb[0].mxu0
        %3022 = vdwg.mxu0
        %3023 = vmatprep.subr.bf16.mxu0 %v2485
        %3024 = vmatpush1.bf16.msra.mxu0 %v2484
        %3025 = vmatprep.subr.bf16.mxu0 %v2493
        %3026 = vmatpush1.bf16.msra.mxu0 %v2492
        %3027 = vmatprep.subr.bf16.mxu0 %v2501
        %3028 = vmatpush1.bf16.msra.mxu0 %v2500
        %3029 = vmatprep.subr.bf16.mxu0 %v2509
        %3030 = vmatpush1.bf16.msra.mxu0 %v2508
        %3031 = vmatprep.subr.bf16.mxu0 %v2517
        %3032 = vmatpush1.bf16.msra.mxu0 %v2516
        %3033 = vmatprep.subr.bf16.mxu0 %v2525
        %3034 = vmatpush1.bf16.msra.mxu0 %v2524
        %3035 = vmatprep.subr.bf16.mxu0 %v2533
        %3036 = vmatpush1.bf16.msra.mxu0 %v2532
        %3037 = vmatprep.subr.bf16.mxu0 %v2541
        %3038 = vmatpush1.bf16.msra.mxu0 %v2540
        %3039 = vmatprep.subr.bf16.mxu0 %v2549
        %3040 = vmatpush1.bf16.msra.mxu0 %v2548
        %3041 = vmatprep.subr.bf16.mxu0 %v2557
        %3042 = vmatpush1.bf16.msra.mxu0 %v2556
        %3043 = vmatprep.subr.bf16.mxu0 %v2565
        %3044 = vmatpush1.bf16.msra.mxu0 %v2564
        %3045 = vmatprep.subr.bf16.mxu0 %v2573
        %3046 = vmatpush1.bf16.msra.mxu0 %v2572
        %3047 = vmatprep.subr.bf16.mxu0 %v2581
        %3048 = vmatpush1.bf16.msra.mxu0 %v2580
        %3049 = vmatprep.subr.bf16.mxu0 %v2589
        %3050 = vmatpush1.bf16.msra.mxu0 %v2588
        %3051 = vmatprep.subr.bf16.mxu0 %v2597
        %3052 = vmatpush1.bf16.msra.mxu0 %v2596
        %3053 = vmatprep.subr.bf16.mxu0 %v2605
        %3054 = vmatpush1.bf16.msra.mxu0 %v2604
        %3055 = vmatprep.mubr.bf16.mxu0 %v1302
        %3056 = vmatmul.mubr.bf16.gmra.mrb[0].mxu0 %v1301
        %v3057 = vpop.f32.mrb[0].mxu0
        %v3058 = vadd.f32 %v3017, %v3057
        %v3059 = vpop.f32.mrb[0].mxu0
        %v3060 = vadd.f32 %v3019, %v3059
        %v3061 = vpop.f32.mrb[0].mxu0
        %v3062 = vpop.f32.mrb[0].mxu0
        %3063 = vdwg.mxu0
        %3064 = vmatprep.subr.bf16.mxu0 %v2613
        %3065 = vmatpush1.bf16.msra.mxu0 %v2612
        %3066 = vmatprep.subr.bf16.mxu0 %v2621
        %3067 = vmatpush1.bf16.msra.mxu0 %v2620
        %3068 = vmatprep.subr.bf16.mxu0 %v2629
        %3069 = vmatpush1.bf16.msra.mxu0 %v2628
        %3070 = vmatprep.subr.bf16.mxu0 %v2637
        %3071 = vmatpush1.bf16.msra.mxu0 %v2636
        %3072 = vmatprep.subr.bf16.mxu0 %v2645
        %3073 = vmatpush1.bf16.msra.mxu0 %v2644
        %3074 = vmatprep.subr.bf16.mxu0 %v2653
        %3075 = vmatpush1.bf16.msra.mxu0 %v2652
        %3076 = vmatprep.subr.bf16.mxu0 %v2661
        %3077 = vmatpush1.bf16.msra.mxu0 %v2660
        %3078 = vmatprep.subr.bf16.mxu0 %v2669
        %3079 = vmatpush1.bf16.msra.mxu0 %v2668
        %3080 = vmatprep.subr.bf16.mxu0 %v2677
        %3081 = vmatpush1.bf16.msra.mxu0 %v2676
        %3082 = vmatprep.subr.bf16.mxu0 %v2685
        %3083 = vmatpush1.bf16.msra.mxu0 %v2684
        %3084 = vmatprep.subr.bf16.mxu0 %v2693
        %3085 = vmatpush1.bf16.msra.mxu0 %v2692
        %3086 = vmatprep.subr.bf16.mxu0 %v2701
        %3087 = vmatpush1.bf16.msra.mxu0 %v2700
        %3088 = vmatprep.subr.bf16.mxu0 %v2709
        %3089 = vmatpush1.bf16.msra.mxu0 %v2708
        %3090 = vmatprep.subr.bf16.mxu0 %v2717
        %3091 = vmatpush1.bf16.msra.mxu0 %v2716
        %3092 = vmatprep.subr.bf16.mxu0 %v2725
        %3093 = vmatpush1.bf16.msra.mxu0 %v2724
        %3094 = vmatprep.subr.bf16.mxu0 %v2733
        %3095 = vmatpush1.bf16.msra.mxu0 %v2732
        %3096 = vmatprep.mubr.bf16.mxu0 %v1300
        %3097 = vmatmul.mubr.bf16.gmra.mrb[0].mxu0 %v1286
        %v3098 = vpop.f32.mrb[0].mxu0
        %v3099 = vadd.f32 %v3058, %v3098
        %v3100 = vpop.f32.mrb[0].mxu0
        %v3101 = vadd.f32 %v3060, %v3100
        %v3102 = vpop.f32.mrb[0].mxu0
        %v3103 = vpop.f32.mrb[0].mxu0
        %3104 = vdwg.mxu0
        %3105 = vmatprep.subr.bf16.mxu0 %v2359
        %3106 = vmatpush1.bf16.msra.mxu0 %v2358
        %3107 = vmatprep.subr.bf16.mxu0 %v2367
        %3108 = vmatpush1.bf16.msra.mxu0 %v2366
        %3109 = vmatprep.subr.bf16.mxu0 %v2375
        %3110 = vmatpush1.bf16.msra.mxu0 %v2374
        %3111 = vmatprep.subr.bf16.mxu0 %v2383
        %3112 = vmatpush1.bf16.msra.mxu0 %v2382
        %3113 = vmatprep.subr.bf16.mxu0 %v2391
        %3114 = vmatpush1.bf16.msra.mxu0 %v2390
        %3115 = vmatprep.subr.bf16.mxu0 %v2399
        %3116 = vmatpush1.bf16.msra.mxu0 %v2398
        %3117 = vmatprep.subr.bf16.mxu0 %v2407
        %3118 = vmatpush1.bf16.msra.mxu0 %v2406
        %3119 = vmatprep.subr.bf16.mxu0 %v2415
        %3120 = vmatpush1.bf16.msra.mxu0 %v2414
        %3121 = vmatprep.subr.bf16.mxu0 %v2423
        %3122 = vmatpush1.bf16.msra.mxu0 %v2422
        %3123 = vmatprep.subr.bf16.mxu0 %v2431
        %3124 = vmatpush1.bf16.msra.mxu0 %v2430
        %3125 = vmatprep.subr.bf16.mxu0 %v2439
        %3126 = vmatpush1.bf16.msra.mxu0 %v2438
        %3127 = vmatprep.subr.bf16.mxu0 %v2447
        %3128 = vmatpush1.bf16.msra.mxu0 %v2446
        %3129 = vmatprep.subr.bf16.mxu0 %v2455
        %3130 = vmatpush1.bf16.msra.mxu0 %v2454
        %3131 = vmatprep.subr.bf16.mxu0 %v2463
        %3132 = vmatpush1.bf16.msra.mxu0 %v2462
        %3133 = vmatprep.subr.bf16.mxu0 %v2471
        %3134 = vmatpush1.bf16.msra.mxu0 %v2470
        %3135 = vmatprep.subr.bf16.mxu0 %v2479
        %3136 = vmatpush1.bf16.msra.mxu0 %v2478
        %3137 = vmatprep.mubr.bf16.mxu0 %v1293
        %3138 = vmatmul.mubr.bf16.gmra.mrb[0].mxu0 %v1279
        %v3139 = vpop.f32.mrb[0].mxu0
        %v3140 = vadd.f32 0.0, %v3139
        %v3141 = vpop.f32.mrb[0].mxu0
        %v3142 = vadd.f32 0.0, %v3141
        %v3143 = vpop.f32.mrb[0].mxu0
        %v3144 = vpop.f32.mrb[0].mxu0
        %3145 = vdwg.mxu0
        %3146 = vmatprep.subr.bf16.mxu0 %v2487
        %3147 = vmatpush1.bf16.msra.mxu0 %v2486
        %3148 = vmatprep.subr.bf16.mxu0 %v2495
        %3149 = vmatpush1.bf16.msra.mxu0 %v2494
        %3150 = vmatprep.subr.bf16.mxu0 %v2503
        %3151 = vmatpush1.bf16.msra.mxu0 %v2502
        %3152 = vmatprep.subr.bf16.mxu0 %v2511
        %3153 = vmatpush1.bf16.msra.mxu0 %v2510
        %3154 = vmatprep.subr.bf16.mxu0 %v2519
        %3155 = vmatpush1.bf16.msra.mxu0 %v2518
        %3156 = vmatprep.subr.bf16.mxu0 %v2527
        %3157 = vmatpush1.bf16.msra.mxu0 %v2526
        %3158 = vmatprep.subr.bf16.mxu0 %v2535
        %3159 = vmatpush1.bf16.msra.mxu0 %v2534
        %3160 = vmatprep.subr.bf16.mxu0 %v2543
        %3161 = vmatpush1.bf16.msra.mxu0 %v2542
        %3162 = vmatprep.subr.bf16.mxu0 %v2551
        %3163 = vmatpush1.bf16.msra.mxu0 %v2550
        %3164 = vmatprep.subr.bf16.mxu0 %v2559
        %3165 = vmatpush1.bf16.msra.mxu0 %v2558
        %3166 = vmatprep.subr.bf16.mxu0 %v2567
        %3167 = vmatpush1.bf16.msra.mxu0 %v2566
        %3168 = vmatprep.subr.bf16.mxu0 %v2575
        %3169 = vmatpush1.bf16.msra.mxu0 %v2574
        %3170 = vmatprep.subr.bf16.mxu0 %v2583
        %3171 = vmatpush1.bf16.msra.mxu0 %v2582
        %3172 = vmatprep.subr.bf16.mxu0 %v2591
        %3173 = vmatpush1.bf16.msra.mxu0 %v2590
        %3174 = vmatprep.subr.bf16.mxu0 %v2599
        %3175 = vmatpush1.bf16.msra.mxu0 %v2598
        %3176 = vmatprep.subr.bf16.mxu0 %v2607
        %3177 = vmatpush1.bf16.msra.mxu0 %v2606
        %3178 = vmatprep.mubr.bf16.mxu0 %v1302
        %3179 = vmatmul.mubr.bf16.gmra.mrb[0].mxu0 %v1301
        %v3180 = vpop.f32.mrb[0].mxu0
        %v3181 = vadd.f32 %v3140, %v3180
        %v3182 = vpop.f32.mrb[0].mxu0
        %v3183 = vadd.f32 %v3142, %v3182
        %v3184 = vpop.f32.mrb[0].mxu0
        %v3185 = vpop.f32.mrb[0].mxu0
        %3186 = vdwg.mxu0
        %3187 = vmatprep.subr.bf16.mxu0 %v2615
        %3188 = vmatpush1.bf16.msra.mxu0 %v2614
        %3189 = vmatprep.subr.bf16.mxu0 %v2623
        %3190 = vmatpush1.bf16.msra.mxu0 %v2622
        %3191 = vmatprep.subr.bf16.mxu0 %v2631
        %3192 = vmatpush1.bf16.msra.mxu0 %v2630
        %3193 = vmatprep.subr.bf16.mxu0 %v2639
        %3194 = vmatpush1.bf16.msra.mxu0 %v2638
        %3195 = vmatprep.subr.bf16.mxu0 %v2647
        %3196 = vmatpush1.bf16.msra.mxu0 %v2646
        %3197 = vmatprep.subr.bf16.mxu0 %v2655
        %3198 = vmatpush1.bf16.msra.mxu0 %v2654
        %3199 = vmatprep.subr.bf16.mxu0 %v2663
        %3200 = vmatpush1.bf16.msra.mxu0 %v2662
        %3201 = vmatprep.subr.bf16.mxu0 %v2671
        %3202 = vmatpush1.bf16.msra.mxu0 %v2670
        %3203 = vmatprep.subr.bf16.mxu0 %v2679
        %3204 = vmatpush1.bf16.msra.mxu0 %v2678
        %3205 = vmatprep.subr.bf16.mxu0 %v2687
        %3206 = vmatpush1.bf16.msra.mxu0 %v2686
        %3207 = vmatprep.subr.bf16.mxu0 %v2695
        %3208 = vmatpush1.bf16.msra.mxu0 %v2694
        %3209 = vmatprep.subr.bf16.mxu0 %v2703
        %3210 = vmatpush1.bf16.msra.mxu0 %v2702
        %3211 = vmatprep.subr.bf16.mxu0 %v2711
        %3212 = vmatpush1.bf16.msra.mxu0 %v2710
        %3213 = vmatprep.subr.bf16.mxu0 %v2719
        %3214 = vmatpush1.bf16.msra.mxu0 %v2718
        %3215 = vmatprep.subr.bf16.mxu0 %v2727
        %3216 = vmatpush1.bf16.msra.mxu0 %v2726
        %3217 = vmatprep.subr.bf16.mxu0 %v2735
        %3218 = vmatpush1.bf16.msra.mxu0 %v2734
        %3219 = vmatprep.mubr.bf16.mxu0 %v1300
        %3220 = vmatmul.mubr.bf16.gmra.mrb[0].mxu0 %v1286
        %v3221 = vpop.f32.mrb[0].mxu0
        %v3222 = vadd.f32 %v3181, %v3221
        %v3223 = vpop.f32.mrb[0].mxu0
        %v3224 = vadd.f32 %v3183, %v3223
        %v3225 = vpop.f32.mrb[0].mxu0
        %v3226 = vpop.f32.mrb[0].mxu0
        %3227 = vdwg.mxu0
        %v3228 = vld [vmem:[%s517] sm:$0xff]
        %v3230 = vlaneseq
        %v3231 = vshrl.u32 %v3230, 7
        %v3232 = vsub.s32 0, %v3231
        %v3233 = vrot.slane %v3228, %v3232
        %v3234 = vlaneseq
        %v3235 = vshrl.u32 %v3234, 7
        %v3236 = vsub.s32 1, %v3235
        %v3237 = vrot.slane %v3228, %v3236
        %v3238 = vlaneseq
        %v3239 = vshrl.u32 %v3238, 7
        %v3240 = vsub.s32 2, %v3239
        %v3241 = vrot.slane %v3228, %v3240
        %v3242 = vlaneseq
        %v3243 = vshrl.u32 %v3242, 7
        %v3244 = vsub.s32 3, %v3243
        %v3245 = vrot.slane %v3228, %v3244
        %v3246 = vlaneseq
        %v3247 = vshrl.u32 %v3246, 7
        %v3248 = vsub.s32 4, %v3247
        %v3249 = vrot.slane %v3228, %v3248
        %v3250 = vlaneseq
        %v3251 = vshrl.u32 %v3250, 7
        %v3252 = vsub.s32 5, %v3251
        %v3253 = vrot.slane %v3228, %v3252
        %v3254 = vlaneseq
        %v3255 = vshrl.u32 %v3254, 7
        %v3256 = vsub.s32 6, %v3255
        %v3257 = vrot.slane %v3228, %v3256
        %v3258 = vlaneseq
        %v3259 = vshrl.u32 %v3258, 7
        %v3260 = vsub.s32 7, %v3259
        %v3261 = vrot.slane %v3228, %v3260
        %v3270 = vmul.f32 %v2853, %v3233
        %v3271 = vmul.f32 %v2855, %v3237
        %v3272 = vmul.f32 %v2976, %v3241
        %v3273 = vmul.f32 %v2978, %v3245
        %v3274 = vmul.f32 %v3099, %v3249
        %v3275 = vmul.f32 %v3101, %v3253
        %v3276 = vmul.f32 %v3222, %v3257
        %v3277 = vmul.f32 %v3224, %v3261
        %v3278 = vld [vmem:[%s526] sm:$0xff]
        %v3280 = vlaneseq
        %v3281 = vshrl.u32 %v3280, 7
        %v3282 = vsub.s32 0, %v3281
        %v3283 = vrot.slane %v3278, %v3282
        %v3284 = vlaneseq
        %v3285 = vshrl.u32 %v3284, 7
        %v3286 = vsub.s32 1, %v3285
        %v3287 = vrot.slane %v3278, %v3286
        %v3288 = vlaneseq
        %v3289 = vshrl.u32 %v3288, 7
        %v3290 = vsub.s32 2, %v3289
        %v3291 = vrot.slane %v3278, %v3290
        %v3292 = vlaneseq
        %v3293 = vshrl.u32 %v3292, 7
        %v3294 = vsub.s32 3, %v3293
        %v3295 = vrot.slane %v3278, %v3294
        %v3296 = vlaneseq
        %v3297 = vshrl.u32 %v3296, 7
        %v3298 = vsub.s32 4, %v3297
        %v3299 = vrot.slane %v3278, %v3298
        %v3300 = vlaneseq
        %v3301 = vshrl.u32 %v3300, 7
        %v3302 = vsub.s32 5, %v3301
        %v3303 = vrot.slane %v3278, %v3302
        %v3304 = vlaneseq
        %v3305 = vshrl.u32 %v3304, 7
        %v3306 = vsub.s32 6, %v3305
        %v3307 = vrot.slane %v3278, %v3306
        %v3308 = vlaneseq
        %v3309 = vshrl.u32 %v3308, 7
        %v3310 = vsub.s32 7, %v3309
        %v3311 = vrot.slane %v3278, %v3310
        %v3320 = vadd.f32 %v3270, %v3283
        %v3321 = vadd.f32 %v3271, %v3287
        %v3322 = vadd.f32 %v3272, %v3291
        %v3323 = vadd.f32 %v3273, %v3295
        %v3324 = vadd.f32 %v3274, %v3299
        %v3325 = vadd.f32 %v3275, %v3303
        %v3326 = vadd.f32 %v3276, %v3307
        %v3327 = vadd.f32 %v3277, %v3311
        %v3328 = vmax.f32 %v3320, 0.0
        %v3329 = vmax.f32 %v3321, 0.0
        %v3330 = vmax.f32 %v3322, 0.0
        %v3331 = vmax.f32 %v3323, 0.0
        %v3332 = vmax.f32 %v3324, 0.0
        %v3333 = vmax.f32 %v3325, 0.0
        %v3334 = vmax.f32 %v3326, 0.0
        %v3335 = vmax.f32 %v3327, 0.0
        %v3336 = vpack.c.bf16 %v3328, %v3328
        %v3337 = vpack.c.bf16 %v3329, %v3329
        %v3338 = vpack.c.bf16 %v3330, %v3330
        %v3339 = vpack.c.bf16 %v3331, %v3331
        %v3340 = vpack.c.bf16 %v3332, %v3332
        %v3341 = vpack.c.bf16 %v3333, %v3333
        %v3342 = vpack.c.bf16 %v3334, %v3334
        %v3343 = vpack.c.bf16 %v3335, %v3335
        %v3352 = vcombine.low %v3336, %v3337
        %v3353 = vcombine.low %v3338, %v3339
        %v3354 = vcombine.low %v3340, %v3341
        %v3355 = vcombine.low %v3342, %v3343
        %v3357 = vunpack.c.l.s4 1966171168
        %v3358 = vunpack.c.0.s8 %v3357
        %v3359 = vlaneseq
        %v3360 = vshrl.u32 %v3359, 7
        %v3361 = vsub.s32 %v3358, %v3360
        %v3362 = vrot.slane %v3352, %v3361
        %v3364 = vunpack.c.l.s4 1966171168
        %v3365 = vunpack.c.0.s8 %v3364
        %v3366 = vlaneseq
        %v3367 = vshrl.u32 %v3366, 7
        %v3368 = vsub.s32 %v3365, %v3367
        %v3369 = vrot.slane %v3353, %v3368
        %v3371 = vunpack.c.l.s4 1966171168
        %v3372 = vunpack.c.0.s8 %v3371
        %v3373 = vlaneseq
        %v3374 = vshrl.u32 %v3373, 7
        %v3375 = vsub.s32 %v3372, %v3374
        %v3376 = vrot.slane %v3354, %v3375
        %v3378 = vunpack.c.l.s4 1966171168
        %v3379 = vunpack.c.0.s8 %v3378
        %v3380 = vlaneseq
        %v3381 = vshrl.u32 %v3380, 7
        %v3382 = vsub.s32 %v3379, %v3381
        %v3383 = vrot.slane %v3355, %v3382
        %v3384 = vcombine.low %v3362, %v3369
        %v3385 = vcombine.low %v3376, %v3383
        %v3387 = vunpack.c.l.s4 1966171168
        %v3388 = vunpack.c.0.s8 %v3387
        %v3389 = vlaneseq
        %v3390 = vshrl.u32 %v3389, 7
        %v3391 = vsub.s32 %v3388, %v3390
        %v3392 = vrot.slane %v3384, %v3391
        %v3394 = vunpack.c.l.s4 1966171168
        %v3395 = vunpack.c.0.s8 %v3394
        %v3396 = vlaneseq
        %v3397 = vshrl.u32 %v3396, 7
        %v3398 = vsub.s32 %v3395, %v3397
        %v3399 = vrot.slane %v3385, %v3398
        %v3400 = vcombine.low %v3392, %v3399
        %3402 = vst [vmem:[%s595] sm:$0xff] %v3400
        %s3403 = sand.u32 %s251, 1
        %s3404 = scalar_lea.sflag [#allocation4], %s3403
        %s3405 = sand.u32 %s251, 1
        %s3406 = smul.addr %s3405, 18
        %s3407 = scalar_lea.vmem [#allocation16], %s3406
        %s3408 = sand.u32 %s277, 1
        %s3409 = scalar_lea.sflag [#allocation18], %s3408
        %s3410 = sand.u32 %s277, 1
        %s3411 = smul.addr %s3410, 8
        %s3412 = scalar_lea.vmem [#allocation17], %s3411
        // Predicated region
        $region85: #{tpu_custom_call.1} parent=51 // pred_check
          %p3413 = pneg %p261
        $region86: #{tpu_custom_call.1} parent=51 // pred_check_branch
          %3415 = sbr.rel (%p3413) target = $region88
        $region87: #{tpu_custom_call.1} parent=51 // pred_region
          %s3416 = smul.u32 9, %s40
          %s3418 = ssub.s32 288, 288
          %3419 = vsyncadd %s3404, %s3418
          %s3420 = smul.addr %s3416, 32
          %s3421 = scalar_lea.hbm %s8, %s3420
          %s3423 = sshll.u32 %s3407, 4
          %s3424 = int_to_ptr.vmem [resolvable:$true] %s3423
          %3426 = dma.vmem_to_hbm [thread:$0]  %s3424, 288, %s3421, %s3404
        $region88: #{tpu_custom_call.1} parent=51 // pred_fallthru
          _
        // Predicated region
        $region89: #{tpu_custom_call.1} parent=51 // pred_check
          %p3427 = pneg %p287
        $region90: #{tpu_custom_call.1} parent=51 // pred_check_branch
          %3429 = sbr.rel (%p3427) target = $region92
        $region91: #{tpu_custom_call.1} parent=51 // pred_region
          %s3430 = smul.u32 8, %s40
          %s3432 = ssub.s32 128, 128
          %3433 = vsyncadd %s3409, %s3432
          %s3434 = smul.addr %s3430, 16
          %s3435 = scalar_lea.hbm %s9, %s3434
          %s3437 = sshll.u32 %s3412, 4
          %s3438 = int_to_ptr.vmem [resolvable:$true] %s3437
          %3440 = dma.vmem_to_hbm [thread:$0]  %s3438, 128, %s3435, %s3409
        $region92: #{tpu_custom_call.1} parent=51 // pred_fallthru
          _
      $region52: #{tpu_custom_call.1} parent=5 // pred_fallthru
        _
      %p3441 = scmp.le.s32.totalorder 2, %s35
      // Predicated region
      $region93: #{tpu_custom_call.1} parent=5 // pred_check
        %p3442 = pneg %p3441
      $region94: #{tpu_custom_call.1} parent=5 // pred_check_branch
        %3444 = sbr.rel (%p3442) target = $region96
      $region95: #{tpu_custom_call.1} parent=5 // pred_region
        %s3445 = ssub.s32 %s35, 2
        // Predicated region
        $region97: #{tpu_custom_call.1} parent=95 // pred_check
          %p3446 = pneg %p267
        $region98: #{tpu_custom_call.1} parent=95 // pred_check_branch
          %3448 = sbr.rel (%p3446) target = $region100
        $region99: #{tpu_custom_call.1} parent=95 // pred_region
          %s3449 = sand.u32 %s252, 1
          %s3450 = scalar_lea.sflag [#allocation4], %s3449
          %s3451 = sand.u32 %s252, 1
          %s3452 = smul.addr %s3451, 18
          %s3453 = scalar_lea.vmem [#allocation16], %s3452
          %3454 = dma.done %s3450, 288
        $region100: #{tpu_custom_call.1} parent=95 // pred_fallthru
          _
        // Predicated region
        $region101: #{tpu_custom_call.1} parent=95 // pred_check
          %p3455 = pneg %p293
        $region102: #{tpu_custom_call.1} parent=95 // pred_check_branch
          %3457 = sbr.rel (%p3455) target = $region104
        $region103: #{tpu_custom_call.1} parent=95 // pred_region
          %s3458 = sand.u32 %s278, 1
          %s3459 = scalar_lea.sflag [#allocation18], %s3458
          %s3460 = sand.u32 %s278, 1
          %s3461 = smul.addr %s3460, 8
          %s3462 = scalar_lea.vmem [#allocation17], %s3461
          %3463 = dma.done %s3459, 128
        $region104: #{tpu_custom_call.1} parent=95 // pred_fallthru
          _
      $region96: #{tpu_custom_call.1} parent=5 // pred_fallthru
        _
    $region6: #{tpu_custom_call.1} parent=1 // loop_footer
      %s39 = sadd.s32 1, %s35
    $region7: #{tpu_custom_call.1} parent=1 // loop_footer_branch
      %34 = sbr.rel target = $region3
    $region8: #{tpu_custom_call.1} parent=1 // loop_exit
      _
    %3464 = vsyncpa [#allocation3], 1
    %s3465 = scalar_lea.sflag [#allocation3], 1
    %3466 = vsyncpa %s3465, 1
    %3467 = vsyncpa [#allocation6], 1
    %s3468 = scalar_lea.sflag [#allocation6], 1
    %3469 = vsyncpa %s3468, 1
    %3470 = vsyncpa [#allocation9], 1
    %s3471 = scalar_lea.sflag [#allocation9], 1
    %3472 = vsyncpa %s3471, 1
    %3473 = vsyncpa [#allocation12], 1
    %s3474 = scalar_lea.sflag [#allocation12], 1
    %3475 = vsyncpa %s3474, 1
    %3476 = vsyncpa [#allocation15], 1
    %s3477 = scalar_lea.sflag [#allocation15], 1
    %3478 = vsyncpa %s3477, 1
    %3479 = vsyncpa [#allocation4], 1
    %s3480 = scalar_lea.sflag [#allocation4], 1
    %3481 = vsyncpa %s3480, 1
    %3482 = vsyncpa [#allocation18], 1
    %s3483 = scalar_lea.sflag [#allocation18], 1
    %3484 = vsyncpa %s3483, 1

</llo_original>
